<compile_context>
chip_gen: v7x
topology: tpu7x:2x2x1
jax: 0.10.0
libtpu: 0.0.40
codegen_flags: <defaults>
</compile_context>

<pallas_src>
import jax
import jax.numpy as jnp
from jax.experimental import pallas as pl
from jax.experimental.pallas import tpu as pltpu


_LANE = 128
_VMEM_SPEC = pl.BlockSpec(memory_space=pltpu.MemorySpace.VMEM)


def _round_up(x, m):
    return (x + m - 1) // m * m


# ----------------------------- Pallas kernels ------------------------------

def _conv_relu_pool_kernel(p_ref, w_ref, b_ref, o_ref):
    # p_ref: (4, tm, Kpad)   -- 4 pooling candidates of im2col patches
    # w_ref: (Kpad, 128)     -- weights, K and Cout zero-padded
    # b_ref: (1, 128)
    # o_ref: (tm, 128)       -- relu(max_c(conv_c)) == maxpool(relu(conv))
    w = w_ref[...]
    b = b_ref[...]
    acc = jnp.dot(p_ref[0], w, preferred_element_type=jnp.float32) + b
    for c in range(1, 4):
        cand = jnp.dot(p_ref[c], w, preferred_element_type=jnp.float32) + b
        acc = jnp.maximum(acc, cand)
    o_ref[...] = jnp.maximum(acc, 0.0).astype(o_ref.dtype)


def _fc_stack_kernel(x_ref, w1_ref, b1_ref, w2_ref, b2_ref, w3_ref, b3_ref,
                     o_ref):
    # Fused fc1+relu -> fc2+relu -> fc3, all weights resident in VMEM.
    # Padded columns stay exactly zero (zero weight cols / zero bias pad).
    h = jnp.dot(x_ref[...], w1_ref[...], preferred_element_type=jnp.float32)
    h = jnp.maximum(h + b1_ref[...], 0.0)
    h = jnp.dot(h, w2_ref[...], preferred_element_type=jnp.float32)
    h = jnp.maximum(h + b2_ref[...], 0.0)
    out = jnp.dot(h, w3_ref[...], preferred_element_type=jnp.float32)
    o_ref[...] = (out + b3_ref[...]).astype(o_ref.dtype)


# ------------------------------- glue layers -------------------------------

def _pool_patches(x_nhwc, k):
    """im2col for the 4 maxpool(2,2) candidates of a valid k x k conv.

    Returns (4, M, K) with M = B*PH*PW rows, K = k*k*C columns flattened in
    (kh, kw, cin) order; candidate c holds the patches at conv-output
    positions (2i+dy, 2j+dx).
    """
    B, H, W, C = x_nhwc.shape
    OH, OW = H - k + 1, W - k + 1
    PH, PW = OH // 2, OW // 2
    cands = []
    for dy in range(2):
        for dx in range(2):
            cols = []
            for kh in range(k):
                for kw in range(k):
                    sl = x_nhwc[:, dy + kh:dy + kh + 2 * PH:2,
                                dx + kw:dx + kw + 2 * PW:2, :]  # (B,PH,PW,C)
                    cols.append(sl)
            p = jnp.stack(cols, axis=3)                 # (B, PH, PW, k*k, C)
            cands.append(p.reshape(B * PH * PW, k * k * C))
    return jnp.stack(cands, axis=0), PH, PW             # (4, M, K)


def conv_relu_pool(x_nhwc, w_mat, b_row, *, cout, k):
    """Fused Conv2d(valid, stride 1) + ReLU + MaxPool(2,2); NHWC in/out."""
    B = x_nhwc.shape[0]
    patches, PH, PW = _pool_patches(x_nhwc, k)
    _, M, K = patches.shape
    Kpad, Npad = w_mat.shape

    tm = min(256, _round_up(M, 8))
    Mpad = _round_up(M, tm)
    patches = jnp.pad(patches, ((0, 0), (0, Mpad - M), (0, Kpad - K)))

    out = pl.pallas_call(
        _conv_relu_pool_kernel,
        out_shape=jax.ShapeDtypeStruct((Mpad, Npad), jnp.float32),
        grid_spec=pltpu.PrefetchScalarGridSpec(
            num_scalar_prefetch=0,
            grid=(Mpad // tm,),
            in_specs=[
                pl.BlockSpec((4, tm, Kpad), lambda i: (0, i, 0)),
                pl.BlockSpec((Kpad, Npad), lambda i: (0, 0)),
                pl.BlockSpec((1, Npad), lambda i: (0, 0)),
            ],
            out_specs=pl.BlockSpec((tm, Npad), lambda i: (i, 0)),
        ),
        compiler_params=pltpu.CompilerParams(
            dimension_semantics=("parallel",),
            # keep double-buffered row tiles well inside v7x's 64 MiB VMEM
            vmem_limit_bytes=32 * 1024 * 1024,
        ),
    )(patches, w_mat, b_row)

    return out[:M, :cout].reshape(B, PH, PW, cout)      # NHWC


def fc_stack(x, prep):
    """Fused fc1(relu) -> fc2(relu) -> fc3 in one pallas_call. x: (B, 400)."""
    B = x.shape[0]
    return pl.pallas_call(
        _fc_stack_kernel,
        out_shape=jax.ShapeDtypeStruct((B, _LANE), jnp.float32),
        in_specs=[_VMEM_SPEC] * 7,
        out_specs=_VMEM_SPEC,
    )(x, prep["fc1_w"], prep["fc1_b"],
      prep["fc2_w"], prep["fc2_b"],
      prep["fc3_w"], prep["fc3_b"])


# ----------------------------- parameters & net -----------------------------

def init_params(key):
    """Deterministic init mirroring PyTorch's U(-1/sqrt(fan_in), 1/sqrt(fan_in))."""
    keys = jax.random.split(key, 10)

    def u(k, shape, fan_in):
        bound = 1.0 / jnp.sqrt(jnp.float32(fan_in))
        return jax.random.uniform(k, shape, jnp.float32, -bound, bound)

    return {
        "conv1_w": u(keys[0], (6, 3, 5, 5), 3 * 5 * 5),
        "conv1_b": u(keys[1], (6,), 3 * 5 * 5),
        "conv2_w": u(keys[2], (16, 6, 5, 5), 6 * 5 * 5),
        "conv2_b": u(keys[3], (16,), 6 * 5 * 5),
        "fc1_w": u(keys[4], (120, 16 * 5 * 5), 16 * 5 * 5),
        "fc1_b": u(keys[5], (120,), 16 * 5 * 5),
        "fc2_w": u(keys[6], (84, 120), 120),
        "fc2_b": u(keys[7], (84,), 120),
        "fc3_w": u(keys[8], (10, 84), 84),
        "fc3_b": u(keys[9], (10,), 84),
    }


def prepare_params(params):
    """One-time weight reshaping/padding (keeps transposes out of the fwd)."""
    def conv_mat(w_oihw, b):
        cout, cin, kh, kw = w_oihw.shape
        k = cin * kh * kw
        kpad = _round_up(k, _LANE)
        # (Cout,Cin,KH,KW) -> (KH,KW,Cin,Cout) to match (kh,kw,cin) patch order
        wm = jnp.transpose(w_oihw, (2, 3, 1, 0)).reshape(k, cout)
        wm = jnp.pad(wm, ((0, kpad - k), (0, _LANE - cout)))
        bb = jnp.pad(b, (0, _LANE - cout)).reshape(1, _LANE)
        return wm, bb

    def fc_mat(w, b, kpad, npad):
        n, k = w.shape  # torch Linear stores (out, in)
        wm = jnp.pad(w.T, ((0, kpad - k), (0, npad - n)))
        bb = jnp.pad(b, (0, npad - n)).reshape(1, npad)
        return wm, bb

    c1w, c1b = conv_mat(params["conv1_w"], params["conv1_b"])
    c2w, c2b = conv_mat(params["conv2_w"], params["conv2_b"])
    f1w, f1b = fc_mat(params["fc1_w"], params["fc1_b"], 400, _LANE)
    f2w, f2b = fc_mat(params["fc2_w"], params["fc2_b"], _LANE, _LANE)
    f3w, f3b = fc_mat(params["fc3_w"], params["fc3_b"], _LANE, _LANE)
    return {
        "conv1_w": c1w, "conv1_b": c1b,
        "conv2_w": c2w, "conv2_b": c2b,
        "fc1_w": f1w, "fc1_b": f1b,
        "fc2_w": f2w, "fc2_b": f2b,
        "fc3_w": f3w, "fc3_b": f3b,
    }


def net_forward(prep, x):
    # x: (B, 3, 32, 32) NCHW, float32
    x = jnp.transpose(x, (0, 2, 3, 1))                                   # NHWC
    x = conv_relu_pool(x, prep["conv1_w"], prep["conv1_b"], cout=6, k=5)   # (B,14,14,6)
    x = conv_relu_pool(x, prep["conv2_w"], prep["conv2_b"], cout=16, k=5)  # (B,5,5,16)
    B = x.shape[0]
    # match torch's .view(-1, 400) flatten order on an NCHW tensor: (C,H,W)
    x = jnp.transpose(x, (0, 3, 1, 2)).reshape(B, 16 * 5 * 5)
    out = fc_stack(x, prep)                                               # (B,128)
    return out[:, :10]
    # TODO(synk): im2col patch extraction + NCHW<->NHWC transposes remain XLA
    # glue; building patches per row-tile inside the kernel would cut the
    # remaining 25x HBM blow-up of the patch matrix at large batch.


if __name__ == "__main__":
    key = jax.random.PRNGKey(0)
    pkey, xkey = jax.random.split(key)
    params = init_params(pkey)
    prep = prepare_params(params)          # one-time padding / transposition
    x = jax.random.normal(xkey, (2, 3, 32, 32), dtype=jnp.float32)

    out = jax.jit(net_forward)(prep, x)
    out = jax.block_until_ready(out)
    assert out.shape == (2, 10) and out.dtype == jnp.float32
    assert bool(jnp.all(jnp.isfinite(out)))
    print("KERNEL_OK")
</pallas_src>

<mosaic_0001>
module attributes {stable_mosaic.version = 11 : i64} {
  func.func @_conv_relu_pool_kernel(%arg0: i32, %arg1: memref<4x256x128xf32, #tpu.memory_space<vmem>>, %arg2: memref<128x128xf32, #tpu.memory_space<vmem>>, %arg3: memref<1x128xf32, #tpu.memory_space<vmem>>, %arg4: memref<256x128xf32, #tpu.memory_space<vmem>>) attributes {dimension_semantics = [#tpu.dimension_semantics<parallel>], iteration_bounds = array<i64: 2>, scalar_prefetch = 0 : i64, scratch_operands = 0 : i64, tpu.core_type = #tpu.core_type<tc>, window_params = [{transform_indices = @transform_0, window_bounds = array<i64: 4, 256, 128>}, {pipeline_mode = #tpu.pipeline_mode<synchronous>, transform_indices = @transform_1, window_bounds = array<i64: 128, 128>}, {pipeline_mode = #tpu.pipeline_mode<synchronous>, transform_indices = @transform_2, window_bounds = array<i64: 1, 128>}, {transform_indices = @transform_3, window_bounds = array<i64: 256, 128>}]} {
    %c0 = arith.constant 0 : index
    %c0_0 = arith.constant 0 : index
    %0 = vector.load %arg2[%c0, %c0_0] : memref<128x128xf32, #tpu.memory_space<vmem>>, vector<128x128xf32>
    %c0_1 = arith.constant 0 : index
    %c0_2 = arith.constant 0 : index
    %1 = vector.load %arg3[%c0_1, %c0_2] : memref<1x128xf32, #tpu.memory_space<vmem>>, vector<1x128xf32>
    %c0_3 = arith.constant 0 : index
    %c0_4 = arith.constant 0 : index
    %c0_5 = arith.constant 0 : index
    %2 = vector.load %arg1[%c0_3, %c0_4, %c0_5] : memref<4x256x128xf32, #tpu.memory_space<vmem>>, vector<1x256x128xf32>
    %3 = vector.shape_cast %2 : vector<1x256x128xf32> to vector<256x128xf32>
    %cst = arith.constant dense<0.000000e+00> : vector<256x128xf32>
    %4 = tpu.matmul %3, %0, %cst {dimension_numbers = #tpu.dot_dimension_numbers<[1], [0], [0], [1], [0, 0, 1, 1], [], []>} : vector<256x128xf32>, vector<128x128xf32>, vector<256x128xf32> -> vector<256x128xf32>
    %5 = vector.broadcast %1 : vector<1x128xf32> to vector<256x128xf32>
    %6 = arith.addf %4, %5 : vector<256x128xf32>
    %c1 = arith.constant 1 : index
    %c0_6 = arith.constant 0 : index
    %c0_7 = arith.constant 0 : index
    %7 = vector.load %arg1[%c1, %c0_6, %c0_7] : memref<4x256x128xf32, #tpu.memory_space<vmem>>, vector<1x256x128xf32>
    %8 = vector.shape_cast %7 : vector<1x256x128xf32> to vector<256x128xf32>
    %cst_8 = arith.constant dense<0.000000e+00> : vector<256x128xf32>
    %9 = tpu.matmul %8, %0, %cst_8 {dimension_numbers = #tpu.dot_dimension_numbers<[1], [0], [0], [1], [0, 0, 1, 1], [], []>} : vector<256x128xf32>, vector<128x128xf32>, vector<256x128xf32> -> vector<256x128xf32>
    %10 = vector.broadcast %1 : vector<1x128xf32> to vector<256x128xf32>
    %11 = arith.addf %9, %10 : vector<256x128xf32>
    %12 = arith.maximumf %6, %11 : vector<256x128xf32>
    %c2 = arith.constant 2 : index
    %c0_9 = arith.constant 0 : index
    %c0_10 = arith.constant 0 : index
    %13 = vector.load %arg1[%c2, %c0_9, %c0_10] : memref<4x256x128xf32, #tpu.memory_space<vmem>>, vector<1x256x128xf32>
    %14 = vector.shape_cast %13 : vector<1x256x128xf32> to vector<256x128xf32>
    %cst_11 = arith.constant dense<0.000000e+00> : vector<256x128xf32>
    %15 = tpu.matmul %14, %0, %cst_11 {dimension_numbers = #tpu.dot_dimension_numbers<[1], [0], [0], [1], [0, 0, 1, 1], [], []>} : vector<256x128xf32>, vector<128x128xf32>, vector<256x128xf32> -> vector<256x128xf32>
    %16 = vector.broadcast %1 : vector<1x128xf32> to vector<256x128xf32>
    %17 = arith.addf %15, %16 : vector<256x128xf32>
    %18 = arith.maximumf %12, %17 : vector<256x128xf32>
    %c3 = arith.constant 3 : index
    %c0_12 = arith.constant 0 : index
    %c0_13 = arith.constant 0 : index
    %19 = vector.load %arg1[%c3, %c0_12, %c0_13] : memref<4x256x128xf32, #tpu.memory_space<vmem>>, vector<1x256x128xf32>
    %20 = vector.shape_cast %19 : vector<1x256x128xf32> to vector<256x128xf32>
    %cst_14 = arith.constant dense<0.000000e+00> : vector<256x128xf32>
    %21 = tpu.matmul %20, %0, %cst_14 {dimension_numbers = #tpu.dot_dimension_numbers<[1], [0], [0], [1], [0, 0, 1, 1], [], []>} : vector<256x128xf32>, vector<128x128xf32>, vector<256x128xf32> -> vector<256x128xf32>
    %22 = vector.broadcast %1 : vector<1x128xf32> to vector<256x128xf32>
    %23 = arith.addf %21, %22 : vector<256x128xf32>
    %24 = arith.maximumf %18, %23 : vector<256x128xf32>
    %cst_15 = arith.constant 0.000000e+00 : f32
    %25 = vector.broadcast %cst_15 : f32 to vector<256x128xf32>
    %26 = arith.maximumf %24, %25 : vector<256x128xf32>
    %c0_16 = arith.constant 0 : index
    %c0_17 = arith.constant 0 : index
    %27 = vector.load %arg4[%c0_16, %c0_17] : memref<256x128xf32, #tpu.memory_space<vmem>>, vector<256x128xf32>
    tpu.vector_store %arg4[%c0_16, %c0_17], %26 {strides = array<i32>} : memref<256x128xf32, #tpu.memory_space<vmem>>, vector<256x128xf32>,
    return
  }
  func.func @transform_0(%arg0: i32) -> (i32, i32, i32) {
    %c0_i32 = arith.constant 0 : i32
    %c0_i32_0 = arith.constant 0 : i32
    %c0_i32_1 = arith.constant 0 : i32
    return %c0_i32, %arg0, %c0_i32_0 : i32, i32, i32
  }
  func.func @transform_1(%arg0: i32) -> (i32, i32) {
    %c0_i32 = arith.constant 0 : i32
    %c0_i32_0 = arith.constant 0 : i32
    %c0_i32_1 = arith.constant 0 : i32
    return %c0_i32, %c0_i32_0 : i32, i32
  }
  func.func @transform_2(%arg0: i32) -> (i32, i32) {
    %c0_i32 = arith.constant 0 : i32
    %c0_i32_0 = arith.constant 0 : i32
    %c0_i32_1 = arith.constant 0 : i32
    return %c0_i32, %c0_i32_0 : i32, i32
  }
  func.func @transform_3(%arg0: i32) -> (i32, i32) {
    %c0_i32 = arith.constant 0 : i32
    %c0_i32_0 = arith.constant 0 : i32
    return %arg0, %c0_i32 : i32, i32
  }
}

module attributes {stable_mosaic.version = 11 : i64} {
  func.func @_conv_relu_pool_kernel(%arg0: i32, %arg1: memref<4x56x256xf32, #tpu.memory_space<vmem>>, %arg2: memref<256x128xf32, #tpu.memory_space<vmem>>, %arg3: memref<1x128xf32, #tpu.memory_space<vmem>>, %arg4: memref<56x128xf32, #tpu.memory_space<vmem>>) attributes {dimension_semantics = [#tpu.dimension_semantics<parallel>], iteration_bounds = array<i64: 1>, scalar_prefetch = 0 : i64, scratch_operands = 0 : i64, tpu.core_type = #tpu.core_type<tc>, window_params = [{transform_indices = @transform_0, window_bounds = array<i64: 4, 56, 256>}, {pipeline_mode = #tpu.pipeline_mode<synchronous>, transform_indices = @transform_1, window_bounds = array<i64: 256, 128>}, {pipeline_mode = #tpu.pipeline_mode<synchronous>, transform_indices = @transform_2, window_bounds = array<i64: 1, 128>}, {transform_indices = @transform_3, window_bounds = array<i64: 56, 128>}]} {
    %c0 = arith.constant 0 : index
    %c0_0 = arith.constant 0 : index
    %0 = vector.load %arg2[%c0, %c0_0] : memref<256x128xf32, #tpu.memory_space<vmem>>, vector<256x128xf32>
    %c0_1 = arith.constant 0 : index
    %c0_2 = arith.constant 0 : index
    %1 = vector.load %arg3[%c0_1, %c0_2] : memref<1x128xf32, #tpu.memory_space<vmem>>, vector<1x128xf32>
    %c0_3 = arith.constant 0 : index
    %c0_4 = arith.constant 0 : index
    %c0_5 = arith.constant 0 : index
    %2 = vector.load %arg1[%c0_3, %c0_4, %c0_5] : memref<4x56x256xf32, #tpu.memory_space<vmem>>, vector<1x56x256xf32>
    %3 = vector.shape_cast %2 : vector<1x56x256xf32> to vector<56x256xf32>
    %cst = arith.constant dense<0.000000e+00> : vector<56x128xf32>
    %4 = tpu.matmul %3, %0, %cst {dimension_numbers = #tpu.dot_dimension_numbers<[1], [0], [0], [1], [0, 0, 1, 1], [], []>} : vector<56x256xf32>, vector<256x128xf32>, vector<56x128xf32> -> vector<56x128xf32>
    %5 = vector.broadcast %1 : vector<1x128xf32> to vector<56x128xf32>
    %6 = arith.addf %4, %5 : vector<56x128xf32>
    %c1 = arith.constant 1 : index
    %c0_6 = arith.constant 0 : index
    %c0_7 = arith.constant 0 : index
    %7 = vector.load %arg1[%c1, %c0_6, %c0_7] : memref<4x56x256xf32, #tpu.memory_space<vmem>>, vector<1x56x256xf32>
    %8 = vector.shape_cast %7 : vector<1x56x256xf32> to vector<56x256xf32>
    %cst_8 = arith.constant dense<0.000000e+00> : vector<56x128xf32>
    %9 = tpu.matmul %8, %0, %cst_8 {dimension_numbers = #tpu.dot_dimension_numbers<[1], [0], [0], [1], [0, 0, 1, 1], [], []>} : vector<56x256xf32>, vector<256x128xf32>, vector<56x128xf32> -> vector<56x128xf32>
    %10 = vector.broadcast %1 : vector<1x128xf32> to vector<56x128xf32>
    %11 = arith.addf %9, %10 : vector<56x128xf32>
    %12 = arith.maximumf %6, %11 : vector<56x128xf32>
    %c2 = arith.constant 2 : index
    %c0_9 = arith.constant 0 : index
    %c0_10 = arith.constant 0 : index
    %13 = vector.load %arg1[%c2, %c0_9, %c0_10] : memref<4x56x256xf32, #tpu.memory_space<vmem>>, vector<1x56x256xf32>
    %14 = vector.shape_cast %13 : vector<1x56x256xf32> to vector<56x256xf32>
    %cst_11 = arith.constant dense<0.000000e+00> : vector<56x128xf32>
    %15 = tpu.matmul %14, %0, %cst_11 {dimension_numbers = #tpu.dot_dimension_numbers<[1], [0], [0], [1], [0, 0, 1, 1], [], []>} : vector<56x256xf32>, vector<256x128xf32>, vector<56x128xf32> -> vector<56x128xf32>
    %16 = vector.broadcast %1 : vector<1x128xf32> to vector<56x128xf32>
    %17 = arith.addf %15, %16 : vector<56x128xf32>
    %18 = arith.maximumf %12, %17 : vector<56x128xf32>
    %c3 = arith.constant 3 : index
    %c0_12 = arith.constant 0 : index
    %c0_13 = arith.constant 0 : index
    %19 = vector.load %arg1[%c3, %c0_12, %c0_13] : memref<4x56x256xf32, #tpu.memory_space<vmem>>, vector<1x56x256xf32>
    %20 = vector.shape_cast %19 : vector<1x56x256xf32> to vector<56x256xf32>
    %cst_14 = arith.constant dense<0.000000e+00> : vector<56x128xf32>
    %21 = tpu.matmul %20, %0, %cst_14 {dimension_numbers = #tpu.dot_dimension_numbers<[1], [0], [0], [1], [0, 0, 1, 1], [], []>} : vector<56x256xf32>, vector<256x128xf32>, vector<56x128xf32> -> vector<56x128xf32>
    %22 = vector.broadcast %1 : vector<1x128xf32> to vector<56x128xf32>
    %23 = arith.addf %21, %22 : vector<56x128xf32>
    %24 = arith.maximumf %18, %23 : vector<56x128xf32>
    %cst_15 = arith.constant 0.000000e+00 : f32
    %25 = vector.broadcast %cst_15 : f32 to vector<56x128xf32>
    %26 = arith.maximumf %24, %25 : vector<56x128xf32>
    %c0_16 = arith.constant 0 : index
    %c0_17 = arith.constant 0 : index
    %27 = vector.load %arg4[%c0_16, %c0_17] : memref<56x128xf32, #tpu.memory_space<vmem>>, vector<56x128xf32>
    tpu.vector_store %arg4[%c0_16, %c0_17], %26 {strides = array<i32>} : memref<56x128xf32, #tpu.memory_space<vmem>>, vector<56x128xf32>,
    return
  }
  func.func @transform_0(%arg0: i32) -> (i32, i32, i32) {
    %c0_i32 = arith.constant 0 : i32
    %c0_i32_0 = arith.constant 0 : i32
    %c0_i32_1 = arith.constant 0 : i32
    return %c0_i32, %arg0, %c0_i32_0 : i32, i32, i32
  }
  func.func @transform_1(%arg0: i32) -> (i32, i32) {
    %c0_i32 = arith.constant 0 : i32
    %c0_i32_0 = arith.constant 0 : i32
    %c0_i32_1 = arith.constant 0 : i32
    return %c0_i32, %c0_i32_0 : i32, i32
  }
  func.func @transform_2(%arg0: i32) -> (i32, i32) {
    %c0_i32 = arith.constant 0 : i32
    %c0_i32_0 = arith.constant 0 : i32
    %c0_i32_1 = arith.constant 0 : i32
    return %c0_i32, %c0_i32_0 : i32, i32
  }
  func.func @transform_3(%arg0: i32) -> (i32, i32) {
    %c0_i32 = arith.constant 0 : i32
    %c0_i32_0 = arith.constant 0 : i32
    return %arg0, %c0_i32 : i32, i32
  }
}

module attributes {stable_mosaic.version = 11 : i64} {
  func.func @_fc_stack_kernel(%arg0: memref<2x400xf32, #tpu.memory_space<vmem>>, %arg1: memref<400x128xf32, #tpu.memory_space<vmem>>, %arg2: memref<1x128xf32, #tpu.memory_space<vmem>>, %arg3: memref<128x128xf32, #tpu.memory_space<vmem>>, %arg4: memref<1x128xf32, #tpu.memory_space<vmem>>, %arg5: memref<128x128xf32, #tpu.memory_space<vmem>>, %arg6: memref<1x128xf32, #tpu.memory_space<vmem>>, %arg7: memref<2x128xf32, #tpu.memory_space<vmem>>) attributes {dimension_semantics = [], scalar_prefetch = 0 : i64, scratch_operands = 0 : i64, tpu.core_type = #tpu.core_type<tc>} {
    %c0 = arith.constant 0 : index
    %c0_0 = arith.constant 0 : index
    %0 = vector.load %arg0[%c0, %c0_0] : memref<2x400xf32, #tpu.memory_space<vmem>>, vector<2x400xf32>
    %c0_1 = arith.constant 0 : index
    %c0_2 = arith.constant 0 : index
    %1 = vector.load %arg1[%c0_1, %c0_2] : memref<400x128xf32, #tpu.memory_space<vmem>>, vector<400x128xf32>
    %cst = arith.constant dense<0.000000e+00> : vector<2x128xf32>
    %2 = tpu.matmul %0, %1, %cst {dimension_numbers = #tpu.dot_dimension_numbers<[1], [0], [0], [1], [0, 0, 1, 1], [], []>} : vector<2x400xf32>, vector<400x128xf32>, vector<2x128xf32> -> vector<2x128xf32>
    %c0_3 = arith.constant 0 : index
    %c0_4 = arith.constant 0 : index
    %3 = vector.load %arg2[%c0_3, %c0_4] : memref<1x128xf32, #tpu.memory_space<vmem>>, vector<1x128xf32>
    %4 = vector.broadcast %3 : vector<1x128xf32> to vector<2x128xf32>
    %5 = arith.addf %2, %4 : vector<2x128xf32>
    %cst_5 = arith.constant 0.000000e+00 : f32
    %6 = vector.broadcast %cst_5 : f32 to vector<2x128xf32>
    %7 = arith.maximumf %5, %6 : vector<2x128xf32>
    %c0_6 = arith.constant 0 : index
    %c0_7 = arith.constant 0 : index
    %8 = vector.load %arg3[%c0_6, %c0_7] : memref<128x128xf32, #tpu.memory_space<vmem>>, vector<128x128xf32>
    %cst_8 = arith.constant dense<0.000000e+00> : vector<2x128xf32>
    %9 = tpu.matmul %7, %8, %cst_8 {dimension_numbers = #tpu.dot_dimension_numbers<[1], [0], [0], [1], [0, 0, 1, 1], [], []>} : vector<2x128xf32>, vector<128x128xf32>, vector<2x128xf32> -> vector<2x128xf32>
    %c0_9 = arith.constant 0 : index
    %c0_10 = arith.constant 0 : index
    %10 = vector.load %arg4[%c0_9, %c0_10] : memref<1x128xf32, #tpu.memory_space<vmem>>, vector<1x128xf32>
    %11 = vector.broadcast %10 : vector<1x128xf32> to vector<2x128xf32>
    %12 = arith.addf %9, %11 : vector<2x128xf32>
    %cst_11 = arith.constant 0.000000e+00 : f32
    %13 = vector.broadcast %cst_11 : f32 to vector<2x128xf32>
    %14 = arith.maximumf %12, %13 : vector<2x128xf32>
    %c0_12 = arith.constant 0 : index
    %c0_13 = arith.constant 0 : index
    %15 = vector.load %arg5[%c0_12, %c0_13] : memref<128x128xf32, #tpu.memory_space<vmem>>, vector<128x128xf32>
    %cst_14 = arith.constant dense<0.000000e+00> : vector<2x128xf32>
    %16 = tpu.matmul %14, %15, %cst_14 {dimension_numbers = #tpu.dot_dimension_numbers<[1], [0], [0], [1], [0, 0, 1, 1], [], []>} : vector<2x128xf32>, vector<128x128xf32>, vector<2x128xf32> -> vector<2x128xf32>
    %c0_15 = arith.constant 0 : index
    %c0_16 = arith.constant 0 : index
    %17 = vector.load %arg6[%c0_15, %c0_16] : memref<1x128xf32, #tpu.memory_space<vmem>>, vector<1x128xf32>
    %18 = vector.broadcast %17 : vector<1x128xf32> to vector<2x128xf32>
    %19 = arith.addf %16, %18 : vector<2x128xf32>
    %c0_17 = arith.constant 0 : index
    %c0_18 = arith.constant 0 : index
    %20 = vector.load %arg7[%c0_17, %c0_18] : memref<2x128xf32, #tpu.memory_space<vmem>>, vector<2x128xf32>
    tpu.vector_store %arg7[%c0_17, %c0_18], %19 {strides = array<i32>} : memref<2x128xf32, #tpu.memory_space<vmem>>, vector<2x128xf32>,
    return
  }
}

</mosaic_0001>

<llo_original>
// kernel: net_forward.3
$region0: #{net_forward.3}
  #allocation0 [shape = 'u32[]', space=smem, size = 0x4, offset = 0x4, fixed_abs, tag = 'smem constant byte address 0x4 - core index']
  #allocation1 [shape = 'u32[144,128]{1,0:T(1,128)}', space=vmem, size = 0x12000, scoped, tag = 'internal scratch']
  %s0 = inlined_call_operand.vmem [shape: f32[4,512,128], index: 0, kind: input, shape index: {}]
  %s1 = inlined_call_operand.vmem [shape: f32[128,128], index: 1, kind: input, shape index: {}]
  %s2 = inlined_call_operand.vmem [shape: f32[1,128], index: 2, kind: input, shape index: {}]
  %s3 = inlined_call_operand.vmem [shape: f32[512,128], index: 3, kind: output, shape index: {}]
  %s4 = sld [smem:[#allocation0]]
  $region83: #{net_forward.3} parent=0
    _
  %s6 = ssub.s32 1, %s4
  %s7 = scalar_select 0, %s6, %s4
  $region1: #{net_forward.3} parent=0
    #allocation2 [shape = 'u8[1048576]{0}', space=vmem, size = 0x100000, scoped, tag = 'input window, operand 0']
    loop: start=0, step=1, limit=4
    $region2: #{net_forward.3} parent=1 // loop_pre_header
      _
    $region3: #{net_forward.3} parent=1 // loop_header
      %s9 = sphi 0, %s13
      %p10 = scmp.ge.s32.totalorder %s9, 4
      %s19 = sphi 0, %s21
      %s22 = sphi 0, %s19
      %s23 = sphi 0, %s22
      %s39 = sphi 0, %s23
      %s43 = sphi 0, %s43
      %s45 = sphi 0, %s43
      %s46 = sphi 0, %s45
      %s60 = sphi 0, %s46
      %s64 = sphi 0, %s64
      %s66 = sphi 0, %s64
      %s67 = sphi 0, %s66
      %s81 = sphi 0, %s67
      %s87 = sphi 0, %s89
      %s90 = sphi 0, %s87
      %s91 = sphi 0, %s90
      %s107 = sphi 0, %s91
    $region4: #{net_forward.3} parent=1 // loop_header_branch
      %12 = sbr.rel (%p10) target = $region8
    $region5: #{net_forward.3} parent=1 // loop_body
      %s14 = ssub.s32 %s9, 1
      %s15 = ssub.s32 %s9, 2
      %s16 = sadd.s32 %s9, 1
      %s17 = ssub.s32 %s9, %s16
      %p18 = scmp.eq.s32.totalorder %s17, 0
      %s20 = sadd.s32 %s19, 1
      %s21 = scalar_select %p18, %s19, %s20
      %p24 = pneg %p18
      %p25 = scmp.eq.s32.totalorder %s9, 1
      %p26 = por %p24, %p25
      %p27 = scmp.ne.s32.totalorder %s19, %s22
      %p28 = scmp.eq.s32.totalorder %s9, 0
      %p29 = por %p27, %p28
      %p30 = scmp.ne.s32.totalorder %s19, %s22
      %p31 = scmp.eq.s32.totalorder %s14, 1
      %p32 = por %p30, %p31
      %p33 = scmp.ne.s32.totalorder %s22, %s23
      %p34 = scmp.eq.s32.totalorder %s14, 0
      %p35 = por %p33, %p34
      %p36 = scmp.ne.s32.totalorder %s22, %s23
      %p37 = scmp.eq.s32.totalorder %s15, 1
      %p38 = por %p36, %p37
      %p40 = scmp.ne.s32.totalorder %s23, %s39
      %p41 = scmp.eq.s32.totalorder %s15, 0
      %p42 = por %p40, %p41
      %s44 = sadd.s32 %s43, 1
      %p47 = scmp.eq.s32.totalorder %s9, 1
      %p48 = scmp.ne.s32.totalorder %s43, %s45
      %p49 = scmp.eq.s32.totalorder %s9, 0
      %p50 = por %p48, %p49
      %p51 = scmp.ne.s32.totalorder %s43, %s45
      %p52 = scmp.eq.s32.totalorder %s14, 1
      %p53 = por %p51, %p52
      %p54 = scmp.ne.s32.totalorder %s45, %s46
      %p55 = scmp.eq.s32.totalorder %s14, 0
      %p56 = por %p54, %p55
      %p57 = scmp.ne.s32.totalorder %s45, %s46
      %p58 = scmp.eq.s32.totalorder %s15, 1
      %p59 = por %p57, %p58
      %p61 = scmp.ne.s32.totalorder %s46, %s60
      %p62 = scmp.eq.s32.totalorder %s15, 0
      %p63 = por %p61, %p62
      %s65 = sadd.s32 %s64, 1
      %p68 = scmp.eq.s32.totalorder %s9, 1
      %p69 = scmp.ne.s32.totalorder %s64, %s66
      %p70 = scmp.eq.s32.totalorder %s9, 0
      %p71 = por %p69, %p70
      %p72 = scmp.ne.s32.totalorder %s64, %s66
      %p73 = scmp.eq.s32.totalorder %s14, 1
      %p74 = por %p72, %p73
      %p75 = scmp.ne.s32.totalorder %s66, %s67
      %p76 = scmp.eq.s32.totalorder %s14, 0
      %p77 = por %p75, %p76
      %p78 = scmp.ne.s32.totalorder %s66, %s67
      %p79 = scmp.eq.s32.totalorder %s15, 1
      %p80 = por %p78, %p79
      %p82 = scmp.ne.s32.totalorder %s67, %s81
      %p83 = scmp.eq.s32.totalorder %s15, 0
      %p84 = por %p82, %p83
      %s85 = ssub.s32 %s9, %s16
      %p86 = scmp.eq.s32.totalorder %s85, 0
      %s88 = sadd.s32 %s87, 1
      %s89 = scalar_select %p86, %s87, %s88
      %p92 = pneg %p86
      %p93 = scmp.eq.s32.totalorder %s9, 1
      %p94 = por %p92, %p93
      %p95 = scmp.ne.s32.totalorder %s87, %s90
      %p96 = scmp.eq.s32.totalorder %s9, 0
      %p97 = por %p95, %p96
      %p98 = scmp.ne.s32.totalorder %s87, %s90
      %p99 = scmp.eq.s32.totalorder %s14, 1
      %p100 = por %p98, %p99
      %p101 = scmp.ne.s32.totalorder %s90, %s91
      %p102 = scmp.eq.s32.totalorder %s14, 0
      %p103 = por %p101, %p102
      %p104 = scmp.ne.s32.totalorder %s90, %s91
      %p105 = scmp.eq.s32.totalorder %s15, 1
      %p106 = por %p104, %p105
      %p108 = scmp.ne.s32.totalorder %s91, %s107
      %p109 = scmp.eq.s32.totalorder %s15, 0
      %p110 = por %p108, %p109
      %p111 = scmp.le.s32.totalorder 1, %s9
      %p112 = scmp.lt.s32.totalorder %s9, 3
      %p113 = pnand %p111, %p112
      %p114 = pneg %p113
      // Predicated region
      $region9: #{net_forward.3} parent=5 // pred_check
        _
      $region10: #{net_forward.3} parent=5 // pred_check_branch
        %116 = sbr.rel (%p113) target = $region12
      $region11: #{net_forward.3} parent=5 // pred_region
        %s117 = ssub.s32 %s9, 1
        // Predicated region
        $region13: #{net_forward.3} parent=11 // pred_check
          %p118 = pneg %p56
        $region14: #{net_forward.3} parent=11 // pred_check_branch
          %120 = sbr.rel (%p118) target = $region16
        $region15: #{net_forward.3} parent=11 // pred_region
          _
        $region16: #{net_forward.3} parent=11 // pred_fallthru
          _
        // Predicated region
        $region17: #{net_forward.3} parent=11 // pred_check
          %p121 = pneg %p77
        $region18: #{net_forward.3} parent=11 // pred_check_branch
          %123 = sbr.rel (%p121) target = $region20
        $region19: #{net_forward.3} parent=11 // pred_region
          _
        $region20: #{net_forward.3} parent=11 // pred_fallthru
          _
      $region12: #{net_forward.3} parent=5 // pred_fallthru
        _
      %p124 = scmp.lt.s32.totalorder %s9, 2
      // Predicated region
      $region21: #{net_forward.3} parent=5 // pred_check
        %p125 = pneg %p124
      $region22: #{net_forward.3} parent=5 // pred_check_branch
        %127 = sbr.rel (%p125) target = $region24
      $region23: #{net_forward.3} parent=5 // pred_region
        // Predicated region
        $region25: #{net_forward.3} parent=23 // pred_check
          %p128 = pneg %p29
        $region26: #{net_forward.3} parent=23 // pred_check_branch
          %130 = sbr.rel (%p128) target = $region28
        $region27: #{net_forward.3} parent=23 // pred_region
          %s131 = sand.u32 %s19, 1
          %s132 = sand.u32 %s19, 1
          %s133 = smul.addr %s132, 1024
          %s134 = scalar_lea.vmem [#allocation2], %s133
          %s135 = smul.u32 32, %s9
          %s136 = smul.addr %s135, 8
          %s137 = scalar_lea.vmem %s0, %s136
          // Predicated region
          $region29: #{net_forward.3} parent=27 // pred_check
            _
          $region30: #{net_forward.3} parent=27 // pred_check_branch
            %139 = sbr.rel (0) target = $region32
          $region31: #{net_forward.3} parent=27 // pred_region
            // Predicated region
            $region33: #{net_forward.3} parent=31 // pred_check
              _
            $region34: #{net_forward.3} parent=31 // pred_check_branch
              %141 = sbr.rel (0) target = $region36
            $region35: #{net_forward.3} parent=31 // pred_region
              // Predicated region
              $region48: #{net_forward.3} parent=35 // pred_check
                _
              $region49: #{net_forward.3} parent=35 // pred_check_branch
                %410 = sbr.rel (0) target = $region51
              $region50: #{net_forward.3} parent=35 // pred_region
                loop: start=0, step=1, limit=1
                $region52: #{net_forward.3} parent=50 // loop_pre_header
                  _
                $region53: #{net_forward.3} parent=50 // loop_header
                  %s412 = sphi 0, %s416
                  %p413 = scmp.ge.s32.totalorder %s412, 1
                  %s417 = sphi %s137, %s137
                  %s418 = sphi %s134, %s134
                $region54: #{net_forward.3} parent=50 // loop_header_branch
                  %415 = sbr.rel (%p413) target = $region58
                $region55: #{net_forward.3} parent=50 // loop_body
                  %v419 = vld [vmem:[%s417] sm:$0xff]
                  %420 = vst [vmem:[%s418] sm:$0xff] %v419
                  %v421 = vld [vmem:[%s417 + $0x8] sm:$0xff]
                  %422 = vst [vmem:[%s418 + $0x8] sm:$0xff] %v421
                  %v423 = vld [vmem:[%s417 + $0x10] sm:$0xff]
                  %424 = vst [vmem:[%s418 + $0x10] sm:$0xff] %v423
                  %v425 = vld [vmem:[%s417 + $0x18] sm:$0xff]
                  %426 = vst [vmem:[%s418 + $0x18] sm:$0xff] %v425
                  %v427 = vld [vmem:[%s417 + $0x20] sm:$0xff]
                  %428 = vst [vmem:[%s418 + $0x20] sm:$0xff] %v427
                  %v429 = vld [vmem:[%s417 + $0x28] sm:$0xff]
                  %430 = vst [vmem:[%s418 + $0x28] sm:$0xff] %v429
                  %v431 = vld [vmem:[%s417 + $0x30] sm:$0xff]
                  %432 = vst [vmem:[%s418 + $0x30] sm:$0xff] %v431
                  %v433 = vld [vmem:[%s417 + $0x38] sm:$0xff]
                  %434 = vst [vmem:[%s418 + $0x38] sm:$0xff] %v433
                  %v435 = vld [vmem:[%s417 + $0x40] sm:$0xff]
                  %436 = vst [vmem:[%s418 + $0x40] sm:$0xff] %v435
                  %v437 = vld [vmem:[%s417 + $0x48] sm:$0xff]
                  %438 = vst [vmem:[%s418 + $0x48] sm:$0xff] %v437
                  %v439 = vld [vmem:[%s417 + $0x50] sm:$0xff]
                  %440 = vst [vmem:[%s418 + $0x50] sm:$0xff] %v439
                  %v441 = vld [vmem:[%s417 + $0x58] sm:$0xff]
                  %442 = vst [vmem:[%s418 + $0x58] sm:$0xff] %v441
                  %v443 = vld [vmem:[%s417 + $0x60] sm:$0xff]
                  %444 = vst [vmem:[%s418 + $0x60] sm:$0xff] %v443
                  %v445 = vld [vmem:[%s417 + $0x68] sm:$0xff]
                  %446 = vst [vmem:[%s418 + $0x68] sm:$0xff] %v445
                  %v447 = vld [vmem:[%s417 + $0x70] sm:$0xff]
                  %448 = vst [vmem:[%s418 + $0x70] sm:$0xff] %v447
                  %v449 = vld [vmem:[%s417 + $0x78] sm:$0xff]
                  %450 = vst [vmem:[%s418 + $0x78] sm:$0xff] %v449
                  %v451 = vld [vmem:[%s417 + $0x80] sm:$0xff]
                  %452 = vst [vmem:[%s418 + $0x80] sm:$0xff] %v451
                  %v453 = vld [vmem:[%s417 + $0x88] sm:$0xff]
                  %454 = vst [vmem:[%s418 + $0x88] sm:$0xff] %v453
                  %v455 = vld [vmem:[%s417 + $0x90] sm:$0xff]
                  %456 = vst [vmem:[%s418 + $0x90] sm:$0xff] %v455
                  %v457 = vld [vmem:[%s417 + $0x98] sm:$0xff]
                  %458 = vst [vmem:[%s418 + $0x98] sm:$0xff] %v457
                  %v459 = vld [vmem:[%s417 + $0xa0] sm:$0xff]
                  %460 = vst [vmem:[%s418 + $0xa0] sm:$0xff] %v459
                  %v461 = vld [vmem:[%s417 + $0xa8] sm:$0xff]
                  %462 = vst [vmem:[%s418 + $0xa8] sm:$0xff] %v461
                  %v463 = vld [vmem:[%s417 + $0xb0] sm:$0xff]
                  %464 = vst [vmem:[%s418 + $0xb0] sm:$0xff] %v463
                  %v465 = vld [vmem:[%s417 + $0xb8] sm:$0xff]
                  %466 = vst [vmem:[%s418 + $0xb8] sm:$0xff] %v465
                  %v467 = vld [vmem:[%s417 + $0xc0] sm:$0xff]
                  %468 = vst [vmem:[%s418 + $0xc0] sm:$0xff] %v467
                  %v469 = vld [vmem:[%s417 + $0xc8] sm:$0xff]
                  %470 = vst [vmem:[%s418 + $0xc8] sm:$0xff] %v469
                  %v471 = vld [vmem:[%s417 + $0xd0] sm:$0xff]
                  %472 = vst [vmem:[%s418 + $0xd0] sm:$0xff] %v471
                  %v473 = vld [vmem:[%s417 + $0xd8] sm:$0xff]
                  %474 = vst [vmem:[%s418 + $0xd8] sm:$0xff] %v473
                  %v475 = vld [vmem:[%s417 + $0xe0] sm:$0xff]
                  %476 = vst [vmem:[%s418 + $0xe0] sm:$0xff] %v475
                  %v477 = vld [vmem:[%s417 + $0xe8] sm:$0xff]
                  %478 = vst [vmem:[%s418 + $0xe8] sm:$0xff] %v477
                  %v479 = vld [vmem:[%s417 + $0xf0] sm:$0xff]
                  %480 = vst [vmem:[%s418 + $0xf0] sm:$0xff] %v479
                  %v481 = vld [vmem:[%s417 + $0xf8] sm:$0xff]
                  %482 = vst [vmem:[%s418 + $0xf8] sm:$0xff] %v481
                  %v483 = vld [vmem:[%s417 + $0x200] sm:$0xff]
                  %484 = vst [vmem:[%s418 + $0x100] sm:$0xff] %v483
                  %v485 = vld [vmem:[%s417 + $0x208] sm:$0xff]
                  %486 = vst [vmem:[%s418 + $0x108] sm:$0xff] %v485
                  %v487 = vld [vmem:[%s417 + $0x210] sm:$0xff]
                  %488 = vst [vmem:[%s418 + $0x110] sm:$0xff] %v487
                  %v489 = vld [vmem:[%s417 + $0x218] sm:$0xff]
                  %490 = vst [vmem:[%s418 + $0x118] sm:$0xff] %v489
                  %v491 = vld [vmem:[%s417 + $0x220] sm:$0xff]
                  %492 = vst [vmem:[%s418 + $0x120] sm:$0xff] %v491
                  %v493 = vld [vmem:[%s417 + $0x228] sm:$0xff]
                  %494 = vst [vmem:[%s418 + $0x128] sm:$0xff] %v493
                  %v495 = vld [vmem:[%s417 + $0x230] sm:$0xff]
                  %496 = vst [vmem:[%s418 + $0x130] sm:$0xff] %v495
                  %v497 = vld [vmem:[%s417 + $0x238] sm:$0xff]
                  %498 = vst [vmem:[%s418 + $0x138] sm:$0xff] %v497
                  %v499 = vld [vmem:[%s417 + $0x240] sm:$0xff]
                  %500 = vst [vmem:[%s418 + $0x140] sm:$0xff] %v499
                  %v501 = vld [vmem:[%s417 + $0x248] sm:$0xff]
                  %502 = vst [vmem:[%s418 + $0x148] sm:$0xff] %v501
                  %v503 = vld [vmem:[%s417 + $0x250] sm:$0xff]
                  %504 = vst [vmem:[%s418 + $0x150] sm:$0xff] %v503
                  %v505 = vld [vmem:[%s417 + $0x258] sm:$0xff]
                  %506 = vst [vmem:[%s418 + $0x158] sm:$0xff] %v505
                  %v507 = vld [vmem:[%s417 + $0x260] sm:$0xff]
                  %508 = vst [vmem:[%s418 + $0x160] sm:$0xff] %v507
                  %v509 = vld [vmem:[%s417 + $0x268] sm:$0xff]
                  %510 = vst [vmem:[%s418 + $0x168] sm:$0xff] %v509
                  %v511 = vld [vmem:[%s417 + $0x270] sm:$0xff]
                  %512 = vst [vmem:[%s418 + $0x170] sm:$0xff] %v511
                  %v513 = vld [vmem:[%s417 + $0x278] sm:$0xff]
                  %514 = vst [vmem:[%s418 + $0x178] sm:$0xff] %v513
                  %v515 = vld [vmem:[%s417 + $0x280] sm:$0xff]
                  %516 = vst [vmem:[%s418 + $0x180] sm:$0xff] %v515
                  %v517 = vld [vmem:[%s417 + $0x288] sm:$0xff]
                  %518 = vst [vmem:[%s418 + $0x188] sm:$0xff] %v517
                  %v519 = vld [vmem:[%s417 + $0x290] sm:$0xff]
                  %520 = vst [vmem:[%s418 + $0x190] sm:$0xff] %v519
                  %v521 = vld [vmem:[%s417 + $0x298] sm:$0xff]
                  %522 = vst [vmem:[%s418 + $0x198] sm:$0xff] %v521
                  %v523 = vld [vmem:[%s417 + $0x2a0] sm:$0xff]
                  %524 = vst [vmem:[%s418 + $0x1a0] sm:$0xff] %v523
                  %v525 = vld [vmem:[%s417 + $0x2a8] sm:$0xff]
                  %526 = vst [vmem:[%s418 + $0x1a8] sm:$0xff] %v525
                  %v527 = vld [vmem:[%s417 + $0x2b0] sm:$0xff]
                  %528 = vst [vmem:[%s418 + $0x1b0] sm:$0xff] %v527
                  %v529 = vld [vmem:[%s417 + $0x2b8] sm:$0xff]
                  %530 = vst [vmem:[%s418 + $0x1b8] sm:$0xff] %v529
                  %v531 = vld [vmem:[%s417 + $0x2c0] sm:$0xff]
                  %532 = vst [vmem:[%s418 + $0x1c0] sm:$0xff] %v531
                  %v533 = vld [vmem:[%s417 + $0x2c8] sm:$0xff]
                  %534 = vst [vmem:[%s418 + $0x1c8] sm:$0xff] %v533
                  %v535 = vld [vmem:[%s417 + $0x2d0] sm:$0xff]
                  %536 = vst [vmem:[%s418 + $0x1d0] sm:$0xff] %v535
                  %v537 = vld [vmem:[%s417 + $0x2d8] sm:$0xff]
                  %538 = vst [vmem:[%s418 + $0x1d8] sm:$0xff] %v537
                  %v539 = vld [vmem:[%s417 + $0x2e0] sm:$0xff]
                  %540 = vst [vmem:[%s418 + $0x1e0] sm:$0xff] %v539
                  %v541 = vld [vmem:[%s417 + $0x2e8] sm:$0xff]
                  %542 = vst [vmem:[%s418 + $0x1e8] sm:$0xff] %v541
                  %v543 = vld [vmem:[%s417 + $0x2f0] sm:$0xff]
                  %544 = vst [vmem:[%s418 + $0x1f0] sm:$0xff] %v543
                  %v545 = vld [vmem:[%s417 + $0x2f8] sm:$0xff]
                  %546 = vst [vmem:[%s418 + $0x1f8] sm:$0xff] %v545
                  %v547 = vld [vmem:[%s417 + $0x400] sm:$0xff]
                  %548 = vst [vmem:[%s418 + $0x200] sm:$0xff] %v547
                  %v549 = vld [vmem:[%s417 + $0x408] sm:$0xff]
                  %550 = vst [vmem:[%s418 + $0x208] sm:$0xff] %v549
                  %v551 = vld [vmem:[%s417 + $0x410] sm:$0xff]
                  %552 = vst [vmem:[%s418 + $0x210] sm:$0xff] %v551
                  %v553 = vld [vmem:[%s417 + $0x418] sm:$0xff]
                  %554 = vst [vmem:[%s418 + $0x218] sm:$0xff] %v553
                  %v555 = vld [vmem:[%s417 + $0x420] sm:$0xff]
                  %556 = vst [vmem:[%s418 + $0x220] sm:$0xff] %v555
                  %v557 = vld [vmem:[%s417 + $0x428] sm:$0xff]
                  %558 = vst [vmem:[%s418 + $0x228] sm:$0xff] %v557
                  %v559 = vld [vmem:[%s417 + $0x430] sm:$0xff]
                  %560 = vst [vmem:[%s418 + $0x230] sm:$0xff] %v559
                  %v561 = vld [vmem:[%s417 + $0x438] sm:$0xff]
                  %562 = vst [vmem:[%s418 + $0x238] sm:$0xff] %v561
                  %v563 = vld [vmem:[%s417 + $0x440] sm:$0xff]
                  %564 = vst [vmem:[%s418 + $0x240] sm:$0xff] %v563
                  %v565 = vld [vmem:[%s417 + $0x448] sm:$0xff]
                  %566 = vst [vmem:[%s418 + $0x248] sm:$0xff] %v565
                  %v567 = vld [vmem:[%s417 + $0x450] sm:$0xff]
                  %568 = vst [vmem:[%s418 + $0x250] sm:$0xff] %v567
                  %v569 = vld [vmem:[%s417 + $0x458] sm:$0xff]
                  %570 = vst [vmem:[%s418 + $0x258] sm:$0xff] %v569
                  %v571 = vld [vmem:[%s417 + $0x460] sm:$0xff]
                  %572 = vst [vmem:[%s418 + $0x260] sm:$0xff] %v571
                  %v573 = vld [vmem:[%s417 + $0x468] sm:$0xff]
                  %574 = vst [vmem:[%s418 + $0x268] sm:$0xff] %v573
                  %v575 = vld [vmem:[%s417 + $0x470] sm:$0xff]
                  %576 = vst [vmem:[%s418 + $0x270] sm:$0xff] %v575
                  %v577 = vld [vmem:[%s417 + $0x478] sm:$0xff]
                  %578 = vst [vmem:[%s418 + $0x278] sm:$0xff] %v577
                  %v579 = vld [vmem:[%s417 + $0x480] sm:$0xff]
                  %580 = vst [vmem:[%s418 + $0x280] sm:$0xff] %v579
                  %v581 = vld [vmem:[%s417 + $0x488] sm:$0xff]
                  %582 = vst [vmem:[%s418 + $0x288] sm:$0xff] %v581
                  %v583 = vld [vmem:[%s417 + $0x490] sm:$0xff]
                  %584 = vst [vmem:[%s418 + $0x290] sm:$0xff] %v583
                  %v585 = vld [vmem:[%s417 + $0x498] sm:$0xff]
                  %586 = vst [vmem:[%s418 + $0x298] sm:$0xff] %v585
                  %v587 = vld [vmem:[%s417 + $0x4a0] sm:$0xff]
                  %588 = vst [vmem:[%s418 + $0x2a0] sm:$0xff] %v587
                  %v589 = vld [vmem:[%s417 + $0x4a8] sm:$0xff]
                  %590 = vst [vmem:[%s418 + $0x2a8] sm:$0xff] %v589
                  %v591 = vld [vmem:[%s417 + $0x4b0] sm:$0xff]
                  %592 = vst [vmem:[%s418 + $0x2b0] sm:$0xff] %v591
                  %v593 = vld [vmem:[%s417 + $0x4b8] sm:$0xff]
                  %594 = vst [vmem:[%s418 + $0x2b8] sm:$0xff] %v593
                  %v595 = vld [vmem:[%s417 + $0x4c0] sm:$0xff]
                  %596 = vst [vmem:[%s418 + $0x2c0] sm:$0xff] %v595
                  %v597 = vld [vmem:[%s417 + $0x4c8] sm:$0xff]
                  %598 = vst [vmem:[%s418 + $0x2c8] sm:$0xff] %v597
                  %v599 = vld [vmem:[%s417 + $0x4d0] sm:$0xff]
                  %600 = vst [vmem:[%s418 + $0x2d0] sm:$0xff] %v599
                  %v601 = vld [vmem:[%s417 + $0x4d8] sm:$0xff]
                  %602 = vst [vmem:[%s418 + $0x2d8] sm:$0xff] %v601
                  %v603 = vld [vmem:[%s417 + $0x4e0] sm:$0xff]
                  %604 = vst [vmem:[%s418 + $0x2e0] sm:$0xff] %v603
                  %v605 = vld [vmem:[%s417 + $0x4e8] sm:$0xff]
                  %606 = vst [vmem:[%s418 + $0x2e8] sm:$0xff] %v605
                  %v607 = vld [vmem:[%s417 + $0x4f0] sm:$0xff]
                  %608 = vst [vmem:[%s418 + $0x2f0] sm:$0xff] %v607
                  %v609 = vld [vmem:[%s417 + $0x4f8] sm:$0xff]
                  %610 = vst [vmem:[%s418 + $0x2f8] sm:$0xff] %v609
                  %v611 = vld [vmem:[%s417 + $0x600] sm:$0xff]
                  %612 = vst [vmem:[%s418 + $0x300] sm:$0xff] %v611
                  %v613 = vld [vmem:[%s417 + $0x608] sm:$0xff]
                  %614 = vst [vmem:[%s418 + $0x308] sm:$0xff] %v613
                  %v615 = vld [vmem:[%s417 + $0x610] sm:$0xff]
                  %616 = vst [vmem:[%s418 + $0x310] sm:$0xff] %v615
                  %v617 = vld [vmem:[%s417 + $0x618] sm:$0xff]
                  %618 = vst [vmem:[%s418 + $0x318] sm:$0xff] %v617
                  %v619 = vld [vmem:[%s417 + $0x620] sm:$0xff]
                  %620 = vst [vmem:[%s418 + $0x320] sm:$0xff] %v619
                  %v621 = vld [vmem:[%s417 + $0x628] sm:$0xff]
                  %622 = vst [vmem:[%s418 + $0x328] sm:$0xff] %v621
                  %v623 = vld [vmem:[%s417 + $0x630] sm:$0xff]
                  %624 = vst [vmem:[%s418 + $0x330] sm:$0xff] %v623
                  %v625 = vld [vmem:[%s417 + $0x638] sm:$0xff]
                  %626 = vst [vmem:[%s418 + $0x338] sm:$0xff] %v625
                  %v627 = vld [vmem:[%s417 + $0x640] sm:$0xff]
                  %628 = vst [vmem:[%s418 + $0x340] sm:$0xff] %v627
                  %v629 = vld [vmem:[%s417 + $0x648] sm:$0xff]
                  %630 = vst [vmem:[%s418 + $0x348] sm:$0xff] %v629
                  %v631 = vld [vmem:[%s417 + $0x650] sm:$0xff]
                  %632 = vst [vmem:[%s418 + $0x350] sm:$0xff] %v631
                  %v633 = vld [vmem:[%s417 + $0x658] sm:$0xff]
                  %634 = vst [vmem:[%s418 + $0x358] sm:$0xff] %v633
                  %v635 = vld [vmem:[%s417 + $0x660] sm:$0xff]
                  %636 = vst [vmem:[%s418 + $0x360] sm:$0xff] %v635
                  %v637 = vld [vmem:[%s417 + $0x668] sm:$0xff]
                  %638 = vst [vmem:[%s418 + $0x368] sm:$0xff] %v637
                  %v639 = vld [vmem:[%s417 + $0x670] sm:$0xff]
                  %640 = vst [vmem:[%s418 + $0x370] sm:$0xff] %v639
                  %v641 = vld [vmem:[%s417 + $0x678] sm:$0xff]
                  %642 = vst [vmem:[%s418 + $0x378] sm:$0xff] %v641
                  %v643 = vld [vmem:[%s417 + $0x680] sm:$0xff]
                  %644 = vst [vmem:[%s418 + $0x380] sm:$0xff] %v643
                  %v645 = vld [vmem:[%s417 + $0x688] sm:$0xff]
                  %646 = vst [vmem:[%s418 + $0x388] sm:$0xff] %v645
                  %v647 = vld [vmem:[%s417 + $0x690] sm:$0xff]
                  %648 = vst [vmem:[%s418 + $0x390] sm:$0xff] %v647
                  %v649 = vld [vmem:[%s417 + $0x698] sm:$0xff]
                  %650 = vst [vmem:[%s418 + $0x398] sm:$0xff] %v649
                  %v651 = vld [vmem:[%s417 + $0x6a0] sm:$0xff]
                  %652 = vst [vmem:[%s418 + $0x3a0] sm:$0xff] %v651
                  %v653 = vld [vmem:[%s417 + $0x6a8] sm:$0xff]
                  %654 = vst [vmem:[%s418 + $0x3a8] sm:$0xff] %v653
                  %v655 = vld [vmem:[%s417 + $0x6b0] sm:$0xff]
                  %656 = vst [vmem:[%s418 + $0x3b0] sm:$0xff] %v655
                  %v657 = vld [vmem:[%s417 + $0x6b8] sm:$0xff]
                  %658 = vst [vmem:[%s418 + $0x3b8] sm:$0xff] %v657
                  %v659 = vld [vmem:[%s417 + $0x6c0] sm:$0xff]
                  %660 = vst [vmem:[%s418 + $0x3c0] sm:$0xff] %v659
                  %v661 = vld [vmem:[%s417 + $0x6c8] sm:$0xff]
                  %662 = vst [vmem:[%s418 + $0x3c8] sm:$0xff] %v661
                  %v663 = vld [vmem:[%s417 + $0x6d0] sm:$0xff]
                  %664 = vst [vmem:[%s418 + $0x3d0] sm:$0xff] %v663
                  %v665 = vld [vmem:[%s417 + $0x6d8] sm:$0xff]
                  %666 = vst [vmem:[%s418 + $0x3d8] sm:$0xff] %v665
                  %v667 = vld [vmem:[%s417 + $0x6e0] sm:$0xff]
                  %668 = vst [vmem:[%s418 + $0x3e0] sm:$0xff] %v667
                  %v669 = vld [vmem:[%s417 + $0x6e8] sm:$0xff]
                  %670 = vst [vmem:[%s418 + $0x3e8] sm:$0xff] %v669
                  %v671 = vld [vmem:[%s417 + $0x6f0] sm:$0xff]
                  %672 = vst [vmem:[%s418 + $0x3f0] sm:$0xff] %v671
                  %v673 = vld [vmem:[%s417 + $0x6f8] sm:$0xff]
                  %674 = vst [vmem:[%s418 + $0x3f8] sm:$0xff] %v673
                $region56: #{net_forward.3} parent=50 // loop_footer
                  %s416 = sadd.s32 1, %s412
                $region57: #{net_forward.3} parent=50 // loop_footer_branch
                  %411 = sbr.rel target = $region53
                $region58: #{net_forward.3} parent=50 // loop_exit
                  _
              $region51: #{net_forward.3} parent=35 // pred_fallthru
                _
              // Predicated region
              $region59: #{net_forward.3} parent=35 // pred_check
                _
              $region60: #{net_forward.3} parent=35 // pred_check_branch
                %676 = sbr.rel target = $region62
              $region61: #{net_forward.3} parent=35 // pred_region
                _
              $region62: #{net_forward.3} parent=35 // pred_fallthru
                _
            $region36: #{net_forward.3} parent=31 // pred_fallthru
              _
            // Predicated region
            $region37: #{net_forward.3} parent=31 // pred_check
              _
            $region38: #{net_forward.3} parent=31 // pred_check_branch
              %143 = sbr.rel target = $region40
            $region39: #{net_forward.3} parent=31 // pred_region
              loop: start=0, step=1, limit=1
              $region41: #{net_forward.3} parent=39 // loop_pre_header
                _
              $region42: #{net_forward.3} parent=39 // loop_header
                %s146 = sphi 0, %s150
                %p147 = scmp.ge.s32.totalorder %s146, 1
                %s151 = sphi %s137, %s137
                %s152 = sphi %s134, %s134
              $region43: #{net_forward.3} parent=39 // loop_header_branch
                %149 = sbr.rel (%p147) target = $region47
              $region44: #{net_forward.3} parent=39 // loop_body
                %v153 = vld [vmem:[%s151] sm:$0xff]
                %154 = vst [vmem:[%s152] sm:$0xff] %v153
                %v155 = vld [vmem:[%s151 + $0x8] sm:$0xff]
                %156 = vst [vmem:[%s152 + $0x8] sm:$0xff] %v155
                %v157 = vld [vmem:[%s151 + $0x10] sm:$0xff]
                %158 = vst [vmem:[%s152 + $0x10] sm:$0xff] %v157
                %v159 = vld [vmem:[%s151 + $0x18] sm:$0xff]
                %160 = vst [vmem:[%s152 + $0x18] sm:$0xff] %v159
                %v161 = vld [vmem:[%s151 + $0x20] sm:$0xff]
                %162 = vst [vmem:[%s152 + $0x20] sm:$0xff] %v161
                %v163 = vld [vmem:[%s151 + $0x28] sm:$0xff]
                %164 = vst [vmem:[%s152 + $0x28] sm:$0xff] %v163
                %v165 = vld [vmem:[%s151 + $0x30] sm:$0xff]
                %166 = vst [vmem:[%s152 + $0x30] sm:$0xff] %v165
                %v167 = vld [vmem:[%s151 + $0x38] sm:$0xff]
                %168 = vst [vmem:[%s152 + $0x38] sm:$0xff] %v167
                %v169 = vld [vmem:[%s151 + $0x40] sm:$0xff]
                %170 = vst [vmem:[%s152 + $0x40] sm:$0xff] %v169
                %v171 = vld [vmem:[%s151 + $0x48] sm:$0xff]
                %172 = vst [vmem:[%s152 + $0x48] sm:$0xff] %v171
                %v173 = vld [vmem:[%s151 + $0x50] sm:$0xff]
                %174 = vst [vmem:[%s152 + $0x50] sm:$0xff] %v173
                %v175 = vld [vmem:[%s151 + $0x58] sm:$0xff]
                %176 = vst [vmem:[%s152 + $0x58] sm:$0xff] %v175
                %v177 = vld [vmem:[%s151 + $0x60] sm:$0xff]
                %178 = vst [vmem:[%s152 + $0x60] sm:$0xff] %v177
                %v179 = vld [vmem:[%s151 + $0x68] sm:$0xff]
                %180 = vst [vmem:[%s152 + $0x68] sm:$0xff] %v179
                %v181 = vld [vmem:[%s151 + $0x70] sm:$0xff]
                %182 = vst [vmem:[%s152 + $0x70] sm:$0xff] %v181
                %v183 = vld [vmem:[%s151 + $0x78] sm:$0xff]
                %184 = vst [vmem:[%s152 + $0x78] sm:$0xff] %v183
                %v185 = vld [vmem:[%s151 + $0x80] sm:$0xff]
                %186 = vst [vmem:[%s152 + $0x80] sm:$0xff] %v185
                %v187 = vld [vmem:[%s151 + $0x88] sm:$0xff]
                %188 = vst [vmem:[%s152 + $0x88] sm:$0xff] %v187
                %v189 = vld [vmem:[%s151 + $0x90] sm:$0xff]
                %190 = vst [vmem:[%s152 + $0x90] sm:$0xff] %v189
                %v191 = vld [vmem:[%s151 + $0x98] sm:$0xff]
                %192 = vst [vmem:[%s152 + $0x98] sm:$0xff] %v191
                %v193 = vld [vmem:[%s151 + $0xa0] sm:$0xff]
                %194 = vst [vmem:[%s152 + $0xa0] sm:$0xff] %v193
                %v195 = vld [vmem:[%s151 + $0xa8] sm:$0xff]
                %196 = vst [vmem:[%s152 + $0xa8] sm:$0xff] %v195
                %v197 = vld [vmem:[%s151 + $0xb0] sm:$0xff]
                %198 = vst [vmem:[%s152 + $0xb0] sm:$0xff] %v197
                %v199 = vld [vmem:[%s151 + $0xb8] sm:$0xff]
                %200 = vst [vmem:[%s152 + $0xb8] sm:$0xff] %v199
                %v201 = vld [vmem:[%s151 + $0xc0] sm:$0xff]
                %202 = vst [vmem:[%s152 + $0xc0] sm:$0xff] %v201
                %v203 = vld [vmem:[%s151 + $0xc8] sm:$0xff]
                %204 = vst [vmem:[%s152 + $0xc8] sm:$0xff] %v203
                %v205 = vld [vmem:[%s151 + $0xd0] sm:$0xff]
                %206 = vst [vmem:[%s152 + $0xd0] sm:$0xff] %v205
                %v207 = vld [vmem:[%s151 + $0xd8] sm:$0xff]
                %208 = vst [vmem:[%s152 + $0xd8] sm:$0xff] %v207
                %v209 = vld [vmem:[%s151 + $0xe0] sm:$0xff]
                %210 = vst [vmem:[%s152 + $0xe0] sm:$0xff] %v209
                %v211 = vld [vmem:[%s151 + $0xe8] sm:$0xff]
                %212 = vst [vmem:[%s152 + $0xe8] sm:$0xff] %v211
                %v213 = vld [vmem:[%s151 + $0xf0] sm:$0xff]
                %214 = vst [vmem:[%s152 + $0xf0] sm:$0xff] %v213
                %v215 = vld [vmem:[%s151 + $0xf8] sm:$0xff]
                %216 = vst [vmem:[%s152 + $0xf8] sm:$0xff] %v215
                %v217 = vld [vmem:[%s151 + $0x200] sm:$0xff]
                %218 = vst [vmem:[%s152 + $0x100] sm:$0xff] %v217
                %v219 = vld [vmem:[%s151 + $0x208] sm:$0xff]
                %220 = vst [vmem:[%s152 + $0x108] sm:$0xff] %v219
                %v221 = vld [vmem:[%s151 + $0x210] sm:$0xff]
                %222 = vst [vmem:[%s152 + $0x110] sm:$0xff] %v221
                %v223 = vld [vmem:[%s151 + $0x218] sm:$0xff]
                %224 = vst [vmem:[%s152 + $0x118] sm:$0xff] %v223
                %v225 = vld [vmem:[%s151 + $0x220] sm:$0xff]
                %226 = vst [vmem:[%s152 + $0x120] sm:$0xff] %v225
                %v227 = vld [vmem:[%s151 + $0x228] sm:$0xff]
                %228 = vst [vmem:[%s152 + $0x128] sm:$0xff] %v227
                %v229 = vld [vmem:[%s151 + $0x230] sm:$0xff]
                %230 = vst [vmem:[%s152 + $0x130] sm:$0xff] %v229
                %v231 = vld [vmem:[%s151 + $0x238] sm:$0xff]
                %232 = vst [vmem:[%s152 + $0x138] sm:$0xff] %v231
                %v233 = vld [vmem:[%s151 + $0x240] sm:$0xff]
                %234 = vst [vmem:[%s152 + $0x140] sm:$0xff] %v233
                %v235 = vld [vmem:[%s151 + $0x248] sm:$0xff]
                %236 = vst [vmem:[%s152 + $0x148] sm:$0xff] %v235
                %v237 = vld [vmem:[%s151 + $0x250] sm:$0xff]
                %238 = vst [vmem:[%s152 + $0x150] sm:$0xff] %v237
                %v239 = vld [vmem:[%s151 + $0x258] sm:$0xff]
                %240 = vst [vmem:[%s152 + $0x158] sm:$0xff] %v239
                %v241 = vld [vmem:[%s151 + $0x260] sm:$0xff]
                %242 = vst [vmem:[%s152 + $0x160] sm:$0xff] %v241
                %v243 = vld [vmem:[%s151 + $0x268] sm:$0xff]
                %244 = vst [vmem:[%s152 + $0x168] sm:$0xff] %v243
                %v245 = vld [vmem:[%s151 + $0x270] sm:$0xff]
                %246 = vst [vmem:[%s152 + $0x170] sm:$0xff] %v245
                %v247 = vld [vmem:[%s151 + $0x278] sm:$0xff]
                %248 = vst [vmem:[%s152 + $0x178] sm:$0xff] %v247
                %v249 = vld [vmem:[%s151 + $0x280] sm:$0xff]
                %250 = vst [vmem:[%s152 + $0x180] sm:$0xff] %v249
                %v251 = vld [vmem:[%s151 + $0x288] sm:$0xff]
                %252 = vst [vmem:[%s152 + $0x188] sm:$0xff] %v251
                %v253 = vld [vmem:[%s151 + $0x290] sm:$0xff]
                %254 = vst [vmem:[%s152 + $0x190] sm:$0xff] %v253
                %v255 = vld [vmem:[%s151 + $0x298] sm:$0xff]
                %256 = vst [vmem:[%s152 + $0x198] sm:$0xff] %v255
                %v257 = vld [vmem:[%s151 + $0x2a0] sm:$0xff]
                %258 = vst [vmem:[%s152 + $0x1a0] sm:$0xff] %v257
                %v259 = vld [vmem:[%s151 + $0x2a8] sm:$0xff]
                %260 = vst [vmem:[%s152 + $0x1a8] sm:$0xff] %v259
                %v261 = vld [vmem:[%s151 + $0x2b0] sm:$0xff]
                %262 = vst [vmem:[%s152 + $0x1b0] sm:$0xff] %v261
                %v263 = vld [vmem:[%s151 + $0x2b8] sm:$0xff]
                %264 = vst [vmem:[%s152 + $0x1b8] sm:$0xff] %v263
                %v265 = vld [vmem:[%s151 + $0x2c0] sm:$0xff]
                %266 = vst [vmem:[%s152 + $0x1c0] sm:$0xff] %v265
                %v267 = vld [vmem:[%s151 + $0x2c8] sm:$0xff]
                %268 = vst [vmem:[%s152 + $0x1c8] sm:$0xff] %v267
                %v269 = vld [vmem:[%s151 + $0x2d0] sm:$0xff]
                %270 = vst [vmem:[%s152 + $0x1d0] sm:$0xff] %v269
                %v271 = vld [vmem:[%s151 + $0x2d8] sm:$0xff]
                %272 = vst [vmem:[%s152 + $0x1d8] sm:$0xff] %v271
                %v273 = vld [vmem:[%s151 + $0x2e0] sm:$0xff]
                %274 = vst [vmem:[%s152 + $0x1e0] sm:$0xff] %v273
                %v275 = vld [vmem:[%s151 + $0x2e8] sm:$0xff]
                %276 = vst [vmem:[%s152 + $0x1e8] sm:$0xff] %v275
                %v277 = vld [vmem:[%s151 + $0x2f0] sm:$0xff]
                %278 = vst [vmem:[%s152 + $0x1f0] sm:$0xff] %v277
                %v279 = vld [vmem:[%s151 + $0x2f8] sm:$0xff]
                %280 = vst [vmem:[%s152 + $0x1f8] sm:$0xff] %v279
                %v281 = vld [vmem:[%s151 + $0x400] sm:$0xff]
                %282 = vst [vmem:[%s152 + $0x200] sm:$0xff] %v281
                %v283 = vld [vmem:[%s151 + $0x408] sm:$0xff]
                %284 = vst [vmem:[%s152 + $0x208] sm:$0xff] %v283
                %v285 = vld [vmem:[%s151 + $0x410] sm:$0xff]
                %286 = vst [vmem:[%s152 + $0x210] sm:$0xff] %v285
                %v287 = vld [vmem:[%s151 + $0x418] sm:$0xff]
                %288 = vst [vmem:[%s152 + $0x218] sm:$0xff] %v287
                %v289 = vld [vmem:[%s151 + $0x420] sm:$0xff]
                %290 = vst [vmem:[%s152 + $0x220] sm:$0xff] %v289
                %v291 = vld [vmem:[%s151 + $0x428] sm:$0xff]
                %292 = vst [vmem:[%s152 + $0x228] sm:$0xff] %v291
                %v293 = vld [vmem:[%s151 + $0x430] sm:$0xff]
                %294 = vst [vmem:[%s152 + $0x230] sm:$0xff] %v293
                %v295 = vld [vmem:[%s151 + $0x438] sm:$0xff]
                %296 = vst [vmem:[%s152 + $0x238] sm:$0xff] %v295
                %v297 = vld [vmem:[%s151 + $0x440] sm:$0xff]
                %298 = vst [vmem:[%s152 + $0x240] sm:$0xff] %v297
                %v299 = vld [vmem:[%s151 + $0x448] sm:$0xff]
                %300 = vst [vmem:[%s152 + $0x248] sm:$0xff] %v299
                %v301 = vld [vmem:[%s151 + $0x450] sm:$0xff]
                %302 = vst [vmem:[%s152 + $0x250] sm:$0xff] %v301
                %v303 = vld [vmem:[%s151 + $0x458] sm:$0xff]
                %304 = vst [vmem:[%s152 + $0x258] sm:$0xff] %v303
                %v305 = vld [vmem:[%s151 + $0x460] sm:$0xff]
                %306 = vst [vmem:[%s152 + $0x260] sm:$0xff] %v305
                %v307 = vld [vmem:[%s151 + $0x468] sm:$0xff]
                %308 = vst [vmem:[%s152 + $0x268] sm:$0xff] %v307
                %v309 = vld [vmem:[%s151 + $0x470] sm:$0xff]
                %310 = vst [vmem:[%s152 + $0x270] sm:$0xff] %v309
                %v311 = vld [vmem:[%s151 + $0x478] sm:$0xff]
                %312 = vst [vmem:[%s152 + $0x278] sm:$0xff] %v311
                %v313 = vld [vmem:[%s151 + $0x480] sm:$0xff]
                %314 = vst [vmem:[%s152 + $0x280] sm:$0xff] %v313
                %v315 = vld [vmem:[%s151 + $0x488] sm:$0xff]
                %316 = vst [vmem:[%s152 + $0x288] sm:$0xff] %v315
                %v317 = vld [vmem:[%s151 + $0x490] sm:$0xff]
                %318 = vst [vmem:[%s152 + $0x290] sm:$0xff] %v317
                %v319 = vld [vmem:[%s151 + $0x498] sm:$0xff]
                %320 = vst [vmem:[%s152 + $0x298] sm:$0xff] %v319
                %v321 = vld [vmem:[%s151 + $0x4a0] sm:$0xff]
                %322 = vst [vmem:[%s152 + $0x2a0] sm:$0xff] %v321
                %v323 = vld [vmem:[%s151 + $0x4a8] sm:$0xff]
                %324 = vst [vmem:[%s152 + $0x2a8] sm:$0xff] %v323
                %v325 = vld [vmem:[%s151 + $0x4b0] sm:$0xff]
                %326 = vst [vmem:[%s152 + $0x2b0] sm:$0xff] %v325
                %v327 = vld [vmem:[%s151 + $0x4b8] sm:$0xff]
                %328 = vst [vmem:[%s152 + $0x2b8] sm:$0xff] %v327
                %v329 = vld [vmem:[%s151 + $0x4c0] sm:$0xff]
                %330 = vst [vmem:[%s152 + $0x2c0] sm:$0xff] %v329
                %v331 = vld [vmem:[%s151 + $0x4c8] sm:$0xff]
                %332 = vst [vmem:[%s152 + $0x2c8] sm:$0xff] %v331
                %v333 = vld [vmem:[%s151 + $0x4d0] sm:$0xff]
                %334 = vst [vmem:[%s152 + $0x2d0] sm:$0xff] %v333
                %v335 = vld [vmem:[%s151 + $0x4d8] sm:$0xff]
                %336 = vst [vmem:[%s152 + $0x2d8] sm:$0xff] %v335
                %v337 = vld [vmem:[%s151 + $0x4e0] sm:$0xff]
                %338 = vst [vmem:[%s152 + $0x2e0] sm:$0xff] %v337
                %v339 = vld [vmem:[%s151 + $0x4e8] sm:$0xff]
                %340 = vst [vmem:[%s152 + $0x2e8] sm:$0xff] %v339
                %v341 = vld [vmem:[%s151 + $0x4f0] sm:$0xff]
                %342 = vst [vmem:[%s152 + $0x2f0] sm:$0xff] %v341
                %v343 = vld [vmem:[%s151 + $0x4f8] sm:$0xff]
                %344 = vst [vmem:[%s152 + $0x2f8] sm:$0xff] %v343
                %v345 = vld [vmem:[%s151 + $0x600] sm:$0xff]
                %346 = vst [vmem:[%s152 + $0x300] sm:$0xff] %v345
                %v347 = vld [vmem:[%s151 + $0x608] sm:$0xff]
                %348 = vst [vmem:[%s152 + $0x308] sm:$0xff] %v347
                %v349 = vld [vmem:[%s151 + $0x610] sm:$0xff]
                %350 = vst [vmem:[%s152 + $0x310] sm:$0xff] %v349
                %v351 = vld [vmem:[%s151 + $0x618] sm:$0xff]
                %352 = vst [vmem:[%s152 + $0x318] sm:$0xff] %v351
                %v353 = vld [vmem:[%s151 + $0x620] sm:$0xff]
                %354 = vst [vmem:[%s152 + $0x320] sm:$0xff] %v353
                %v355 = vld [vmem:[%s151 + $0x628] sm:$0xff]
                %356 = vst [vmem:[%s152 + $0x328] sm:$0xff] %v355
                %v357 = vld [vmem:[%s151 + $0x630] sm:$0xff]
                %358 = vst [vmem:[%s152 + $0x330] sm:$0xff] %v357
                %v359 = vld [vmem:[%s151 + $0x638] sm:$0xff]
                %360 = vst [vmem:[%s152 + $0x338] sm:$0xff] %v359
                %v361 = vld [vmem:[%s151 + $0x640] sm:$0xff]
                %362 = vst [vmem:[%s152 + $0x340] sm:$0xff] %v361
                %v363 = vld [vmem:[%s151 + $0x648] sm:$0xff]
                %364 = vst [vmem:[%s152 + $0x348] sm:$0xff] %v363
                %v365 = vld [vmem:[%s151 + $0x650] sm:$0xff]
                %366 = vst [vmem:[%s152 + $0x350] sm:$0xff] %v365
                %v367 = vld [vmem:[%s151 + $0x658] sm:$0xff]
                %368 = vst [vmem:[%s152 + $0x358] sm:$0xff] %v367
                %v369 = vld [vmem:[%s151 + $0x660] sm:$0xff]
                %370 = vst [vmem:[%s152 + $0x360] sm:$0xff] %v369
                %v371 = vld [vmem:[%s151 + $0x668] sm:$0xff]
                %372 = vst [vmem:[%s152 + $0x368] sm:$0xff] %v371
                %v373 = vld [vmem:[%s151 + $0x670] sm:$0xff]
                %374 = vst [vmem:[%s152 + $0x370] sm:$0xff] %v373
                %v375 = vld [vmem:[%s151 + $0x678] sm:$0xff]
                %376 = vst [vmem:[%s152 + $0x378] sm:$0xff] %v375
                %v377 = vld [vmem:[%s151 + $0x680] sm:$0xff]
                %378 = vst [vmem:[%s152 + $0x380] sm:$0xff] %v377
                %v379 = vld [vmem:[%s151 + $0x688] sm:$0xff]
                %380 = vst [vmem:[%s152 + $0x388] sm:$0xff] %v379
                %v381 = vld [vmem:[%s151 + $0x690] sm:$0xff]
                %382 = vst [vmem:[%s152 + $0x390] sm:$0xff] %v381
                %v383 = vld [vmem:[%s151 + $0x698] sm:$0xff]
                %384 = vst [vmem:[%s152 + $0x398] sm:$0xff] %v383
                %v385 = vld [vmem:[%s151 + $0x6a0] sm:$0xff]
                %386 = vst [vmem:[%s152 + $0x3a0] sm:$0xff] %v385
                %v387 = vld [vmem:[%s151 + $0x6a8] sm:$0xff]
                %388 = vst [vmem:[%s152 + $0x3a8] sm:$0xff] %v387
                %v389 = vld [vmem:[%s151 + $0x6b0] sm:$0xff]
                %390 = vst [vmem:[%s152 + $0x3b0] sm:$0xff] %v389
                %v391 = vld [vmem:[%s151 + $0x6b8] sm:$0xff]
                %392 = vst [vmem:[%s152 + $0x3b8] sm:$0xff] %v391
                %v393 = vld [vmem:[%s151 + $0x6c0] sm:$0xff]
                %394 = vst [vmem:[%s152 + $0x3c0] sm:$0xff] %v393
                %v395 = vld [vmem:[%s151 + $0x6c8] sm:$0xff]
                %396 = vst [vmem:[%s152 + $0x3c8] sm:$0xff] %v395
                %v397 = vld [vmem:[%s151 + $0x6d0] sm:$0xff]
                %398 = vst [vmem:[%s152 + $0x3d0] sm:$0xff] %v397
                %v399 = vld [vmem:[%s151 + $0x6d8] sm:$0xff]
                %400 = vst [vmem:[%s152 + $0x3d8] sm:$0xff] %v399
                %v401 = vld [vmem:[%s151 + $0x6e0] sm:$0xff]
                %402 = vst [vmem:[%s152 + $0x3e0] sm:$0xff] %v401
                %v403 = vld [vmem:[%s151 + $0x6e8] sm:$0xff]
                %404 = vst [vmem:[%s152 + $0x3e8] sm:$0xff] %v403
                %v405 = vld [vmem:[%s151 + $0x6f0] sm:$0xff]
                %406 = vst [vmem:[%s152 + $0x3f0] sm:$0xff] %v405
                %v407 = vld [vmem:[%s151 + $0x6f8] sm:$0xff]
                %408 = vst [vmem:[%s152 + $0x3f8] sm:$0xff] %v407
              $region45: #{net_forward.3} parent=39 // loop_footer
                %s150 = sadd.s32 1, %s146
              $region46: #{net_forward.3} parent=39 // loop_footer_branch
                %145 = sbr.rel target = $region42
              $region47: #{net_forward.3} parent=39 // loop_exit
                _
            $region40: #{net_forward.3} parent=31 // pred_fallthru
              _
          $region32: #{net_forward.3} parent=27 // pred_fallthru
            _
          %677 = vnop
        $region28: #{net_forward.3} parent=23 // pred_fallthru
          _
      $region24: #{net_forward.3} parent=5 // pred_fallthru
        _
      %p678 = scmp.le.s32.totalorder 1, %s9
      %p679 = scmp.lt.s32.totalorder %s9, 3
      %p680 = pnand %p678, %p679
      %p681 = pneg %p680
      // Predicated region
      $region63: #{net_forward.3} parent=5 // pred_check
        _
      $region64: #{net_forward.3} parent=5 // pred_check_branch
        %683 = sbr.rel (%p680) target = $region66
      $region65: #{net_forward.3} parent=5 // pred_region
        %s684 = ssub.s32 %s9, 1
        %s685 = sand.u32 %s22, 1
        %s686 = sand.u32 %s22, 1
        %s687 = smul.addr %s686, 1024
        %s688 = scalar_lea.vmem [#allocation2], %s687
        // Predicated region
        $region67: #{net_forward.3} parent=65 // pred_check
          %p689 = pneg %p35
        $region68: #{net_forward.3} parent=65 // pred_check_branch
          %691 = sbr.rel (%p689) target = $region70
        $region69: #{net_forward.3} parent=65 // pred_region
          _
        $region70: #{net_forward.3} parent=65 // pred_fallthru
          _
        %s692 = sand.u32 %s22, 1
        %s693 = sand.u32 %s22, 1
        %s694 = smul.addr %s693, 1024
        %s695 = scalar_lea.vmem [#allocation2], %s694
        %p696 = pneg %p35
        %p697 = pneg %p32
        %p698 = pneg %p56
        %p699 = pneg %p53
        %p700 = pneg %p77
        %p701 = pneg %p74
        %p702 = pneg %p103
        %p703 = pneg %p100
        %s704 = smul.u32 32, %s14
        %p705 = scmp.lt.s32.totalorder %s704, 63
        %s706 = scalar_select %p705, %s704, 63
        %s707 = smul.addr %s706, 8
        %s708 = scalar_lea.vmem %s3, %s707
        %s709 = smul.u32 32, %s14
        %s710 = smul.u32 32, %s14
        %p711 = scmp.lt.s32.totalorder %s710, 63
        %s712 = scalar_select %p711, %s710, 63
        %s713 = smul.addr %s712, 8
        %s714 = scalar_lea.vmem %s3, %s713
        %s715 = smul.u32 32, %s14
        %v716 = vld [vmem:[%s1] sm:$0xff]
        %v717 = vld [vmem:[%s1 + $0x8] sm:$0xff]
        %v718 = vld [vmem:[%s1 + $0x10] sm:$0xff]
        %v719 = vld [vmem:[%s1 + $0x18] sm:$0xff]
        %v720 = vld [vmem:[%s1 + $0x20] sm:$0xff]
        %v721 = vld [vmem:[%s1 + $0x28] sm:$0xff]
        %v722 = vld [vmem:[%s1 + $0x30] sm:$0xff]
        %v723 = vld [vmem:[%s1 + $0x38] sm:$0xff]
        %v724 = vld [vmem:[%s1 + $0x40] sm:$0xff]
        %v725 = vld [vmem:[%s1 + $0x48] sm:$0xff]
        %v726 = vld [vmem:[%s1 + $0x50] sm:$0xff]
        %v727 = vld [vmem:[%s1 + $0x58] sm:$0xff]
        %v728 = vld [vmem:[%s1 + $0x60] sm:$0xff]
        %v729 = vld [vmem:[%s1 + $0x68] sm:$0xff]
        %v730 = vld [vmem:[%s1 + $0x70] sm:$0xff]
        %v731 = vld [vmem:[%s1 + $0x78] sm:$0xff]
        %v732 = vld [vmem:[%s2] sm:$0x1]
        %v733 = vld [vmem:[%s688] sm:$0xff]
        %v734 = vld [vmem:[%s688 + $0x8] sm:$0xff]
        %v735 = vld [vmem:[%s688 + $0x10] sm:$0xff]
        %v736 = vld [vmem:[%s688 + $0x18] sm:$0xff]
        %v737 = vld [vmem:[%s688 + $0x20] sm:$0xff]
        %v738 = vld [vmem:[%s688 + $0x28] sm:$0xff]
        %v739 = vld [vmem:[%s688 + $0x30] sm:$0xff]
        %v740 = vld [vmem:[%s688 + $0x38] sm:$0xff]
        %v741 = vld [vmem:[%s688 + $0x40] sm:$0xff]
        %v742 = vld [vmem:[%s688 + $0x48] sm:$0xff]
        %v743 = vld [vmem:[%s688 + $0x50] sm:$0xff]
        %v744 = vld [vmem:[%s688 + $0x58] sm:$0xff]
        %v745 = vld [vmem:[%s688 + $0x60] sm:$0xff]
        %v746 = vld [vmem:[%s688 + $0x68] sm:$0xff]
        %v747 = vld [vmem:[%s688 + $0x70] sm:$0xff]
        %v748 = vld [vmem:[%s688 + $0x78] sm:$0xff]
        %v749 = vld [vmem:[%s688 + $0x80] sm:$0xff]
        %v750 = vld [vmem:[%s688 + $0x88] sm:$0xff]
        %v751 = vld [vmem:[%s688 + $0x90] sm:$0xff]
        %v752 = vld [vmem:[%s688 + $0x98] sm:$0xff]
        %v753 = vld [vmem:[%s688 + $0xa0] sm:$0xff]
        %v754 = vld [vmem:[%s688 + $0xa8] sm:$0xff]
        %v755 = vld [vmem:[%s688 + $0xb0] sm:$0xff]
        %v756 = vld [vmem:[%s688 + $0xb8] sm:$0xff]
        %v757 = vld [vmem:[%s688 + $0xc0] sm:$0xff]
        %v758 = vld [vmem:[%s688 + $0xc8] sm:$0xff]
        %v759 = vld [vmem:[%s688 + $0xd0] sm:$0xff]
        %v760 = vld [vmem:[%s688 + $0xd8] sm:$0xff]
        %v761 = vld [vmem:[%s688 + $0xe0] sm:$0xff]
        %v762 = vld [vmem:[%s688 + $0xe8] sm:$0xff]
        %v763 = vld [vmem:[%s688 + $0xf0] sm:$0xff]
        %v764 = vld [vmem:[%s688 + $0xf8] sm:$0xff]
        %v766 = vlaneseq
        %v767 = vshrl.u32 %v766, 7
        %v768 = vsub.s32 0, %v767
        %v769 = vrot.slane %v732, %v768
        %771 = vmatprep.subr.mxu0 0.0
        %772 = vmatpush1.msra.mxu0 %v716
        %773 = vmatprep.subr.mxu0 0.0
        %774 = vmatpush1.msra.mxu0 %v717
        %775 = vmatprep.subr.mxu0 0.0
        %776 = vmatpush1.msra.mxu0 %v718
        %777 = vmatprep.subr.mxu0 0.0
        %778 = vmatpush1.msra.mxu0 %v719
        %779 = vmatprep.subr.mxu0 0.0
        %780 = vmatpush1.msra.mxu0 %v720
        %781 = vmatprep.subr.mxu0 0.0
        %782 = vmatpush1.msra.mxu0 %v721
        %783 = vmatprep.subr.mxu0 0.0
        %784 = vmatpush1.msra.mxu0 %v722
        %785 = vmatprep.subr.mxu0 0.0
        %786 = vmatpush1.msra.mxu0 %v723
        %787 = vmatprep.subr.mxu0 0.0
        %788 = vmatpush1.msra.mxu0 %v724
        %789 = vmatprep.subr.mxu0 0.0
        %790 = vmatpush1.msra.mxu0 %v725
        %791 = vmatprep.subr.mxu0 0.0
        %792 = vmatpush1.msra.mxu0 %v726
        %793 = vmatprep.subr.mxu0 0.0
        %794 = vmatpush1.msra.mxu0 %v727
        %795 = vmatprep.subr.mxu0 0.0
        %796 = vmatpush1.msra.mxu0 %v728
        %797 = vmatprep.subr.mxu0 0.0
        %798 = vmatpush1.msra.mxu0 %v729
        %799 = vmatprep.subr.mxu0 0.0
        %800 = vmatpush1.msra.mxu0 %v730
        %801 = vmatprep.subr.mxu0 0.0
        %802 = vmatpush1.msra.mxu0 %v731
        %803 = vmatprep.subr.mxu0 0.0
        %804 = vmatpush1.msra.mxu0 0.0
        %805 = vmatprep.subr.mxu0 0.0
        %806 = vmatpush1.msra.mxu0 0.0
        %807 = vmatprep.subr.mxu0 0.0
        %808 = vmatpush1.msra.mxu0 0.0
        %809 = vmatprep.subr.mxu0 0.0
        %810 = vmatpush1.msra.mxu0 0.0
        %811 = vmatprep.subr.mxu0 0.0
        %812 = vmatpush1.msra.mxu0 0.0
        %813 = vmatprep.subr.mxu0 0.0
        %814 = vmatpush1.msra.mxu0 0.0
        %815 = vmatprep.subr.mxu0 0.0
        %816 = vmatpush1.msra.mxu0 0.0
        %817 = vmatprep.subr.mxu0 0.0
        %818 = vmatpush1.msra.mxu0 0.0
        %819 = vmatprep.subr.mxu0 0.0
        %820 = vmatpush1.msra.mxu0 0.0
        %821 = vmatprep.subr.mxu0 0.0
        %822 = vmatpush1.msra.mxu0 0.0
        %823 = vmatprep.subr.mxu0 0.0
        %824 = vmatpush1.msra.mxu0 0.0
        %825 = vmatprep.subr.mxu0 0.0
        %826 = vmatpush1.msra.mxu0 0.0
        %827 = vmatprep.subr.mxu0 0.0
        %828 = vmatpush1.msra.mxu0 0.0
        %829 = vmatprep.subr.mxu0 0.0
        %830 = vmatpush1.msra.mxu0 0.0
        %831 = vmatprep.subr.mxu0 0.0
        %832 = vmatpush1.msra.mxu0 0.0
        %833 = vmatprep.subr.mxu0 0.0
        %834 = vmatpush1.msra.mxu0 0.0
        %835 = vmatprep.mubr.f32.mxu0 0.0
        %836 = vmatmul.mubr.f32.gmra.mrb[0].mxu0 %v733
        %v837 = vpop.f32.mrb[0].mxu0
        %v838 = vadd.f32 %v769, %v837
        %v839 = vpop.f32.mrb[0].mxu0
        %840 = vmatprep.mubr.f32.mxu0 0.0
        %841 = vmatmul.mubr.f32.gmra.mrb[0].mxu0 %v734
        %v842 = vpop.f32.mrb[0].mxu0
        %v843 = vadd.f32 %v769, %v842
        %v844 = vpop.f32.mrb[0].mxu0
        %845 = vmatprep.mubr.f32.mxu0 0.0
        %846 = vmatmul.mubr.f32.gmra.mrb[0].mxu0 %v735
        %v847 = vpop.f32.mrb[0].mxu0
        %v848 = vadd.f32 %v769, %v847
        %v849 = vpop.f32.mrb[0].mxu0
        %850 = vmatprep.mubr.f32.mxu0 0.0
        %851 = vmatmul.mubr.f32.gmra.mrb[0].mxu0 %v736
        %v852 = vpop.f32.mrb[0].mxu0
        %v853 = vadd.f32 %v769, %v852
        %v854 = vpop.f32.mrb[0].mxu0
        %855 = vmatprep.mubr.f32.mxu0 0.0
        %856 = vmatmul.mubr.f32.gmra.mrb[0].mxu0 %v737
        %v857 = vpop.f32.mrb[0].mxu0
        %v858 = vadd.f32 %v769, %v857
        %v859 = vpop.f32.mrb[0].mxu0
        %860 = vmatprep.mubr.f32.mxu0 0.0
        %861 = vmatmul.mubr.f32.gmra.mrb[0].mxu0 %v738
        %v862 = vpop.f32.mrb[0].mxu0
        %v863 = vadd.f32 %v769, %v862
        %v864 = vpop.f32.mrb[0].mxu0
        %865 = vmatprep.mubr.f32.mxu0 0.0
        %866 = vmatmul.mubr.f32.gmra.mrb[0].mxu0 %v739
        %v867 = vpop.f32.mrb[0].mxu0
        %v868 = vadd.f32 %v769, %v867
        %v869 = vpop.f32.mrb[0].mxu0
        %870 = vmatprep.mubr.f32.mxu0 0.0
        %871 = vmatmul.mubr.f32.gmra.mrb[0].mxu0 %v740
        %v872 = vpop.f32.mrb[0].mxu0
        %v873 = vadd.f32 %v769, %v872
        %v874 = vpop.f32.mrb[0].mxu0
        %875 = vmatprep.mubr.f32.mxu0 0.0
        %876 = vmatmul.mubr.f32.gmra.mrb[0].mxu0 %v741
        %v877 = vpop.f32.mrb[0].mxu0
        %v878 = vadd.f32 %v769, %v877
        %v879 = vpop.f32.mrb[0].mxu0
        %880 = vmatprep.mubr.f32.mxu0 0.0
        %881 = vmatmul.mubr.f32.gmra.mrb[0].mxu0 %v742
        %v882 = vpop.f32.mrb[0].mxu0
        %v883 = vadd.f32 %v769, %v882
        %v884 = vpop.f32.mrb[0].mxu0
        %885 = vmatprep.mubr.f32.mxu0 0.0
        %886 = vmatmul.mubr.f32.gmra.mrb[0].mxu0 %v743
        %v887 = vpop.f32.mrb[0].mxu0
        %v888 = vadd.f32 %v769, %v887
        %v889 = vpop.f32.mrb[0].mxu0
        %890 = vmatprep.mubr.f32.mxu0 0.0
        %891 = vmatmul.mubr.f32.gmra.mrb[0].mxu0 %v744
        %v892 = vpop.f32.mrb[0].mxu0
        %v893 = vadd.f32 %v769, %v892
        %v894 = vpop.f32.mrb[0].mxu0
        %895 = vmatprep.mubr.f32.mxu0 0.0
        %896 = vmatmul.mubr.f32.gmra.mrb[0].mxu0 %v745
        %v897 = vpop.f32.mrb[0].mxu0
        %v898 = vadd.f32 %v769, %v897
        %v899 = vpop.f32.mrb[0].mxu0
        %900 = vmatprep.mubr.f32.mxu0 0.0
        %901 = vmatmul.mubr.f32.gmra.mrb[0].mxu0 %v746
        %v902 = vpop.f32.mrb[0].mxu0
        %v903 = vadd.f32 %v769, %v902
        %v904 = vpop.f32.mrb[0].mxu0
        %905 = vmatprep.mubr.f32.mxu0 0.0
        %906 = vmatmul.mubr.f32.gmra.mrb[0].mxu0 %v747
        %v907 = vpop.f32.mrb[0].mxu0
        %v908 = vadd.f32 %v769, %v907
        %v909 = vpop.f32.mrb[0].mxu0
        %910 = vmatprep.mubr.f32.mxu0 0.0
        %911 = vmatmul.mubr.f32.gmra.mrb[0].mxu0 %v748
        %v912 = vpop.f32.mrb[0].mxu0
        %v913 = vadd.f32 %v769, %v912
        %v914 = vpop.f32.mrb[0].mxu0
        %915 = vmatprep.mubr.f32.mxu0 0.0
        %916 = vmatmul.mubr.f32.gmra.mrb[0].mxu0 %v749
        %v917 = vpop.f32.mrb[0].mxu0
        %v918 = vadd.f32 %v769, %v917
        %v919 = vpop.f32.mrb[0].mxu0
        %920 = vmatprep.mubr.f32.mxu0 0.0
        %921 = vmatmul.mubr.f32.gmra.mrb[0].mxu0 %v750
        %v922 = vpop.f32.mrb[0].mxu0
        %v923 = vadd.f32 %v769, %v922
        %v924 = vpop.f32.mrb[0].mxu0
        %925 = vmatprep.mubr.f32.mxu0 0.0
        %926 = vmatmul.mubr.f32.gmra.mrb[0].mxu0 %v751
        %v927 = vpop.f32.mrb[0].mxu0
        %v928 = vadd.f32 %v769, %v927
        %v929 = vpop.f32.mrb[0].mxu0
        %930 = vmatprep.mubr.f32.mxu0 0.0
        %931 = vmatmul.mubr.f32.gmra.mrb[0].mxu0 %v752
        %v932 = vpop.f32.mrb[0].mxu0
        %v933 = vadd.f32 %v769, %v932
        %v934 = vpop.f32.mrb[0].mxu0
        %935 = vmatprep.mubr.f32.mxu0 0.0
        %936 = vmatmul.mubr.f32.gmra.mrb[0].mxu0 %v753
        %v937 = vpop.f32.mrb[0].mxu0
        %v938 = vadd.f32 %v769, %v937
        %v939 = vpop.f32.mrb[0].mxu0
        %940 = vmatprep.mubr.f32.mxu0 0.0
        %941 = vmatmul.mubr.f32.gmra.mrb[0].mxu0 %v754
        %v942 = vpop.f32.mrb[0].mxu0
        %v943 = vadd.f32 %v769, %v942
        %v944 = vpop.f32.mrb[0].mxu0
        %945 = vmatprep.mubr.f32.mxu0 0.0
        %946 = vmatmul.mubr.f32.gmra.mrb[0].mxu0 %v755
        %v947 = vpop.f32.mrb[0].mxu0
        %v948 = vadd.f32 %v769, %v947
        %v949 = vpop.f32.mrb[0].mxu0
        %950 = vmatprep.mubr.f32.mxu0 0.0
        %951 = vmatmul.mubr.f32.gmra.mrb[0].mxu0 %v756
        %v952 = vpop.f32.mrb[0].mxu0
        %v953 = vadd.f32 %v769, %v952
        %v954 = vpop.f32.mrb[0].mxu0
        %955 = vmatprep.mubr.f32.mxu0 0.0
        %956 = vmatmul.mubr.f32.gmra.mrb[0].mxu0 %v757
        %v957 = vpop.f32.mrb[0].mxu0
        %v958 = vadd.f32 %v769, %v957
        %v959 = vpop.f32.mrb[0].mxu0
        %960 = vmatprep.mubr.f32.mxu0 0.0
        %961 = vmatmul.mubr.f32.gmra.mrb[0].mxu0 %v758
        %v962 = vpop.f32.mrb[0].mxu0
        %v963 = vadd.f32 %v769, %v962
        %v964 = vpop.f32.mrb[0].mxu0
        %965 = vmatprep.mubr.f32.mxu0 0.0
        %966 = vmatmul.mubr.f32.gmra.mrb[0].mxu0 %v759
        %v967 = vpop.f32.mrb[0].mxu0
        %v968 = vadd.f32 %v769, %v967
        %v969 = vpop.f32.mrb[0].mxu0
        %970 = vmatprep.mubr.f32.mxu0 0.0
        %971 = vmatmul.mubr.f32.gmra.mrb[0].mxu0 %v760
        %v972 = vpop.f32.mrb[0].mxu0
        %v973 = vadd.f32 %v769, %v972
        %v974 = vpop.f32.mrb[0].mxu0
        %975 = vmatprep.mubr.f32.mxu0 0.0
        %976 = vmatmul.mubr.f32.gmra.mrb[0].mxu0 %v761
        %v977 = vpop.f32.mrb[0].mxu0
        %v978 = vadd.f32 %v769, %v977
        %v979 = vpop.f32.mrb[0].mxu0
        %980 = vmatprep.mubr.f32.mxu0 0.0
        %981 = vmatmul.mubr.f32.gmra.mrb[0].mxu0 %v762
        %v982 = vpop.f32.mrb[0].mxu0
        %v983 = vadd.f32 %v769, %v982
        %v984 = vpop.f32.mrb[0].mxu0
        %985 = vmatprep.mubr.f32.mxu0 0.0
        %986 = vmatmul.mubr.f32.gmra.mrb[0].mxu0 %v763
        %v987 = vpop.f32.mrb[0].mxu0
        %v988 = vadd.f32 %v769, %v987
        %v989 = vpop.f32.mrb[0].mxu0
        %990 = vmatprep.mubr.f32.mxu0 0.0
        %991 = vmatmul.mubr.f32.gmra.mrb[0].mxu0 %v764
        %v992 = vpop.f32.mrb[0].mxu0
        %v993 = vadd.f32 %v769, %v992
        %v994 = vpop.f32.mrb[0].mxu0
        %995 = vdwg.mxu0
        %s996 = scalar_lea.vmem %s688, 256 [#allocation2]
        %v997 = vld [vmem:[%s996] sm:$0xff]
        %v998 = vld [vmem:[%s996 + $0x8] sm:$0xff]
        %v999 = vld [vmem:[%s996 + $0x10] sm:$0xff]
        %v1000 = vld [vmem:[%s996 + $0x18] sm:$0xff]
        %v1001 = vld [vmem:[%s996 + $0x20] sm:$0xff]
        %v1002 = vld [vmem:[%s996 + $0x28] sm:$0xff]
        %v1003 = vld [vmem:[%s996 + $0x30] sm:$0xff]
        %v1004 = vld [vmem:[%s996 + $0x38] sm:$0xff]
        %v1005 = vld [vmem:[%s996 + $0x40] sm:$0xff]
        %v1006 = vld [vmem:[%s996 + $0x48] sm:$0xff]
        %v1007 = vld [vmem:[%s996 + $0x50] sm:$0xff]
        %v1008 = vld [vmem:[%s996 + $0x58] sm:$0xff]
        %v1009 = vld [vmem:[%s996 + $0x60] sm:$0xff]
        %v1010 = vld [vmem:[%s996 + $0x68] sm:$0xff]
        %v1011 = vld [vmem:[%s996 + $0x70] sm:$0xff]
        %v1012 = vld [vmem:[%s996 + $0x78] sm:$0xff]
        %v1013 = vld [vmem:[%s996 + $0x80] sm:$0xff]
        %v1014 = vld [vmem:[%s996 + $0x88] sm:$0xff]
        %v1015 = vld [vmem:[%s996 + $0x90] sm:$0xff]
        %v1016 = vld [vmem:[%s996 + $0x98] sm:$0xff]
        %v1017 = vld [vmem:[%s996 + $0xa0] sm:$0xff]
        %v1018 = vld [vmem:[%s996 + $0xa8] sm:$0xff]
        %v1019 = vld [vmem:[%s996 + $0xb0] sm:$0xff]
        %v1020 = vld [vmem:[%s996 + $0xb8] sm:$0xff]
        %v1021 = vld [vmem:[%s996 + $0xc0] sm:$0xff]
        %v1022 = vld [vmem:[%s996 + $0xc8] sm:$0xff]
        %v1023 = vld [vmem:[%s996 + $0xd0] sm:$0xff]
        %v1024 = vld [vmem:[%s996 + $0xd8] sm:$0xff]
        %v1025 = vld [vmem:[%s996 + $0xe0] sm:$0xff]
        %v1026 = vld [vmem:[%s996 + $0xe8] sm:$0xff]
        %v1027 = vld [vmem:[%s996 + $0xf0] sm:$0xff]
        %v1028 = vld [vmem:[%s996 + $0xf8] sm:$0xff]
        %1029 = vmatprep.subr.mxu0 0.0
        %1030 = vmatpush1.msra.mxu0 %v716
        %1031 = vmatprep.subr.mxu0 0.0
        %1032 = vmatpush1.msra.mxu0 %v717
        %1033 = vmatprep.subr.mxu0 0.0
        %1034 = vmatpush1.msra.mxu0 %v718
        %1035 = vmatprep.subr.mxu0 0.0
        %1036 = vmatpush1.msra.mxu0 %v719
        %1037 = vmatprep.subr.mxu0 0.0
        %1038 = vmatpush1.msra.mxu0 %v720
        %1039 = vmatprep.subr.mxu0 0.0
        %1040 = vmatpush1.msra.mxu0 %v721
        %1041 = vmatprep.subr.mxu0 0.0
        %1042 = vmatpush1.msra.mxu0 %v722
        %1043 = vmatprep.subr.mxu0 0.0
        %1044 = vmatpush1.msra.mxu0 %v723
        %1045 = vmatprep.subr.mxu0 0.0
        %1046 = vmatpush1.msra.mxu0 %v724
        %1047 = vmatprep.subr.mxu0 0.0
        %1048 = vmatpush1.msra.mxu0 %v725
        %1049 = vmatprep.subr.mxu0 0.0
        %1050 = vmatpush1.msra.mxu0 %v726
        %1051 = vmatprep.subr.mxu0 0.0
        %1052 = vmatpush1.msra.mxu0 %v727
        %1053 = vmatprep.subr.mxu0 0.0
        %1054 = vmatpush1.msra.mxu0 %v728
        %1055 = vmatprep.subr.mxu0 0.0
        %1056 = vmatpush1.msra.mxu0 %v729
        %1057 = vmatprep.subr.mxu0 0.0
        %1058 = vmatpush1.msra.mxu0 %v730
        %1059 = vmatprep.subr.mxu0 0.0
        %1060 = vmatpush1.msra.mxu0 %v731
        %1061 = vmatprep.subr.mxu0 0.0
        %1062 = vmatpush1.msra.mxu0 0.0
        %1063 = vmatprep.subr.mxu0 0.0
        %1064 = vmatpush1.msra.mxu0 0.0
        %1065 = vmatprep.subr.mxu0 0.0
        %1066 = vmatpush1.msra.mxu0 0.0
        %1067 = vmatprep.subr.mxu0 0.0
        %1068 = vmatpush1.msra.mxu0 0.0
        %1069 = vmatprep.subr.mxu0 0.0
        %1070 = vmatpush1.msra.mxu0 0.0
        %1071 = vmatprep.subr.mxu0 0.0
        %1072 = vmatpush1.msra.mxu0 0.0
        %1073 = vmatprep.subr.mxu0 0.0
        %1074 = vmatpush1.msra.mxu0 0.0
        %1075 = vmatprep.subr.mxu0 0.0
        %1076 = vmatpush1.msra.mxu0 0.0
        %1077 = vmatprep.subr.mxu0 0.0
        %1078 = vmatpush1.msra.mxu0 0.0
        %1079 = vmatprep.subr.mxu0 0.0
        %1080 = vmatpush1.msra.mxu0 0.0
        %1081 = vmatprep.subr.mxu0 0.0
        %1082 = vmatpush1.msra.mxu0 0.0
        %1083 = vmatprep.subr.mxu0 0.0
        %1084 = vmatpush1.msra.mxu0 0.0
        %1085 = vmatprep.subr.mxu0 0.0
        %1086 = vmatpush1.msra.mxu0 0.0
        %1087 = vmatprep.subr.mxu0 0.0
        %1088 = vmatpush1.msra.mxu0 0.0
        %1089 = vmatprep.subr.mxu0 0.0
        %1090 = vmatpush1.msra.mxu0 0.0
        %1091 = vmatprep.subr.mxu0 0.0
        %1092 = vmatpush1.msra.mxu0 0.0
        %1093 = vmatprep.mubr.f32.mxu0 0.0
        %1094 = vmatmul.mubr.f32.gmra.mrb[0].mxu0 %v997
        %v1095 = vpop.f32.mrb[0].mxu0
        %v1096 = vadd.f32 %v769, %v1095
        %v1097 = vpop.f32.mrb[0].mxu0
        %1098 = vmatprep.mubr.f32.mxu0 0.0
        %1099 = vmatmul.mubr.f32.gmra.mrb[0].mxu0 %v998
        %v1100 = vpop.f32.mrb[0].mxu0
        %v1101 = vadd.f32 %v769, %v1100
        %v1102 = vpop.f32.mrb[0].mxu0
        %1103 = vmatprep.mubr.f32.mxu0 0.0
        %1104 = vmatmul.mubr.f32.gmra.mrb[0].mxu0 %v999
        %v1105 = vpop.f32.mrb[0].mxu0
        %v1106 = vadd.f32 %v769, %v1105
        %v1107 = vpop.f32.mrb[0].mxu0
        %1108 = vmatprep.mubr.f32.mxu0 0.0
        %1109 = vmatmul.mubr.f32.gmra.mrb[0].mxu0 %v1000
        %v1110 = vpop.f32.mrb[0].mxu0
        %v1111 = vadd.f32 %v769, %v1110
        %v1112 = vpop.f32.mrb[0].mxu0
        %1113 = vmatprep.mubr.f32.mxu0 0.0
        %1114 = vmatmul.mubr.f32.gmra.mrb[0].mxu0 %v1001
        %v1115 = vpop.f32.mrb[0].mxu0
        %v1116 = vadd.f32 %v769, %v1115
        %v1117 = vpop.f32.mrb[0].mxu0
        %1118 = vmatprep.mubr.f32.mxu0 0.0
        %1119 = vmatmul.mubr.f32.gmra.mrb[0].mxu0 %v1002
        %v1120 = vpop.f32.mrb[0].mxu0
        %v1121 = vadd.f32 %v769, %v1120
        %v1122 = vpop.f32.mrb[0].mxu0
        %1123 = vmatprep.mubr.f32.mxu0 0.0
        %1124 = vmatmul.mubr.f32.gmra.mrb[0].mxu0 %v1003
        %v1125 = vpop.f32.mrb[0].mxu0
        %v1126 = vadd.f32 %v769, %v1125
        %v1127 = vpop.f32.mrb[0].mxu0
        %1128 = vmatprep.mubr.f32.mxu0 0.0
        %1129 = vmatmul.mubr.f32.gmra.mrb[0].mxu0 %v1004
        %v1130 = vpop.f32.mrb[0].mxu0
        %v1131 = vadd.f32 %v769, %v1130
        %v1132 = vpop.f32.mrb[0].mxu0
        %1133 = vmatprep.mubr.f32.mxu0 0.0
        %1134 = vmatmul.mubr.f32.gmra.mrb[0].mxu0 %v1005
        %v1135 = vpop.f32.mrb[0].mxu0
        %v1136 = vadd.f32 %v769, %v1135
        %v1137 = vpop.f32.mrb[0].mxu0
        %1138 = vmatprep.mubr.f32.mxu0 0.0
        %1139 = vmatmul.mubr.f32.gmra.mrb[0].mxu0 %v1006
        %v1140 = vpop.f32.mrb[0].mxu0
        %v1141 = vadd.f32 %v769, %v1140
        %v1142 = vpop.f32.mrb[0].mxu0
        %1143 = vmatprep.mubr.f32.mxu0 0.0
        %1144 = vmatmul.mubr.f32.gmra.mrb[0].mxu0 %v1007
        %v1145 = vpop.f32.mrb[0].mxu0
        %v1146 = vadd.f32 %v769, %v1145
        %v1147 = vpop.f32.mrb[0].mxu0
        %1148 = vmatprep.mubr.f32.mxu0 0.0
        %1149 = vmatmul.mubr.f32.gmra.mrb[0].mxu0 %v1008
        %v1150 = vpop.f32.mrb[0].mxu0
        %v1151 = vadd.f32 %v769, %v1150
        %v1152 = vpop.f32.mrb[0].mxu0
        %1153 = vmatprep.mubr.f32.mxu0 0.0
        %1154 = vmatmul.mubr.f32.gmra.mrb[0].mxu0 %v1009
        %v1155 = vpop.f32.mrb[0].mxu0
        %v1156 = vadd.f32 %v769, %v1155
        %v1157 = vpop.f32.mrb[0].mxu0
        %1158 = vmatprep.mubr.f32.mxu0 0.0
        %1159 = vmatmul.mubr.f32.gmra.mrb[0].mxu0 %v1010
        %v1160 = vpop.f32.mrb[0].mxu0
        %v1161 = vadd.f32 %v769, %v1160
        %v1162 = vpop.f32.mrb[0].mxu0
        %1163 = vmatprep.mubr.f32.mxu0 0.0
        %1164 = vmatmul.mubr.f32.gmra.mrb[0].mxu0 %v1011
        %v1165 = vpop.f32.mrb[0].mxu0
        %v1166 = vadd.f32 %v769, %v1165
        %v1167 = vpop.f32.mrb[0].mxu0
        %1168 = vmatprep.mubr.f32.mxu0 0.0
        %1169 = vmatmul.mubr.f32.gmra.mrb[0].mxu0 %v1012
        %v1170 = vpop.f32.mrb[0].mxu0
        %v1171 = vadd.f32 %v769, %v1170
        %v1172 = vpop.f32.mrb[0].mxu0
        %1173 = vmatprep.mubr.f32.mxu0 0.0
        %1174 = vmatmul.mubr.f32.gmra.mrb[0].mxu0 %v1013
        %v1175 = vpop.f32.mrb[0].mxu0
        %v1176 = vadd.f32 %v769, %v1175
        %v1177 = vpop.f32.mrb[0].mxu0
        %1178 = vmatprep.mubr.f32.mxu0 0.0
        %1179 = vmatmul.mubr.f32.gmra.mrb[0].mxu0 %v1014
        %v1180 = vpop.f32.mrb[0].mxu0
        %v1181 = vadd.f32 %v769, %v1180
        %v1182 = vpop.f32.mrb[0].mxu0
        %1183 = vmatprep.mubr.f32.mxu0 0.0
        %1184 = vmatmul.mubr.f32.gmra.mrb[0].mxu0 %v1015
        %v1185 = vpop.f32.mrb[0].mxu0
        %v1186 = vadd.f32 %v769, %v1185
        %v1187 = vpop.f32.mrb[0].mxu0
        %1188 = vmatprep.mubr.f32.mxu0 0.0
        %1189 = vmatmul.mubr.f32.gmra.mrb[0].mxu0 %v1016
        %v1190 = vpop.f32.mrb[0].mxu0
        %v1191 = vadd.f32 %v769, %v1190
        %v1192 = vpop.f32.mrb[0].mxu0
        %1193 = vmatprep.mubr.f32.mxu0 0.0
        %1194 = vmatmul.mubr.f32.gmra.mrb[0].mxu0 %v1017
        %v1195 = vpop.f32.mrb[0].mxu0
        %v1196 = vadd.f32 %v769, %v1195
        %v1197 = vpop.f32.mrb[0].mxu0
        %1198 = vmatprep.mubr.f32.mxu0 0.0
        %1199 = vmatmul.mubr.f32.gmra.mrb[0].mxu0 %v1018
        %v1200 = vpop.f32.mrb[0].mxu0
        %v1201 = vadd.f32 %v769, %v1200
        %v1202 = vpop.f32.mrb[0].mxu0
        %1203 = vmatprep.mubr.f32.mxu0 0.0
        %1204 = vmatmul.mubr.f32.gmra.mrb[0].mxu0 %v1019
        %v1205 = vpop.f32.mrb[0].mxu0
        %v1206 = vadd.f32 %v769, %v1205
        %v1207 = vpop.f32.mrb[0].mxu0
        %1208 = vmatprep.mubr.f32.mxu0 0.0
        %1209 = vmatmul.mubr.f32.gmra.mrb[0].mxu0 %v1020
        %v1210 = vpop.f32.mrb[0].mxu0
        %v1211 = vadd.f32 %v769, %v1210
        %v1212 = vpop.f32.mrb[0].mxu0
        %1213 = vmatprep.mubr.f32.mxu0 0.0
        %1214 = vmatmul.mubr.f32.gmra.mrb[0].mxu0 %v1021
        %v1215 = vpop.f32.mrb[0].mxu0
        %v1216 = vadd.f32 %v769, %v1215
        %v1217 = vpop.f32.mrb[0].mxu0
        %1218 = vmatprep.mubr.f32.mxu0 0.0
        %1219 = vmatmul.mubr.f32.gmra.mrb[0].mxu0 %v1022
        %v1220 = vpop.f32.mrb[0].mxu0
        %v1221 = vadd.f32 %v769, %v1220
        %v1222 = vpop.f32.mrb[0].mxu0
        %1223 = vmatprep.mubr.f32.mxu0 0.0
        %1224 = vmatmul.mubr.f32.gmra.mrb[0].mxu0 %v1023
        %v1225 = vpop.f32.mrb[0].mxu0
        %v1226 = vadd.f32 %v769, %v1225
        %v1227 = vpop.f32.mrb[0].mxu0
        %1228 = vmatprep.mubr.f32.mxu0 0.0
        %1229 = vmatmul.mubr.f32.gmra.mrb[0].mxu0 %v1024
        %v1230 = vpop.f32.mrb[0].mxu0
        %v1231 = vadd.f32 %v769, %v1230
        %v1232 = vpop.f32.mrb[0].mxu0
        %1233 = vmatprep.mubr.f32.mxu0 0.0
        %1234 = vmatmul.mubr.f32.gmra.mrb[0].mxu0 %v1025
        %v1235 = vpop.f32.mrb[0].mxu0
        %v1236 = vadd.f32 %v769, %v1235
        %v1237 = vpop.f32.mrb[0].mxu0
        %1238 = vmatprep.mubr.f32.mxu0 0.0
        %1239 = vmatmul.mubr.f32.gmra.mrb[0].mxu0 %v1026
        %v1240 = vpop.f32.mrb[0].mxu0
        %v1241 = vadd.f32 %v769, %v1240
        %v1242 = vpop.f32.mrb[0].mxu0
        %1243 = vmatprep.mubr.f32.mxu0 0.0
        %1244 = vmatmul.mubr.f32.gmra.mrb[0].mxu0 %v1027
        %v1245 = vpop.f32.mrb[0].mxu0
        %v1246 = vadd.f32 %v769, %v1245
        %v1247 = vpop.f32.mrb[0].mxu0
        %1248 = vmatprep.mubr.f32.mxu0 0.0
        %1249 = vmatmul.mubr.f32.gmra.mrb[0].mxu0 %v1028
        %v1250 = vpop.f32.mrb[0].mxu0
        %v1251 = vadd.f32 %v769, %v1250
        %v1252 = vpop.f32.mrb[0].mxu0
        %1253 = vdwg.mxu0
        %v1254 = vmax.f32 %v838, %v1096
        %v1255 = vmax.f32 %v843, %v1101
        %v1256 = vmax.f32 %v848, %v1106
        %v1257 = vmax.f32 %v853, %v1111
        %v1258 = vmax.f32 %v858, %v1116
        %v1259 = vmax.f32 %v863, %v1121
        %v1260 = vmax.f32 %v868, %v1126
        %v1261 = vmax.f32 %v873, %v1131
        %v1262 = vmax.f32 %v878, %v1136
        %v1263 = vmax.f32 %v883, %v1141
        %v1264 = vmax.f32 %v888, %v1146
        %v1265 = vmax.f32 %v893, %v1151
        %v1266 = vmax.f32 %v898, %v1156
        %v1267 = vmax.f32 %v903, %v1161
        %v1268 = vmax.f32 %v908, %v1166
        %v1269 = vmax.f32 %v913, %v1171
        %v1270 = vmax.f32 %v918, %v1176
        %v1271 = vmax.f32 %v923, %v1181
        %v1272 = vmax.f32 %v928, %v1186
        %v1273 = vmax.f32 %v933, %v1191
        %v1274 = vmax.f32 %v938, %v1196
        %v1275 = vmax.f32 %v943, %v1201
        %v1276 = vmax.f32 %v948, %v1206
        %v1277 = vmax.f32 %v953, %v1211
        %v1278 = vmax.f32 %v958, %v1216
        %v1279 = vmax.f32 %v963, %v1221
        %v1280 = vmax.f32 %v968, %v1226
        %v1281 = vmax.f32 %v973, %v1231
        %v1282 = vmax.f32 %v978, %v1236
        %v1283 = vmax.f32 %v983, %v1241
        %v1284 = vmax.f32 %v988, %v1246
        %v1285 = vmax.f32 %v993, %v1251
        %s1286 = scalar_lea.vmem %s688, 512 [#allocation2]
        %v1287 = vld [vmem:[%s1286] sm:$0xff]
        %v1288 = vld [vmem:[%s1286 + $0x8] sm:$0xff]
        %v1289 = vld [vmem:[%s1286 + $0x10] sm:$0xff]
        %v1290 = vld [vmem:[%s1286 + $0x18] sm:$0xff]
        %v1291 = vld [vmem:[%s1286 + $0x20] sm:$0xff]
        %v1292 = vld [vmem:[%s1286 + $0x28] sm:$0xff]
        %v1293 = vld [vmem:[%s1286 + $0x30] sm:$0xff]
        %v1294 = vld [vmem:[%s1286 + $0x38] sm:$0xff]
        %v1295 = vld [vmem:[%s1286 + $0x40] sm:$0xff]
        %v1296 = vld [vmem:[%s1286 + $0x48] sm:$0xff]
        %v1297 = vld [vmem:[%s1286 + $0x50] sm:$0xff]
        %v1298 = vld [vmem:[%s1286 + $0x58] sm:$0xff]
        %v1299 = vld [vmem:[%s1286 + $0x60] sm:$0xff]
        %v1300 = vld [vmem:[%s1286 + $0x68] sm:$0xff]
        %v1301 = vld [vmem:[%s1286 + $0x70] sm:$0xff]
        %v1302 = vld [vmem:[%s1286 + $0x78] sm:$0xff]
        %v1303 = vld [vmem:[%s1286 + $0x80] sm:$0xff]
        %v1304 = vld [vmem:[%s1286 + $0x88] sm:$0xff]
        %v1305 = vld [vmem:[%s1286 + $0x90] sm:$0xff]
        %v1306 = vld [vmem:[%s1286 + $0x98] sm:$0xff]
        %v1307 = vld [vmem:[%s1286 + $0xa0] sm:$0xff]
        %v1308 = vld [vmem:[%s1286 + $0xa8] sm:$0xff]
        %v1309 = vld [vmem:[%s1286 + $0xb0] sm:$0xff]
        %v1310 = vld [vmem:[%s1286 + $0xb8] sm:$0xff]
        %v1311 = vld [vmem:[%s1286 + $0xc0] sm:$0xff]
        %v1312 = vld [vmem:[%s1286 + $0xc8] sm:$0xff]
        %v1313 = vld [vmem:[%s1286 + $0xd0] sm:$0xff]
        %v1314 = vld [vmem:[%s1286 + $0xd8] sm:$0xff]
        %v1315 = vld [vmem:[%s1286 + $0xe0] sm:$0xff]
        %v1316 = vld [vmem:[%s1286 + $0xe8] sm:$0xff]
        %v1317 = vld [vmem:[%s1286 + $0xf0] sm:$0xff]
        %v1318 = vld [vmem:[%s1286 + $0xf8] sm:$0xff]
        %1319 = vmatprep.subr.mxu0 0.0
        %1320 = vmatpush1.msra.mxu0 %v716
        %1321 = vmatprep.subr.mxu0 0.0
        %1322 = vmatpush1.msra.mxu0 %v717
        %1323 = vmatprep.subr.mxu0 0.0
        %1324 = vmatpush1.msra.mxu0 %v718
        %1325 = vmatprep.subr.mxu0 0.0
        %1326 = vmatpush1.msra.mxu0 %v719
        %1327 = vmatprep.subr.mxu0 0.0
        %1328 = vmatpush1.msra.mxu0 %v720
        %1329 = vmatprep.subr.mxu0 0.0
        %1330 = vmatpush1.msra.mxu0 %v721
        %1331 = vmatprep.subr.mxu0 0.0
        %1332 = vmatpush1.msra.mxu0 %v722
        %1333 = vmatprep.subr.mxu0 0.0
        %1334 = vmatpush1.msra.mxu0 %v723
        %1335 = vmatprep.subr.mxu0 0.0
        %1336 = vmatpush1.msra.mxu0 %v724
        %1337 = vmatprep.subr.mxu0 0.0
        %1338 = vmatpush1.msra.mxu0 %v725
        %1339 = vmatprep.subr.mxu0 0.0
        %1340 = vmatpush1.msra.mxu0 %v726
        %1341 = vmatprep.subr.mxu0 0.0
        %1342 = vmatpush1.msra.mxu0 %v727
        %1343 = vmatprep.subr.mxu0 0.0
        %1344 = vmatpush1.msra.mxu0 %v728
        %1345 = vmatprep.subr.mxu0 0.0
        %1346 = vmatpush1.msra.mxu0 %v729
        %1347 = vmatprep.subr.mxu0 0.0
        %1348 = vmatpush1.msra.mxu0 %v730
        %1349 = vmatprep.subr.mxu0 0.0
        %1350 = vmatpush1.msra.mxu0 %v731
        %1351 = vmatprep.subr.mxu0 0.0
        %1352 = vmatpush1.msra.mxu0 0.0
        %1353 = vmatprep.subr.mxu0 0.0
        %1354 = vmatpush1.msra.mxu0 0.0
        %1355 = vmatprep.subr.mxu0 0.0
        %1356 = vmatpush1.msra.mxu0 0.0
        %1357 = vmatprep.subr.mxu0 0.0
        %1358 = vmatpush1.msra.mxu0 0.0
        %1359 = vmatprep.subr.mxu0 0.0
        %1360 = vmatpush1.msra.mxu0 0.0
        %1361 = vmatprep.subr.mxu0 0.0
        %1362 = vmatpush1.msra.mxu0 0.0
        %1363 = vmatprep.subr.mxu0 0.0
        %1364 = vmatpush1.msra.mxu0 0.0
        %1365 = vmatprep.subr.mxu0 0.0
        %1366 = vmatpush1.msra.mxu0 0.0
        %1367 = vmatprep.subr.mxu0 0.0
        %1368 = vmatpush1.msra.mxu0 0.0
        %1369 = vmatprep.subr.mxu0 0.0
        %1370 = vmatpush1.msra.mxu0 0.0
        %1371 = vmatprep.subr.mxu0 0.0
        %1372 = vmatpush1.msra.mxu0 0.0
        %1373 = vmatprep.subr.mxu0 0.0
        %1374 = vmatpush1.msra.mxu0 0.0
        %1375 = vmatprep.subr.mxu0 0.0
        %1376 = vmatpush1.msra.mxu0 0.0
        %1377 = vmatprep.subr.mxu0 0.0
        %1378 = vmatpush1.msra.mxu0 0.0
        %1379 = vmatprep.subr.mxu0 0.0
        %1380 = vmatpush1.msra.mxu0 0.0
        %1381 = vmatprep.subr.mxu0 0.0
        %1382 = vmatpush1.msra.mxu0 0.0
        %1383 = vmatprep.mubr.f32.mxu0 0.0
        %1384 = vmatmul.mubr.f32.gmra.mrb[0].mxu0 %v1287
        %v1385 = vpop.f32.mrb[0].mxu0
        %v1386 = vadd.f32 %v769, %v1385
        %v1387 = vpop.f32.mrb[0].mxu0
        %1388 = vmatprep.mubr.f32.mxu0 0.0
        %1389 = vmatmul.mubr.f32.gmra.mrb[0].mxu0 %v1288
        %v1390 = vpop.f32.mrb[0].mxu0
        %v1391 = vadd.f32 %v769, %v1390
        %v1392 = vpop.f32.mrb[0].mxu0
        %1393 = vmatprep.mubr.f32.mxu0 0.0
        %1394 = vmatmul.mubr.f32.gmra.mrb[0].mxu0 %v1289
        %v1395 = vpop.f32.mrb[0].mxu0
        %v1396 = vadd.f32 %v769, %v1395
        %v1397 = vpop.f32.mrb[0].mxu0
        %1398 = vmatprep.mubr.f32.mxu0 0.0
        %1399 = vmatmul.mubr.f32.gmra.mrb[0].mxu0 %v1290
        %v1400 = vpop.f32.mrb[0].mxu0
        %v1401 = vadd.f32 %v769, %v1400
        %v1402 = vpop.f32.mrb[0].mxu0
        %1403 = vmatprep.mubr.f32.mxu0 0.0
        %1404 = vmatmul.mubr.f32.gmra.mrb[0].mxu0 %v1291
        %v1405 = vpop.f32.mrb[0].mxu0
        %v1406 = vadd.f32 %v769, %v1405
        %v1407 = vpop.f32.mrb[0].mxu0
        %1408 = vmatprep.mubr.f32.mxu0 0.0
        %1409 = vmatmul.mubr.f32.gmra.mrb[0].mxu0 %v1292
        %v1410 = vpop.f32.mrb[0].mxu0
        %v1411 = vadd.f32 %v769, %v1410
        %v1412 = vpop.f32.mrb[0].mxu0
        %1413 = vmatprep.mubr.f32.mxu0 0.0
        %1414 = vmatmul.mubr.f32.gmra.mrb[0].mxu0 %v1293
        %v1415 = vpop.f32.mrb[0].mxu0
        %v1416 = vadd.f32 %v769, %v1415
        %v1417 = vpop.f32.mrb[0].mxu0
        %1418 = vmatprep.mubr.f32.mxu0 0.0
        %1419 = vmatmul.mubr.f32.gmra.mrb[0].mxu0 %v1294
        %v1420 = vpop.f32.mrb[0].mxu0
        %v1421 = vadd.f32 %v769, %v1420
        %v1422 = vpop.f32.mrb[0].mxu0
        %1423 = vmatprep.mubr.f32.mxu0 0.0
        %1424 = vmatmul.mubr.f32.gmra.mrb[0].mxu0 %v1295
        %v1425 = vpop.f32.mrb[0].mxu0
        %v1426 = vadd.f32 %v769, %v1425
        %v1427 = vpop.f32.mrb[0].mxu0
        %1428 = vmatprep.mubr.f32.mxu0 0.0
        %1429 = vmatmul.mubr.f32.gmra.mrb[0].mxu0 %v1296
        %v1430 = vpop.f32.mrb[0].mxu0
        %v1431 = vadd.f32 %v769, %v1430
        %v1432 = vpop.f32.mrb[0].mxu0
        %1433 = vmatprep.mubr.f32.mxu0 0.0
        %1434 = vmatmul.mubr.f32.gmra.mrb[0].mxu0 %v1297
        %v1435 = vpop.f32.mrb[0].mxu0
        %v1436 = vadd.f32 %v769, %v1435
        %v1437 = vpop.f32.mrb[0].mxu0
        %1438 = vmatprep.mubr.f32.mxu0 0.0
        %1439 = vmatmul.mubr.f32.gmra.mrb[0].mxu0 %v1298
        %v1440 = vpop.f32.mrb[0].mxu0
        %v1441 = vadd.f32 %v769, %v1440
        %v1442 = vpop.f32.mrb[0].mxu0
        %1443 = vmatprep.mubr.f32.mxu0 0.0
        %1444 = vmatmul.mubr.f32.gmra.mrb[0].mxu0 %v1299
        %v1445 = vpop.f32.mrb[0].mxu0
        %v1446 = vadd.f32 %v769, %v1445
        %v1447 = vpop.f32.mrb[0].mxu0
        %1448 = vmatprep.mubr.f32.mxu0 0.0
        %1449 = vmatmul.mubr.f32.gmra.mrb[0].mxu0 %v1300
        %v1450 = vpop.f32.mrb[0].mxu0
        %v1451 = vadd.f32 %v769, %v1450
        %v1452 = vpop.f32.mrb[0].mxu0
        %1453 = vmatprep.mubr.f32.mxu0 0.0
        %1454 = vmatmul.mubr.f32.gmra.mrb[0].mxu0 %v1301
        %v1455 = vpop.f32.mrb[0].mxu0
        %v1456 = vadd.f32 %v769, %v1455
        %v1457 = vpop.f32.mrb[0].mxu0
        %1458 = vmatprep.mubr.f32.mxu0 0.0
        %1459 = vmatmul.mubr.f32.gmra.mrb[0].mxu0 %v1302
        %v1460 = vpop.f32.mrb[0].mxu0
        %v1461 = vadd.f32 %v769, %v1460
        %v1462 = vpop.f32.mrb[0].mxu0
        %1463 = vmatprep.mubr.f32.mxu0 0.0
        %1464 = vmatmul.mubr.f32.gmra.mrb[0].mxu0 %v1303
        %v1465 = vpop.f32.mrb[0].mxu0
        %v1466 = vadd.f32 %v769, %v1465
        %v1467 = vpop.f32.mrb[0].mxu0
        %1468 = vmatprep.mubr.f32.mxu0 0.0
        %1469 = vmatmul.mubr.f32.gmra.mrb[0].mxu0 %v1304
        %v1470 = vpop.f32.mrb[0].mxu0
        %v1471 = vadd.f32 %v769, %v1470
        %v1472 = vpop.f32.mrb[0].mxu0
        %1473 = vmatprep.mubr.f32.mxu0 0.0
        %1474 = vmatmul.mubr.f32.gmra.mrb[0].mxu0 %v1305
        %v1475 = vpop.f32.mrb[0].mxu0
        %v1476 = vadd.f32 %v769, %v1475
        %v1477 = vpop.f32.mrb[0].mxu0
        %1478 = vmatprep.mubr.f32.mxu0 0.0
        %1479 = vmatmul.mubr.f32.gmra.mrb[0].mxu0 %v1306
        %v1480 = vpop.f32.mrb[0].mxu0
        %v1481 = vadd.f32 %v769, %v1480
        %v1482 = vpop.f32.mrb[0].mxu0
        %1483 = vmatprep.mubr.f32.mxu0 0.0
        %1484 = vmatmul.mubr.f32.gmra.mrb[0].mxu0 %v1307
        %v1485 = vpop.f32.mrb[0].mxu0
        %v1486 = vadd.f32 %v769, %v1485
        %v1487 = vpop.f32.mrb[0].mxu0
        %1488 = vmatprep.mubr.f32.mxu0 0.0
        %1489 = vmatmul.mubr.f32.gmra.mrb[0].mxu0 %v1308
        %v1490 = vpop.f32.mrb[0].mxu0
        %v1491 = vadd.f32 %v769, %v1490
        %v1492 = vpop.f32.mrb[0].mxu0
        %1493 = vmatprep.mubr.f32.mxu0 0.0
        %1494 = vmatmul.mubr.f32.gmra.mrb[0].mxu0 %v1309
        %v1495 = vpop.f32.mrb[0].mxu0
        %v1496 = vadd.f32 %v769, %v1495
        %v1497 = vpop.f32.mrb[0].mxu0
        %1498 = vmatprep.mubr.f32.mxu0 0.0
        %1499 = vmatmul.mubr.f32.gmra.mrb[0].mxu0 %v1310
        %v1500 = vpop.f32.mrb[0].mxu0
        %v1501 = vadd.f32 %v769, %v1500
        %v1502 = vpop.f32.mrb[0].mxu0
        %1503 = vmatprep.mubr.f32.mxu0 0.0
        %1504 = vmatmul.mubr.f32.gmra.mrb[0].mxu0 %v1311
        %v1505 = vpop.f32.mrb[0].mxu0
        %v1506 = vadd.f32 %v769, %v1505
        %v1507 = vpop.f32.mrb[0].mxu0
        %1508 = vmatprep.mubr.f32.mxu0 0.0
        %1509 = vmatmul.mubr.f32.gmra.mrb[0].mxu0 %v1312
        %v1510 = vpop.f32.mrb[0].mxu0
        %v1511 = vadd.f32 %v769, %v1510
        %v1512 = vpop.f32.mrb[0].mxu0
        %1513 = vmatprep.mubr.f32.mxu0 0.0
        %1514 = vmatmul.mubr.f32.gmra.mrb[0].mxu0 %v1313
        %v1515 = vpop.f32.mrb[0].mxu0
        %v1516 = vadd.f32 %v769, %v1515
        %v1517 = vpop.f32.mrb[0].mxu0
        %1518 = vmatprep.mubr.f32.mxu0 0.0
        %1519 = vmatmul.mubr.f32.gmra.mrb[0].mxu0 %v1314
        %v1520 = vpop.f32.mrb[0].mxu0
        %v1521 = vadd.f32 %v769, %v1520
        %v1522 = vpop.f32.mrb[0].mxu0
        %1523 = vmatprep.mubr.f32.mxu0 0.0
        %1524 = vmatmul.mubr.f32.gmra.mrb[0].mxu0 %v1315
        %v1525 = vpop.f32.mrb[0].mxu0
        %v1526 = vadd.f32 %v769, %v1525
        %v1527 = vpop.f32.mrb[0].mxu0
        %1528 = vmatprep.mubr.f32.mxu0 0.0
        %1529 = vmatmul.mubr.f32.gmra.mrb[0].mxu0 %v1316
        %v1530 = vpop.f32.mrb[0].mxu0
        %v1531 = vadd.f32 %v769, %v1530
        %v1532 = vpop.f32.mrb[0].mxu0
        %1533 = vmatprep.mubr.f32.mxu0 0.0
        %1534 = vmatmul.mubr.f32.gmra.mrb[0].mxu0 %v1317
        %v1535 = vpop.f32.mrb[0].mxu0
        %v1536 = vadd.f32 %v769, %v1535
        %v1537 = vpop.f32.mrb[0].mxu0
        %1538 = vmatprep.mubr.f32.mxu0 0.0
        %1539 = vmatmul.mubr.f32.gmra.mrb[0].mxu0 %v1318
        %v1540 = vpop.f32.mrb[0].mxu0
        %v1541 = vadd.f32 %v769, %v1540
        %v1542 = vpop.f32.mrb[0].mxu0
        %1543 = vdwg.mxu0
        %v1544 = vmax.f32 %v1254, %v1386
        %v1545 = vmax.f32 %v1255, %v1391
        %v1546 = vmax.f32 %v1256, %v1396
        %v1547 = vmax.f32 %v1257, %v1401
        %v1548 = vmax.f32 %v1258, %v1406
        %v1549 = vmax.f32 %v1259, %v1411
        %v1550 = vmax.f32 %v1260, %v1416
        %v1551 = vmax.f32 %v1261, %v1421
        %v1552 = vmax.f32 %v1262, %v1426
        %v1553 = vmax.f32 %v1263, %v1431
        %v1554 = vmax.f32 %v1264, %v1436
        %v1555 = vmax.f32 %v1265, %v1441
        %v1556 = vmax.f32 %v1266, %v1446
        %v1557 = vmax.f32 %v1267, %v1451
        %v1558 = vmax.f32 %v1268, %v1456
        %v1559 = vmax.f32 %v1269, %v1461
        %v1560 = vmax.f32 %v1270, %v1466
        %v1561 = vmax.f32 %v1271, %v1471
        %v1562 = vmax.f32 %v1272, %v1476
        %v1563 = vmax.f32 %v1273, %v1481
        %v1564 = vmax.f32 %v1274, %v1486
        %v1565 = vmax.f32 %v1275, %v1491
        %v1566 = vmax.f32 %v1276, %v1496
        %v1567 = vmax.f32 %v1277, %v1501
        %v1568 = vmax.f32 %v1278, %v1506
        %v1569 = vmax.f32 %v1279, %v1511
        %v1570 = vmax.f32 %v1280, %v1516
        %v1571 = vmax.f32 %v1281, %v1521
        %v1572 = vmax.f32 %v1282, %v1526
        %v1573 = vmax.f32 %v1283, %v1531
        %v1574 = vmax.f32 %v1284, %v1536
        %v1575 = vmax.f32 %v1285, %v1541
        %s1576 = scalar_lea.vmem %s688, 768 [#allocation2]
        %v1577 = vld [vmem:[%s1576] sm:$0xff]
        %v1578 = vld [vmem:[%s1576 + $0x8] sm:$0xff]
        %v1579 = vld [vmem:[%s1576 + $0x10] sm:$0xff]
        %v1580 = vld [vmem:[%s1576 + $0x18] sm:$0xff]
        %v1581 = vld [vmem:[%s1576 + $0x20] sm:$0xff]
        %v1582 = vld [vmem:[%s1576 + $0x28] sm:$0xff]
        %v1583 = vld [vmem:[%s1576 + $0x30] sm:$0xff]
        %v1584 = vld [vmem:[%s1576 + $0x38] sm:$0xff]
        %v1585 = vld [vmem:[%s1576 + $0x40] sm:$0xff]
        %v1586 = vld [vmem:[%s1576 + $0x48] sm:$0xff]
        %v1587 = vld [vmem:[%s1576 + $0x50] sm:$0xff]
        %v1588 = vld [vmem:[%s1576 + $0x58] sm:$0xff]
        %v1589 = vld [vmem:[%s1576 + $0x60] sm:$0xff]
        %v1590 = vld [vmem:[%s1576 + $0x68] sm:$0xff]
        %v1591 = vld [vmem:[%s1576 + $0x70] sm:$0xff]
        %v1592 = vld [vmem:[%s1576 + $0x78] sm:$0xff]
        %v1593 = vld [vmem:[%s1576 + $0x80] sm:$0xff]
        %v1594 = vld [vmem:[%s1576 + $0x88] sm:$0xff]
        %v1595 = vld [vmem:[%s1576 + $0x90] sm:$0xff]
        %v1596 = vld [vmem:[%s1576 + $0x98] sm:$0xff]
        %v1597 = vld [vmem:[%s1576 + $0xa0] sm:$0xff]
        %v1598 = vld [vmem:[%s1576 + $0xa8] sm:$0xff]
        %v1599 = vld [vmem:[%s1576 + $0xb0] sm:$0xff]
        %v1600 = vld [vmem:[%s1576 + $0xb8] sm:$0xff]
        %v1601 = vld [vmem:[%s1576 + $0xc0] sm:$0xff]
        %v1602 = vld [vmem:[%s1576 + $0xc8] sm:$0xff]
        %v1603 = vld [vmem:[%s1576 + $0xd0] sm:$0xff]
        %v1604 = vld [vmem:[%s1576 + $0xd8] sm:$0xff]
        %v1605 = vld [vmem:[%s1576 + $0xe0] sm:$0xff]
        %v1606 = vld [vmem:[%s1576 + $0xe8] sm:$0xff]
        %v1607 = vld [vmem:[%s1576 + $0xf0] sm:$0xff]
        %v1608 = vld [vmem:[%s1576 + $0xf8] sm:$0xff]
        %1609 = vmatprep.subr.mxu0 0.0
        %1610 = vmatpush1.msra.mxu0 %v716
        %1611 = vmatprep.subr.mxu0 0.0
        %1612 = vmatpush1.msra.mxu0 %v717
        %1613 = vmatprep.subr.mxu0 0.0
        %1614 = vmatpush1.msra.mxu0 %v718
        %1615 = vmatprep.subr.mxu0 0.0
        %1616 = vmatpush1.msra.mxu0 %v719
        %1617 = vmatprep.subr.mxu0 0.0
        %1618 = vmatpush1.msra.mxu0 %v720
        %1619 = vmatprep.subr.mxu0 0.0
        %1620 = vmatpush1.msra.mxu0 %v721
        %1621 = vmatprep.subr.mxu0 0.0
        %1622 = vmatpush1.msra.mxu0 %v722
        %1623 = vmatprep.subr.mxu0 0.0
        %1624 = vmatpush1.msra.mxu0 %v723
        %1625 = vmatprep.subr.mxu0 0.0
        %1626 = vmatpush1.msra.mxu0 %v724
        %1627 = vmatprep.subr.mxu0 0.0
        %1628 = vmatpush1.msra.mxu0 %v725
        %1629 = vmatprep.subr.mxu0 0.0
        %1630 = vmatpush1.msra.mxu0 %v726
        %1631 = vmatprep.subr.mxu0 0.0
        %1632 = vmatpush1.msra.mxu0 %v727
        %1633 = vmatprep.subr.mxu0 0.0
        %1634 = vmatpush1.msra.mxu0 %v728
        %1635 = vmatprep.subr.mxu0 0.0
        %1636 = vmatpush1.msra.mxu0 %v729
        %1637 = vmatprep.subr.mxu0 0.0
        %1638 = vmatpush1.msra.mxu0 %v730
        %1639 = vmatprep.subr.mxu0 0.0
        %1640 = vmatpush1.msra.mxu0 %v731
        %1641 = vmatprep.subr.mxu0 0.0
        %1642 = vmatpush1.msra.mxu0 0.0
        %1643 = vmatprep.subr.mxu0 0.0
        %1644 = vmatpush1.msra.mxu0 0.0
        %1645 = vmatprep.subr.mxu0 0.0
        %1646 = vmatpush1.msra.mxu0 0.0
        %1647 = vmatprep.subr.mxu0 0.0
        %1648 = vmatpush1.msra.mxu0 0.0
        %1649 = vmatprep.subr.mxu0 0.0
        %1650 = vmatpush1.msra.mxu0 0.0
        %1651 = vmatprep.subr.mxu0 0.0
        %1652 = vmatpush1.msra.mxu0 0.0
        %1653 = vmatprep.subr.mxu0 0.0
        %1654 = vmatpush1.msra.mxu0 0.0
        %1655 = vmatprep.subr.mxu0 0.0
        %1656 = vmatpush1.msra.mxu0 0.0
        %1657 = vmatprep.subr.mxu0 0.0
        %1658 = vmatpush1.msra.mxu0 0.0
        %1659 = vmatprep.subr.mxu0 0.0
        %1660 = vmatpush1.msra.mxu0 0.0
        %1661 = vmatprep.subr.mxu0 0.0
        %1662 = vmatpush1.msra.mxu0 0.0
        %1663 = vmatprep.subr.mxu0 0.0
        %1664 = vmatpush1.msra.mxu0 0.0
        %1665 = vmatprep.subr.mxu0 0.0
        %1666 = vmatpush1.msra.mxu0 0.0
        %1667 = vmatprep.subr.mxu0 0.0
        %1668 = vmatpush1.msra.mxu0 0.0
        %1669 = vmatprep.subr.mxu0 0.0
        %1670 = vmatpush1.msra.mxu0 0.0
        %1671 = vmatprep.subr.mxu0 0.0
        %1672 = vmatpush1.msra.mxu0 0.0
        %1673 = vmatprep.mubr.f32.mxu0 0.0
        %1674 = vmatmul.mubr.f32.gmra.mrb[0].mxu0 %v1577
        %v1675 = vpop.f32.mrb[0].mxu0
        %v1676 = vadd.f32 %v769, %v1675
        %v1677 = vpop.f32.mrb[0].mxu0
        %1678 = vmatprep.mubr.f32.mxu0 0.0
        %1679 = vmatmul.mubr.f32.gmra.mrb[0].mxu0 %v1578
        %v1680 = vpop.f32.mrb[0].mxu0
        %v1681 = vadd.f32 %v769, %v1680
        %v1682 = vpop.f32.mrb[0].mxu0
        %1683 = vmatprep.mubr.f32.mxu0 0.0
        %1684 = vmatmul.mubr.f32.gmra.mrb[0].mxu0 %v1579
        %v1685 = vpop.f32.mrb[0].mxu0
        %v1686 = vadd.f32 %v769, %v1685
        %v1687 = vpop.f32.mrb[0].mxu0
        %1688 = vmatprep.mubr.f32.mxu0 0.0
        %1689 = vmatmul.mubr.f32.gmra.mrb[0].mxu0 %v1580
        %v1690 = vpop.f32.mrb[0].mxu0
        %v1691 = vadd.f32 %v769, %v1690
        %v1692 = vpop.f32.mrb[0].mxu0
        %1693 = vmatprep.mubr.f32.mxu0 0.0
        %1694 = vmatmul.mubr.f32.gmra.mrb[0].mxu0 %v1581
        %v1695 = vpop.f32.mrb[0].mxu0
        %v1696 = vadd.f32 %v769, %v1695
        %v1697 = vpop.f32.mrb[0].mxu0
        %1698 = vmatprep.mubr.f32.mxu0 0.0
        %1699 = vmatmul.mubr.f32.gmra.mrb[0].mxu0 %v1582
        %v1700 = vpop.f32.mrb[0].mxu0
        %v1701 = vadd.f32 %v769, %v1700
        %v1702 = vpop.f32.mrb[0].mxu0
        %1703 = vmatprep.mubr.f32.mxu0 0.0
        %1704 = vmatmul.mubr.f32.gmra.mrb[0].mxu0 %v1583
        %v1705 = vpop.f32.mrb[0].mxu0
        %v1706 = vadd.f32 %v769, %v1705
        %v1707 = vpop.f32.mrb[0].mxu0
        %1708 = vmatprep.mubr.f32.mxu0 0.0
        %1709 = vmatmul.mubr.f32.gmra.mrb[0].mxu0 %v1584
        %v1710 = vpop.f32.mrb[0].mxu0
        %v1711 = vadd.f32 %v769, %v1710
        %v1712 = vpop.f32.mrb[0].mxu0
        %1713 = vmatprep.mubr.f32.mxu0 0.0
        %1714 = vmatmul.mubr.f32.gmra.mrb[0].mxu0 %v1585
        %v1715 = vpop.f32.mrb[0].mxu0
        %v1716 = vadd.f32 %v769, %v1715
        %v1717 = vpop.f32.mrb[0].mxu0
        %1718 = vmatprep.mubr.f32.mxu0 0.0
        %1719 = vmatmul.mubr.f32.gmra.mrb[0].mxu0 %v1586
        %v1720 = vpop.f32.mrb[0].mxu0
        %v1721 = vadd.f32 %v769, %v1720
        %v1722 = vpop.f32.mrb[0].mxu0
        %1723 = vmatprep.mubr.f32.mxu0 0.0
        %1724 = vmatmul.mubr.f32.gmra.mrb[0].mxu0 %v1587
        %v1725 = vpop.f32.mrb[0].mxu0
        %v1726 = vadd.f32 %v769, %v1725
        %v1727 = vpop.f32.mrb[0].mxu0
        %1728 = vmatprep.mubr.f32.mxu0 0.0
        %1729 = vmatmul.mubr.f32.gmra.mrb[0].mxu0 %v1588
        %v1730 = vpop.f32.mrb[0].mxu0
        %v1731 = vadd.f32 %v769, %v1730
        %v1732 = vpop.f32.mrb[0].mxu0
        %1733 = vmatprep.mubr.f32.mxu0 0.0
        %1734 = vmatmul.mubr.f32.gmra.mrb[0].mxu0 %v1589
        %v1735 = vpop.f32.mrb[0].mxu0
        %v1736 = vadd.f32 %v769, %v1735
        %v1737 = vpop.f32.mrb[0].mxu0
        %1738 = vmatprep.mubr.f32.mxu0 0.0
        %1739 = vmatmul.mubr.f32.gmra.mrb[0].mxu0 %v1590
        %v1740 = vpop.f32.mrb[0].mxu0
        %v1741 = vadd.f32 %v769, %v1740
        %v1742 = vpop.f32.mrb[0].mxu0
        %1743 = vmatprep.mubr.f32.mxu0 0.0
        %1744 = vmatmul.mubr.f32.gmra.mrb[0].mxu0 %v1591
        %v1745 = vpop.f32.mrb[0].mxu0
        %v1746 = vadd.f32 %v769, %v1745
        %v1747 = vpop.f32.mrb[0].mxu0
        %1748 = vmatprep.mubr.f32.mxu0 0.0
        %1749 = vmatmul.mubr.f32.gmra.mrb[0].mxu0 %v1592
        %v1750 = vpop.f32.mrb[0].mxu0
        %v1751 = vadd.f32 %v769, %v1750
        %v1752 = vpop.f32.mrb[0].mxu0
        %1753 = vmatprep.mubr.f32.mxu0 0.0
        %1754 = vmatmul.mubr.f32.gmra.mrb[0].mxu0 %v1593
        %v1755 = vpop.f32.mrb[0].mxu0
        %v1756 = vadd.f32 %v769, %v1755
        %v1757 = vpop.f32.mrb[0].mxu0
        %1758 = vmatprep.mubr.f32.mxu0 0.0
        %1759 = vmatmul.mubr.f32.gmra.mrb[0].mxu0 %v1594
        %v1760 = vpop.f32.mrb[0].mxu0
        %v1761 = vadd.f32 %v769, %v1760
        %v1762 = vpop.f32.mrb[0].mxu0
        %1763 = vmatprep.mubr.f32.mxu0 0.0
        %1764 = vmatmul.mubr.f32.gmra.mrb[0].mxu0 %v1595
        %v1765 = vpop.f32.mrb[0].mxu0
        %v1766 = vadd.f32 %v769, %v1765
        %v1767 = vpop.f32.mrb[0].mxu0
        %1768 = vmatprep.mubr.f32.mxu0 0.0
        %1769 = vmatmul.mubr.f32.gmra.mrb[0].mxu0 %v1596
        %v1770 = vpop.f32.mrb[0].mxu0
        %v1771 = vadd.f32 %v769, %v1770
        %v1772 = vpop.f32.mrb[0].mxu0
        %1773 = vmatprep.mubr.f32.mxu0 0.0
        %1774 = vmatmul.mubr.f32.gmra.mrb[0].mxu0 %v1597
        %v1775 = vpop.f32.mrb[0].mxu0
        %v1776 = vadd.f32 %v769, %v1775
        %v1777 = vpop.f32.mrb[0].mxu0
        %1778 = vmatprep.mubr.f32.mxu0 0.0
        %1779 = vmatmul.mubr.f32.gmra.mrb[0].mxu0 %v1598
        %v1780 = vpop.f32.mrb[0].mxu0
        %v1781 = vadd.f32 %v769, %v1780
        %v1782 = vpop.f32.mrb[0].mxu0
        %1783 = vmatprep.mubr.f32.mxu0 0.0
        %1784 = vmatmul.mubr.f32.gmra.mrb[0].mxu0 %v1599
        %v1785 = vpop.f32.mrb[0].mxu0
        %v1786 = vadd.f32 %v769, %v1785
        %v1787 = vpop.f32.mrb[0].mxu0
        %1788 = vmatprep.mubr.f32.mxu0 0.0
        %1789 = vmatmul.mubr.f32.gmra.mrb[0].mxu0 %v1600
        %v1790 = vpop.f32.mrb[0].mxu0
        %v1791 = vadd.f32 %v769, %v1790
        %v1792 = vpop.f32.mrb[0].mxu0
        %1793 = vmatprep.mubr.f32.mxu0 0.0
        %1794 = vmatmul.mubr.f32.gmra.mrb[0].mxu0 %v1601
        %v1795 = vpop.f32.mrb[0].mxu0
        %v1796 = vadd.f32 %v769, %v1795
        %v1797 = vpop.f32.mrb[0].mxu0
        %1798 = vmatprep.mubr.f32.mxu0 0.0
        %1799 = vmatmul.mubr.f32.gmra.mrb[0].mxu0 %v1602
        %v1800 = vpop.f32.mrb[0].mxu0
        %v1801 = vadd.f32 %v769, %v1800
        %v1802 = vpop.f32.mrb[0].mxu0
        %1803 = vmatprep.mubr.f32.mxu0 0.0
        %1804 = vmatmul.mubr.f32.gmra.mrb[0].mxu0 %v1603
        %v1805 = vpop.f32.mrb[0].mxu0
        %v1806 = vadd.f32 %v769, %v1805
        %v1807 = vpop.f32.mrb[0].mxu0
        %1808 = vmatprep.mubr.f32.mxu0 0.0
        %1809 = vmatmul.mubr.f32.gmra.mrb[0].mxu0 %v1604
        %v1810 = vpop.f32.mrb[0].mxu0
        %v1811 = vadd.f32 %v769, %v1810
        %v1812 = vpop.f32.mrb[0].mxu0
        %1813 = vmatprep.mubr.f32.mxu0 0.0
        %1814 = vmatmul.mubr.f32.gmra.mrb[0].mxu0 %v1605
        %v1815 = vpop.f32.mrb[0].mxu0
        %v1816 = vadd.f32 %v769, %v1815
        %v1817 = vpop.f32.mrb[0].mxu0
        %1818 = vmatprep.mubr.f32.mxu0 0.0
        %1819 = vmatmul.mubr.f32.gmra.mrb[0].mxu0 %v1606
        %v1820 = vpop.f32.mrb[0].mxu0
        %v1821 = vadd.f32 %v769, %v1820
        %v1822 = vpop.f32.mrb[0].mxu0
        %1823 = vmatprep.mubr.f32.mxu0 0.0
        %1824 = vmatmul.mubr.f32.gmra.mrb[0].mxu0 %v1607
        %v1825 = vpop.f32.mrb[0].mxu0
        %v1826 = vadd.f32 %v769, %v1825
        %v1827 = vpop.f32.mrb[0].mxu0
        %1828 = vmatprep.mubr.f32.mxu0 0.0
        %1829 = vmatmul.mubr.f32.gmra.mrb[0].mxu0 %v1608
        %v1830 = vpop.f32.mrb[0].mxu0
        %v1831 = vadd.f32 %v769, %v1830
        %v1832 = vpop.f32.mrb[0].mxu0
        %1833 = vdwg.mxu0
        %v1834 = vmax.f32 %v1544, %v1676
        %v1835 = vmax.f32 %v1545, %v1681
        %v1836 = vmax.f32 %v1546, %v1686
        %v1837 = vmax.f32 %v1547, %v1691
        %v1838 = vmax.f32 %v1548, %v1696
        %v1839 = vmax.f32 %v1549, %v1701
        %v1840 = vmax.f32 %v1550, %v1706
        %v1841 = vmax.f32 %v1551, %v1711
        %v1842 = vmax.f32 %v1552, %v1716
        %v1843 = vmax.f32 %v1553, %v1721
        %v1844 = vmax.f32 %v1554, %v1726
        %v1845 = vmax.f32 %v1555, %v1731
        %v1846 = vmax.f32 %v1556, %v1736
        %v1847 = vmax.f32 %v1557, %v1741
        %v1848 = vmax.f32 %v1558, %v1746
        %v1849 = vmax.f32 %v1559, %v1751
        %v1850 = vmax.f32 %v1560, %v1756
        %v1851 = vmax.f32 %v1561, %v1761
        %v1852 = vmax.f32 %v1562, %v1766
        %v1853 = vmax.f32 %v1563, %v1771
        %v1854 = vmax.f32 %v1564, %v1776
        %v1855 = vmax.f32 %v1565, %v1781
        %v1856 = vmax.f32 %v1566, %v1786
        %v1857 = vmax.f32 %v1567, %v1791
        %v1858 = vmax.f32 %v1568, %v1796
        %v1859 = vmax.f32 %v1569, %v1801
        %v1860 = vmax.f32 %v1570, %v1806
        %v1861 = vmax.f32 %v1571, %v1811
        %v1862 = vmax.f32 %v1572, %v1816
        %v1863 = vmax.f32 %v1573, %v1821
        %v1864 = vmax.f32 %v1574, %v1826
        %v1865 = vmax.f32 %v1575, %v1831
        %v1866 = vmax.f32 %v1834, 0.0
        %v1867 = vmax.f32 %v1835, 0.0
        %v1868 = vmax.f32 %v1836, 0.0
        %v1869 = vmax.f32 %v1837, 0.0
        %v1870 = vmax.f32 %v1838, 0.0
        %v1871 = vmax.f32 %v1839, 0.0
        %v1872 = vmax.f32 %v1840, 0.0
        %v1873 = vmax.f32 %v1841, 0.0
        %v1874 = vmax.f32 %v1842, 0.0
        %v1875 = vmax.f32 %v1843, 0.0
        %v1876 = vmax.f32 %v1844, 0.0
        %v1877 = vmax.f32 %v1845, 0.0
        %v1878 = vmax.f32 %v1846, 0.0
        %v1879 = vmax.f32 %v1847, 0.0
        %v1880 = vmax.f32 %v1848, 0.0
        %v1881 = vmax.f32 %v1849, 0.0
        %v1882 = vmax.f32 %v1850, 0.0
        %v1883 = vmax.f32 %v1851, 0.0
        %v1884 = vmax.f32 %v1852, 0.0
        %v1885 = vmax.f32 %v1853, 0.0
        %v1886 = vmax.f32 %v1854, 0.0
        %v1887 = vmax.f32 %v1855, 0.0
        %v1888 = vmax.f32 %v1856, 0.0
        %v1889 = vmax.f32 %v1857, 0.0
        %v1890 = vmax.f32 %v1858, 0.0
        %v1891 = vmax.f32 %v1859, 0.0
        %v1892 = vmax.f32 %v1860, 0.0
        %v1893 = vmax.f32 %v1861, 0.0
        %v1894 = vmax.f32 %v1862, 0.0
        %v1895 = vmax.f32 %v1863, 0.0
        %v1896 = vmax.f32 %v1864, 0.0
        %v1897 = vmax.f32 %v1865, 0.0
        %1898 = vst [vmem:[%s714] sm:$0xff] %v1866
        %1899 = vst [vmem:[%s714 + $0x8] sm:$0xff] %v1867
        %1900 = vst [vmem:[%s714 + $0x10] sm:$0xff] %v1868
        %1901 = vst [vmem:[%s714 + $0x18] sm:$0xff] %v1869
        %1902 = vst [vmem:[%s714 + $0x20] sm:$0xff] %v1870
        %1903 = vst [vmem:[%s714 + $0x28] sm:$0xff] %v1871
        %1904 = vst [vmem:[%s714 + $0x30] sm:$0xff] %v1872
        %1905 = vst [vmem:[%s714 + $0x38] sm:$0xff] %v1873
        %1906 = vst [vmem:[%s714 + $0x40] sm:$0xff] %v1874
        %1907 = vst [vmem:[%s714 + $0x48] sm:$0xff] %v1875
        %1908 = vst [vmem:[%s714 + $0x50] sm:$0xff] %v1876
        %1909 = vst [vmem:[%s714 + $0x58] sm:$0xff] %v1877
        %1910 = vst [vmem:[%s714 + $0x60] sm:$0xff] %v1878
        %1911 = vst [vmem:[%s714 + $0x68] sm:$0xff] %v1879
        %1912 = vst [vmem:[%s714 + $0x70] sm:$0xff] %v1880
        %1913 = vst [vmem:[%s714 + $0x78] sm:$0xff] %v1881
        %1914 = vst [vmem:[%s714 + $0x80] sm:$0xff] %v1882
        %1915 = vst [vmem:[%s714 + $0x88] sm:$0xff] %v1883
        %1916 = vst [vmem:[%s714 + $0x90] sm:$0xff] %v1884
        %1917 = vst [vmem:[%s714 + $0x98] sm:$0xff] %v1885
        %1918 = vst [vmem:[%s714 + $0xa0] sm:$0xff] %v1886
        %1919 = vst [vmem:[%s714 + $0xa8] sm:$0xff] %v1887
        %1920 = vst [vmem:[%s714 + $0xb0] sm:$0xff] %v1888
        %1921 = vst [vmem:[%s714 + $0xb8] sm:$0xff] %v1889
        %1922 = vst [vmem:[%s714 + $0xc0] sm:$0xff] %v1890
        %1923 = vst [vmem:[%s714 + $0xc8] sm:$0xff] %v1891
        %1924 = vst [vmem:[%s714 + $0xd0] sm:$0xff] %v1892
        %1925 = vst [vmem:[%s714 + $0xd8] sm:$0xff] %v1893
        %1926 = vst [vmem:[%s714 + $0xe0] sm:$0xff] %v1894
        %1927 = vst [vmem:[%s714 + $0xe8] sm:$0xff] %v1895
        %1928 = vst [vmem:[%s714 + $0xf0] sm:$0xff] %v1896
        %1929 = vst [vmem:[%s714 + $0xf8] sm:$0xff] %v1897
        %s1930 = smul.u32 32, %s14
        %p1931 = scmp.lt.s32.totalorder %s1930, 63
        %s1932 = scalar_select %p1931, %s1930, 63
        %s1933 = smul.addr %s1932, 8
        %s1934 = scalar_lea.vmem %s3, %s1933
        // Predicated region
        $region71: #{net_forward.3} parent=65 // pred_check
          %p1935 = pneg %p100
        $region72: #{net_forward.3} parent=65 // pred_check_branch
          %1937 = sbr.rel (%p1935) target = $region74
        $region73: #{net_forward.3} parent=65 // pred_region
          %s1938 = smul.u32 32, %s14
        $region74: #{net_forward.3} parent=65 // pred_fallthru
          _
      $region66: #{net_forward.3} parent=5 // pred_fallthru
        _
      %p1939 = scmp.le.s32.totalorder 2, %s9
      // Predicated region
      $region75: #{net_forward.3} parent=5 // pred_check
        %p1940 = pneg %p1939
      $region76: #{net_forward.3} parent=5 // pred_check_branch
        %1942 = sbr.rel (%p1940) target = $region78
      $region77: #{net_forward.3} parent=5 // pred_region
        %s1943 = ssub.s32 %s9, 2
        // Predicated region
        $region79: #{net_forward.3} parent=77 // pred_check
          %p1944 = pneg %p106
        $region80: #{net_forward.3} parent=77 // pred_check_branch
          %1946 = sbr.rel (%p1944) target = $region82
        $region81: #{net_forward.3} parent=77 // pred_region
          %s1947 = smul.u32 32, %s15
          %p1948 = scmp.lt.s32.totalorder %s1947, 63
          %s1949 = scalar_select %p1948, %s1947, 63
          %s1950 = smul.addr %s1949, 8
          %s1951 = scalar_lea.vmem %s3, %s1950
        $region82: #{net_forward.3} parent=77 // pred_fallthru
          _
      $region78: #{net_forward.3} parent=5 // pred_fallthru
        _
    $region6: #{net_forward.3} parent=1 // loop_footer
      %s13 = sadd.s32 1, %s9
    $region7: #{net_forward.3} parent=1 // loop_footer_branch
      %8 = sbr.rel target = $region3
    $region8: #{net_forward.3} parent=1 // loop_exit
      _

// kernel: net_forward.4
$region0: #{net_forward.4}
  #allocation0 [shape = 'u32[]', space=smem, size = 0x4, offset = 0x4, fixed_abs, tag = 'smem constant byte address 0x4 - core index']
  #allocation1 [shape = 'u32[144,128]{1,0:T(1,128)}', space=vmem, size = 0x12000, scoped, tag = 'internal scratch']
  %s0 = inlined_call_operand.vmem [shape: f32[4,56,256], index: 0, kind: input, shape index: {}]
  %s1 = inlined_call_operand.vmem [shape: f32[256,128], index: 1, kind: input, shape index: {}]
  %s2 = inlined_call_operand.vmem [shape: f32[1,128], index: 2, kind: input, shape index: {}]
  %s3 = inlined_call_operand.vmem [shape: f32[56,128], index: 3, kind: output, shape index: {}]
  %s4 = sld [smem:[#allocation0]]
  $region22: #{net_forward.4} parent=0
    _
  %s6 = ssub.s32 1, %s4
  %s7 = scalar_select 0, %s6, %s4
  // Predicated region
  $region2: #{net_forward.4} parent=0 // pred_check
    _
  $region3: #{net_forward.4} parent=0 // pred_check_branch
    %9 = sbr.rel (0) target = $region5
  $region4: #{net_forward.4} parent=0 // pred_region
    _
  $region5: #{net_forward.4} parent=0 // pred_fallthru
    _
  // Predicated region
  $region6: #{net_forward.4} parent=0 // pred_check
    _
  $region7: #{net_forward.4} parent=0 // pred_check_branch
    %11 = sbr.rel (0) target = $region9
  $region8: #{net_forward.4} parent=0 // pred_region
    _
  $region9: #{net_forward.4} parent=0 // pred_fallthru
    _
  // Predicated region
  $region10: #{net_forward.4} parent=0 // pred_check
    _
  $region11: #{net_forward.4} parent=0 // pred_check_branch
    %13 = sbr.rel (0) target = $region13
  $region12: #{net_forward.4} parent=0 // pred_region
    _
  $region13: #{net_forward.4} parent=0 // pred_fallthru
    _
  %v14 = vld [vmem:[%s1] sm:$0xff]
  %v15 = vld [vmem:[%s1 + $0x8] sm:$0xff]
  %v16 = vld [vmem:[%s1 + $0x10] sm:$0xff]
  %v17 = vld [vmem:[%s1 + $0x18] sm:$0xff]
  %v18 = vld [vmem:[%s1 + $0x20] sm:$0xff]
  %v19 = vld [vmem:[%s1 + $0x28] sm:$0xff]
  %v20 = vld [vmem:[%s1 + $0x30] sm:$0xff]
  %v21 = vld [vmem:[%s1 + $0x38] sm:$0xff]
  %v22 = vld [vmem:[%s1 + $0x40] sm:$0xff]
  %v23 = vld [vmem:[%s1 + $0x48] sm:$0xff]
  %v24 = vld [vmem:[%s1 + $0x50] sm:$0xff]
  %v25 = vld [vmem:[%s1 + $0x58] sm:$0xff]
  %v26 = vld [vmem:[%s1 + $0x60] sm:$0xff]
  %v27 = vld [vmem:[%s1 + $0x68] sm:$0xff]
  %v28 = vld [vmem:[%s1 + $0x70] sm:$0xff]
  %v29 = vld [vmem:[%s1 + $0x78] sm:$0xff]
  %v30 = vld [vmem:[%s1 + $0x80] sm:$0xff]
  %v31 = vld [vmem:[%s1 + $0x88] sm:$0xff]
  %v32 = vld [vmem:[%s1 + $0x90] sm:$0xff]
  %v33 = vld [vmem:[%s1 + $0x98] sm:$0xff]
  %v34 = vld [vmem:[%s1 + $0xa0] sm:$0xff]
  %v35 = vld [vmem:[%s1 + $0xa8] sm:$0xff]
  %v36 = vld [vmem:[%s1 + $0xb0] sm:$0xff]
  %v37 = vld [vmem:[%s1 + $0xb8] sm:$0xff]
  %v38 = vld [vmem:[%s1 + $0xc0] sm:$0xff]
  %v39 = vld [vmem:[%s1 + $0xc8] sm:$0xff]
  %v40 = vld [vmem:[%s1 + $0xd0] sm:$0xff]
  %v41 = vld [vmem:[%s1 + $0xd8] sm:$0xff]
  %v42 = vld [vmem:[%s1 + $0xe0] sm:$0xff]
  %v43 = vld [vmem:[%s1 + $0xe8] sm:$0xff]
  %v44 = vld [vmem:[%s1 + $0xf0] sm:$0xff]
  %v45 = vld [vmem:[%s1 + $0xf8] sm:$0xff]
  %v46 = vld [vmem:[%s2] sm:$0x1]
  %v47 = vld [vmem:[%s0] sm:$0xff]
  %v48 = vld [vmem:[%s0 + $0x8] sm:$0xff]
  %v49 = vld [vmem:[%s0 + $0x10] sm:$0xff]
  %v50 = vld [vmem:[%s0 + $0x18] sm:$0xff]
  %v51 = vld [vmem:[%s0 + $0x20] sm:$0xff]
  %v52 = vld [vmem:[%s0 + $0x28] sm:$0xff]
  %v53 = vld [vmem:[%s0 + $0x30] sm:$0xff]
  %v54 = vld [vmem:[%s0 + $0x38] sm:$0xff]
  %v55 = vld [vmem:[%s0 + $0x40] sm:$0xff]
  %v56 = vld [vmem:[%s0 + $0x48] sm:$0xff]
  %v57 = vld [vmem:[%s0 + $0x50] sm:$0xff]
  %v58 = vld [vmem:[%s0 + $0x58] sm:$0xff]
  %v59 = vld [vmem:[%s0 + $0x60] sm:$0xff]
  %v60 = vld [vmem:[%s0 + $0x68] sm:$0xff]
  %v62 = vlaneseq
  %v63 = vshrl.u32 %v62, 7
  %v64 = vsub.s32 0, %v63
  %v65 = vrot.slane %v46, %v64
  %67 = vmatprep.subr.mxu0 0.0
  %68 = vmatpush1.msra.mxu0 %v14
  %69 = vmatprep.subr.mxu0 0.0
  %70 = vmatpush1.msra.mxu0 %v15
  %71 = vmatprep.subr.mxu0 0.0
  %72 = vmatpush1.msra.mxu0 %v16
  %73 = vmatprep.subr.mxu0 0.0
  %74 = vmatpush1.msra.mxu0 %v17
  %75 = vmatprep.subr.mxu0 0.0
  %76 = vmatpush1.msra.mxu0 %v18
  %77 = vmatprep.subr.mxu0 0.0
  %78 = vmatpush1.msra.mxu0 %v19
  %79 = vmatprep.subr.mxu0 0.0
  %80 = vmatpush1.msra.mxu0 %v20
  %81 = vmatprep.subr.mxu0 0.0
  %82 = vmatpush1.msra.mxu0 %v21
  %83 = vmatprep.subr.mxu0 0.0
  %84 = vmatpush1.msra.mxu0 %v22
  %85 = vmatprep.subr.mxu0 0.0
  %86 = vmatpush1.msra.mxu0 %v23
  %87 = vmatprep.subr.mxu0 0.0
  %88 = vmatpush1.msra.mxu0 %v24
  %89 = vmatprep.subr.mxu0 0.0
  %90 = vmatpush1.msra.mxu0 %v25
  %91 = vmatprep.subr.mxu0 0.0
  %92 = vmatpush1.msra.mxu0 %v26
  %93 = vmatprep.subr.mxu0 0.0
  %94 = vmatpush1.msra.mxu0 %v27
  %95 = vmatprep.subr.mxu0 0.0
  %96 = vmatpush1.msra.mxu0 %v28
  %97 = vmatprep.subr.mxu0 0.0
  %98 = vmatpush1.msra.mxu0 %v29
  %99 = vmatprep.subr.mxu0 0.0
  %100 = vmatpush1.msra.mxu0 %v30
  %101 = vmatprep.subr.mxu0 0.0
  %102 = vmatpush1.msra.mxu0 %v31
  %103 = vmatprep.subr.mxu0 0.0
  %104 = vmatpush1.msra.mxu0 %v32
  %105 = vmatprep.subr.mxu0 0.0
  %106 = vmatpush1.msra.mxu0 %v33
  %107 = vmatprep.subr.mxu0 0.0
  %108 = vmatpush1.msra.mxu0 %v34
  %109 = vmatprep.subr.mxu0 0.0
  %110 = vmatpush1.msra.mxu0 %v35
  %111 = vmatprep.subr.mxu0 0.0
  %112 = vmatpush1.msra.mxu0 %v36
  %113 = vmatprep.subr.mxu0 0.0
  %114 = vmatpush1.msra.mxu0 %v37
  %115 = vmatprep.subr.mxu0 0.0
  %116 = vmatpush1.msra.mxu0 %v38
  %117 = vmatprep.subr.mxu0 0.0
  %118 = vmatpush1.msra.mxu0 %v39
  %119 = vmatprep.subr.mxu0 0.0
  %120 = vmatpush1.msra.mxu0 %v40
  %121 = vmatprep.subr.mxu0 0.0
  %122 = vmatpush1.msra.mxu0 %v41
  %123 = vmatprep.subr.mxu0 0.0
  %124 = vmatpush1.msra.mxu0 %v42
  %125 = vmatprep.subr.mxu0 0.0
  %126 = vmatpush1.msra.mxu0 %v43
  %127 = vmatprep.subr.mxu0 0.0
  %128 = vmatpush1.msra.mxu0 %v44
  %129 = vmatprep.subr.mxu0 0.0
  %130 = vmatpush1.msra.mxu0 %v45
  %131 = vmatprep.mubr.f32.mxu0 %v48
  %132 = vmatmul.mubr.f32.gmra.mrb[0].mxu0 %v47
  %v133 = vpop.f32.mrb[0].mxu0
  %v134 = vadd.f32 %v65, %v133
  %v135 = vpop.f32.mrb[0].mxu0
  %136 = vmatprep.mubr.f32.mxu0 %v50
  %137 = vmatmul.mubr.f32.gmra.mrb[0].mxu0 %v49
  %v138 = vpop.f32.mrb[0].mxu0
  %v139 = vadd.f32 %v65, %v138
  %v140 = vpop.f32.mrb[0].mxu0
  %141 = vmatprep.mubr.f32.mxu0 %v52
  %142 = vmatmul.mubr.f32.gmra.mrb[0].mxu0 %v51
  %v143 = vpop.f32.mrb[0].mxu0
  %v144 = vadd.f32 %v65, %v143
  %v145 = vpop.f32.mrb[0].mxu0
  %146 = vmatprep.mubr.f32.mxu0 %v54
  %147 = vmatmul.mubr.f32.gmra.mrb[0].mxu0 %v53
  %v148 = vpop.f32.mrb[0].mxu0
  %v149 = vadd.f32 %v65, %v148
  %v150 = vpop.f32.mrb[0].mxu0
  %151 = vmatprep.mubr.f32.mxu0 %v56
  %152 = vmatmul.mubr.f32.gmra.mrb[0].mxu0 %v55
  %v153 = vpop.f32.mrb[0].mxu0
  %v154 = vadd.f32 %v65, %v153
  %v155 = vpop.f32.mrb[0].mxu0
  %156 = vmatprep.mubr.f32.mxu0 %v58
  %157 = vmatmul.mubr.f32.gmra.mrb[0].mxu0 %v57
  %v158 = vpop.f32.mrb[0].mxu0
  %v159 = vadd.f32 %v65, %v158
  %v160 = vpop.f32.mrb[0].mxu0
  %161 = vmatprep.mubr.f32.mxu0 %v60
  %162 = vmatmul.mubr.f32.gmra.mrb[0].mxu0 %v59
  %v163 = vpop.f32.mrb[0].mxu0
  %v164 = vadd.f32 %v65, %v163
  %v165 = vpop.f32.mrb[0].mxu0
  %166 = vdwg.mxu0
  %s167 = scalar_lea.vmem %s0, 112
  %v168 = vld [vmem:[%s167] sm:$0xff]
  %v169 = vld [vmem:[%s167 + $0x8] sm:$0xff]
  %v170 = vld [vmem:[%s167 + $0x10] sm:$0xff]
  %v171 = vld [vmem:[%s167 + $0x18] sm:$0xff]
  %v172 = vld [vmem:[%s167 + $0x20] sm:$0xff]
  %v173 = vld [vmem:[%s167 + $0x28] sm:$0xff]
  %v174 = vld [vmem:[%s167 + $0x30] sm:$0xff]
  %v175 = vld [vmem:[%s167 + $0x38] sm:$0xff]
  %v176 = vld [vmem:[%s167 + $0x40] sm:$0xff]
  %v177 = vld [vmem:[%s167 + $0x48] sm:$0xff]
  %v178 = vld [vmem:[%s167 + $0x50] sm:$0xff]
  %v179 = vld [vmem:[%s167 + $0x58] sm:$0xff]
  %v180 = vld [vmem:[%s167 + $0x60] sm:$0xff]
  %v181 = vld [vmem:[%s167 + $0x68] sm:$0xff]
  %182 = vmatprep.subr.mxu0 0.0
  %183 = vmatpush1.msra.mxu0 %v14
  %184 = vmatprep.subr.mxu0 0.0
  %185 = vmatpush1.msra.mxu0 %v15
  %186 = vmatprep.subr.mxu0 0.0
  %187 = vmatpush1.msra.mxu0 %v16
  %188 = vmatprep.subr.mxu0 0.0
  %189 = vmatpush1.msra.mxu0 %v17
  %190 = vmatprep.subr.mxu0 0.0
  %191 = vmatpush1.msra.mxu0 %v18
  %192 = vmatprep.subr.mxu0 0.0
  %193 = vmatpush1.msra.mxu0 %v19
  %194 = vmatprep.subr.mxu0 0.0
  %195 = vmatpush1.msra.mxu0 %v20
  %196 = vmatprep.subr.mxu0 0.0
  %197 = vmatpush1.msra.mxu0 %v21
  %198 = vmatprep.subr.mxu0 0.0
  %199 = vmatpush1.msra.mxu0 %v22
  %200 = vmatprep.subr.mxu0 0.0
  %201 = vmatpush1.msra.mxu0 %v23
  %202 = vmatprep.subr.mxu0 0.0
  %203 = vmatpush1.msra.mxu0 %v24
  %204 = vmatprep.subr.mxu0 0.0
  %205 = vmatpush1.msra.mxu0 %v25
  %206 = vmatprep.subr.mxu0 0.0
  %207 = vmatpush1.msra.mxu0 %v26
  %208 = vmatprep.subr.mxu0 0.0
  %209 = vmatpush1.msra.mxu0 %v27
  %210 = vmatprep.subr.mxu0 0.0
  %211 = vmatpush1.msra.mxu0 %v28
  %212 = vmatprep.subr.mxu0 0.0
  %213 = vmatpush1.msra.mxu0 %v29
  %214 = vmatprep.subr.mxu0 0.0
  %215 = vmatpush1.msra.mxu0 %v30
  %216 = vmatprep.subr.mxu0 0.0
  %217 = vmatpush1.msra.mxu0 %v31
  %218 = vmatprep.subr.mxu0 0.0
  %219 = vmatpush1.msra.mxu0 %v32
  %220 = vmatprep.subr.mxu0 0.0
  %221 = vmatpush1.msra.mxu0 %v33
  %222 = vmatprep.subr.mxu0 0.0
  %223 = vmatpush1.msra.mxu0 %v34
  %224 = vmatprep.subr.mxu0 0.0
  %225 = vmatpush1.msra.mxu0 %v35
  %226 = vmatprep.subr.mxu0 0.0
  %227 = vmatpush1.msra.mxu0 %v36
  %228 = vmatprep.subr.mxu0 0.0
  %229 = vmatpush1.msra.mxu0 %v37
  %230 = vmatprep.subr.mxu0 0.0
  %231 = vmatpush1.msra.mxu0 %v38
  %232 = vmatprep.subr.mxu0 0.0
  %233 = vmatpush1.msra.mxu0 %v39
  %234 = vmatprep.subr.mxu0 0.0
  %235 = vmatpush1.msra.mxu0 %v40
  %236 = vmatprep.subr.mxu0 0.0
  %237 = vmatpush1.msra.mxu0 %v41
  %238 = vmatprep.subr.mxu0 0.0
  %239 = vmatpush1.msra.mxu0 %v42
  %240 = vmatprep.subr.mxu0 0.0
  %241 = vmatpush1.msra.mxu0 %v43
  %242 = vmatprep.subr.mxu0 0.0
  %243 = vmatpush1.msra.mxu0 %v44
  %244 = vmatprep.subr.mxu0 0.0
  %245 = vmatpush1.msra.mxu0 %v45
  %246 = vmatprep.mubr.f32.mxu0 %v169
  %247 = vmatmul.mubr.f32.gmra.mrb[0].mxu0 %v168
  %v248 = vpop.f32.mrb[0].mxu0
  %v249 = vadd.f32 %v65, %v248
  %v250 = vpop.f32.mrb[0].mxu0
  %251 = vmatprep.mubr.f32.mxu0 %v171
  %252 = vmatmul.mubr.f32.gmra.mrb[0].mxu0 %v170
  %v253 = vpop.f32.mrb[0].mxu0
  %v254 = vadd.f32 %v65, %v253
  %v255 = vpop.f32.mrb[0].mxu0
  %256 = vmatprep.mubr.f32.mxu0 %v173
  %257 = vmatmul.mubr.f32.gmra.mrb[0].mxu0 %v172
  %v258 = vpop.f32.mrb[0].mxu0
  %v259 = vadd.f32 %v65, %v258
  %v260 = vpop.f32.mrb[0].mxu0
  %261 = vmatprep.mubr.f32.mxu0 %v175
  %262 = vmatmul.mubr.f32.gmra.mrb[0].mxu0 %v174
  %v263 = vpop.f32.mrb[0].mxu0
  %v264 = vadd.f32 %v65, %v263
  %v265 = vpop.f32.mrb[0].mxu0
  %266 = vmatprep.mubr.f32.mxu0 %v177
  %267 = vmatmul.mubr.f32.gmra.mrb[0].mxu0 %v176
  %v268 = vpop.f32.mrb[0].mxu0
  %v269 = vadd.f32 %v65, %v268
  %v270 = vpop.f32.mrb[0].mxu0
  %271 = vmatprep.mubr.f32.mxu0 %v179
  %272 = vmatmul.mubr.f32.gmra.mrb[0].mxu0 %v178
  %v273 = vpop.f32.mrb[0].mxu0
  %v274 = vadd.f32 %v65, %v273
  %v275 = vpop.f32.mrb[0].mxu0
  %276 = vmatprep.mubr.f32.mxu0 %v181
  %277 = vmatmul.mubr.f32.gmra.mrb[0].mxu0 %v180
  %v278 = vpop.f32.mrb[0].mxu0
  %v279 = vadd.f32 %v65, %v278
  %v280 = vpop.f32.mrb[0].mxu0
  %281 = vdwg.mxu0
  %v282 = vmax.f32 %v134, %v249
  %v283 = vmax.f32 %v139, %v254
  %v284 = vmax.f32 %v144, %v259
  %v285 = vmax.f32 %v149, %v264
  %v286 = vmax.f32 %v154, %v269
  %v287 = vmax.f32 %v159, %v274
  %v288 = vmax.f32 %v164, %v279
  %s289 = scalar_lea.vmem %s0, 224
  %v290 = vld [vmem:[%s289] sm:$0xff]
  %v291 = vld [vmem:[%s289 + $0x8] sm:$0xff]
  %v292 = vld [vmem:[%s289 + $0x10] sm:$0xff]
  %v293 = vld [vmem:[%s289 + $0x18] sm:$0xff]
  %v294 = vld [vmem:[%s289 + $0x20] sm:$0xff]
  %v295 = vld [vmem:[%s289 + $0x28] sm:$0xff]
  %v296 = vld [vmem:[%s289 + $0x30] sm:$0xff]
  %v297 = vld [vmem:[%s289 + $0x38] sm:$0xff]
  %v298 = vld [vmem:[%s289 + $0x40] sm:$0xff]
  %v299 = vld [vmem:[%s289 + $0x48] sm:$0xff]
  %v300 = vld [vmem:[%s289 + $0x50] sm:$0xff]
  %v301 = vld [vmem:[%s289 + $0x58] sm:$0xff]
  %v302 = vld [vmem:[%s289 + $0x60] sm:$0xff]
  %v303 = vld [vmem:[%s289 + $0x68] sm:$0xff]
  %304 = vmatprep.subr.mxu0 0.0
  %305 = vmatpush1.msra.mxu0 %v14
  %306 = vmatprep.subr.mxu0 0.0
  %307 = vmatpush1.msra.mxu0 %v15
  %308 = vmatprep.subr.mxu0 0.0
  %309 = vmatpush1.msra.mxu0 %v16
  %310 = vmatprep.subr.mxu0 0.0
  %311 = vmatpush1.msra.mxu0 %v17
  %312 = vmatprep.subr.mxu0 0.0
  %313 = vmatpush1.msra.mxu0 %v18
  %314 = vmatprep.subr.mxu0 0.0
  %315 = vmatpush1.msra.mxu0 %v19
  %316 = vmatprep.subr.mxu0 0.0
  %317 = vmatpush1.msra.mxu0 %v20
  %318 = vmatprep.subr.mxu0 0.0
  %319 = vmatpush1.msra.mxu0 %v21
  %320 = vmatprep.subr.mxu0 0.0
  %321 = vmatpush1.msra.mxu0 %v22
  %322 = vmatprep.subr.mxu0 0.0
  %323 = vmatpush1.msra.mxu0 %v23
  %324 = vmatprep.subr.mxu0 0.0
  %325 = vmatpush1.msra.mxu0 %v24
  %326 = vmatprep.subr.mxu0 0.0
  %327 = vmatpush1.msra.mxu0 %v25
  %328 = vmatprep.subr.mxu0 0.0
  %329 = vmatpush1.msra.mxu0 %v26
  %330 = vmatprep.subr.mxu0 0.0
  %331 = vmatpush1.msra.mxu0 %v27
  %332 = vmatprep.subr.mxu0 0.0
  %333 = vmatpush1.msra.mxu0 %v28
  %334 = vmatprep.subr.mxu0 0.0
  %335 = vmatpush1.msra.mxu0 %v29
  %336 = vmatprep.subr.mxu0 0.0
  %337 = vmatpush1.msra.mxu0 %v30
  %338 = vmatprep.subr.mxu0 0.0
  %339 = vmatpush1.msra.mxu0 %v31
  %340 = vmatprep.subr.mxu0 0.0
  %341 = vmatpush1.msra.mxu0 %v32
  %342 = vmatprep.subr.mxu0 0.0
  %343 = vmatpush1.msra.mxu0 %v33
  %344 = vmatprep.subr.mxu0 0.0
  %345 = vmatpush1.msra.mxu0 %v34
  %346 = vmatprep.subr.mxu0 0.0
  %347 = vmatpush1.msra.mxu0 %v35
  %348 = vmatprep.subr.mxu0 0.0
  %349 = vmatpush1.msra.mxu0 %v36
  %350 = vmatprep.subr.mxu0 0.0
  %351 = vmatpush1.msra.mxu0 %v37
  %352 = vmatprep.subr.mxu0 0.0
  %353 = vmatpush1.msra.mxu0 %v38
  %354 = vmatprep.subr.mxu0 0.0
  %355 = vmatpush1.msra.mxu0 %v39
  %356 = vmatprep.subr.mxu0 0.0
  %357 = vmatpush1.msra.mxu0 %v40
  %358 = vmatprep.subr.mxu0 0.0
  %359 = vmatpush1.msra.mxu0 %v41
  %360 = vmatprep.subr.mxu0 0.0
  %361 = vmatpush1.msra.mxu0 %v42
  %362 = vmatprep.subr.mxu0 0.0
  %363 = vmatpush1.msra.mxu0 %v43
  %364 = vmatprep.subr.mxu0 0.0
  %365 = vmatpush1.msra.mxu0 %v44
  %366 = vmatprep.subr.mxu0 0.0
  %367 = vmatpush1.msra.mxu0 %v45
  %368 = vmatprep.mubr.f32.mxu0 %v291
  %369 = vmatmul.mubr.f32.gmra.mrb[0].mxu0 %v290
  %v370 = vpop.f32.mrb[0].mxu0
  %v371 = vadd.f32 %v65, %v370
  %v372 = vpop.f32.mrb[0].mxu0
  %373 = vmatprep.mubr.f32.mxu0 %v293
  %374 = vmatmul.mubr.f32.gmra.mrb[0].mxu0 %v292
  %v375 = vpop.f32.mrb[0].mxu0
  %v376 = vadd.f32 %v65, %v375
  %v377 = vpop.f32.mrb[0].mxu0
  %378 = vmatprep.mubr.f32.mxu0 %v295
  %379 = vmatmul.mubr.f32.gmra.mrb[0].mxu0 %v294
  %v380 = vpop.f32.mrb[0].mxu0
  %v381 = vadd.f32 %v65, %v380
  %v382 = vpop.f32.mrb[0].mxu0
  %383 = vmatprep.mubr.f32.mxu0 %v297
  %384 = vmatmul.mubr.f32.gmra.mrb[0].mxu0 %v296
  %v385 = vpop.f32.mrb[0].mxu0
  %v386 = vadd.f32 %v65, %v385
  %v387 = vpop.f32.mrb[0].mxu0
  %388 = vmatprep.mubr.f32.mxu0 %v299
  %389 = vmatmul.mubr.f32.gmra.mrb[0].mxu0 %v298
  %v390 = vpop.f32.mrb[0].mxu0
  %v391 = vadd.f32 %v65, %v390
  %v392 = vpop.f32.mrb[0].mxu0
  %393 = vmatprep.mubr.f32.mxu0 %v301
  %394 = vmatmul.mubr.f32.gmra.mrb[0].mxu0 %v300
  %v395 = vpop.f32.mrb[0].mxu0
  %v396 = vadd.f32 %v65, %v395
  %v397 = vpop.f32.mrb[0].mxu0
  %398 = vmatprep.mubr.f32.mxu0 %v303
  %399 = vmatmul.mubr.f32.gmra.mrb[0].mxu0 %v302
  %v400 = vpop.f32.mrb[0].mxu0
  %v401 = vadd.f32 %v65, %v400
  %v402 = vpop.f32.mrb[0].mxu0
  %403 = vdwg.mxu0
  %v404 = vmax.f32 %v282, %v371
  %v405 = vmax.f32 %v283, %v376
  %v406 = vmax.f32 %v284, %v381
  %v407 = vmax.f32 %v285, %v386
  %v408 = vmax.f32 %v286, %v391
  %v409 = vmax.f32 %v287, %v396
  %v410 = vmax.f32 %v288, %v401
  %s411 = scalar_lea.vmem %s0, 336
  %v412 = vld [vmem:[%s411] sm:$0xff]
  %v413 = vld [vmem:[%s411 + $0x8] sm:$0xff]
  %v414 = vld [vmem:[%s411 + $0x10] sm:$0xff]
  %v415 = vld [vmem:[%s411 + $0x18] sm:$0xff]
  %v416 = vld [vmem:[%s411 + $0x20] sm:$0xff]
  %v417 = vld [vmem:[%s411 + $0x28] sm:$0xff]
  %v418 = vld [vmem:[%s411 + $0x30] sm:$0xff]
  %v419 = vld [vmem:[%s411 + $0x38] sm:$0xff]
  %v420 = vld [vmem:[%s411 + $0x40] sm:$0xff]
  %v421 = vld [vmem:[%s411 + $0x48] sm:$0xff]
  %v422 = vld [vmem:[%s411 + $0x50] sm:$0xff]
  %v423 = vld [vmem:[%s411 + $0x58] sm:$0xff]
  %v424 = vld [vmem:[%s411 + $0x60] sm:$0xff]
  %v425 = vld [vmem:[%s411 + $0x68] sm:$0xff]
  %426 = vmatprep.subr.mxu0 0.0
  %427 = vmatpush1.msra.mxu0 %v14
  %428 = vmatprep.subr.mxu0 0.0
  %429 = vmatpush1.msra.mxu0 %v15
  %430 = vmatprep.subr.mxu0 0.0
  %431 = vmatpush1.msra.mxu0 %v16
  %432 = vmatprep.subr.mxu0 0.0
  %433 = vmatpush1.msra.mxu0 %v17
  %434 = vmatprep.subr.mxu0 0.0
  %435 = vmatpush1.msra.mxu0 %v18
  %436 = vmatprep.subr.mxu0 0.0
  %437 = vmatpush1.msra.mxu0 %v19
  %438 = vmatprep.subr.mxu0 0.0
  %439 = vmatpush1.msra.mxu0 %v20
  %440 = vmatprep.subr.mxu0 0.0
  %441 = vmatpush1.msra.mxu0 %v21
  %442 = vmatprep.subr.mxu0 0.0
  %443 = vmatpush1.msra.mxu0 %v22
  %444 = vmatprep.subr.mxu0 0.0
  %445 = vmatpush1.msra.mxu0 %v23
  %446 = vmatprep.subr.mxu0 0.0
  %447 = vmatpush1.msra.mxu0 %v24
  %448 = vmatprep.subr.mxu0 0.0
  %449 = vmatpush1.msra.mxu0 %v25
  %450 = vmatprep.subr.mxu0 0.0
  %451 = vmatpush1.msra.mxu0 %v26
  %452 = vmatprep.subr.mxu0 0.0
  %453 = vmatpush1.msra.mxu0 %v27
  %454 = vmatprep.subr.mxu0 0.0
  %455 = vmatpush1.msra.mxu0 %v28
  %456 = vmatprep.subr.mxu0 0.0
  %457 = vmatpush1.msra.mxu0 %v29
  %458 = vmatprep.subr.mxu0 0.0
  %459 = vmatpush1.msra.mxu0 %v30
  %460 = vmatprep.subr.mxu0 0.0
  %461 = vmatpush1.msra.mxu0 %v31
  %462 = vmatprep.subr.mxu0 0.0
  %463 = vmatpush1.msra.mxu0 %v32
  %464 = vmatprep.subr.mxu0 0.0
  %465 = vmatpush1.msra.mxu0 %v33
  %466 = vmatprep.subr.mxu0 0.0
  %467 = vmatpush1.msra.mxu0 %v34
  %468 = vmatprep.subr.mxu0 0.0
  %469 = vmatpush1.msra.mxu0 %v35
  %470 = vmatprep.subr.mxu0 0.0
  %471 = vmatpush1.msra.mxu0 %v36
  %472 = vmatprep.subr.mxu0 0.0
  %473 = vmatpush1.msra.mxu0 %v37
  %474 = vmatprep.subr.mxu0 0.0
  %475 = vmatpush1.msra.mxu0 %v38
  %476 = vmatprep.subr.mxu0 0.0
  %477 = vmatpush1.msra.mxu0 %v39
  %478 = vmatprep.subr.mxu0 0.0
  %479 = vmatpush1.msra.mxu0 %v40
  %480 = vmatprep.subr.mxu0 0.0
  %481 = vmatpush1.msra.mxu0 %v41
  %482 = vmatprep.subr.mxu0 0.0
  %483 = vmatpush1.msra.mxu0 %v42
  %484 = vmatprep.subr.mxu0 0.0
  %485 = vmatpush1.msra.mxu0 %v43
  %486 = vmatprep.subr.mxu0 0.0
  %487 = vmatpush1.msra.mxu0 %v44
  %488 = vmatprep.subr.mxu0 0.0
  %489 = vmatpush1.msra.mxu0 %v45
  %490 = vmatprep.mubr.f32.mxu0 %v413
  %491 = vmatmul.mubr.f32.gmra.mrb[0].mxu0 %v412
  %v492 = vpop.f32.mrb[0].mxu0
  %v493 = vadd.f32 %v65, %v492
  %v494 = vpop.f32.mrb[0].mxu0
  %495 = vmatprep.mubr.f32.mxu0 %v415
  %496 = vmatmul.mubr.f32.gmra.mrb[0].mxu0 %v414
  %v497 = vpop.f32.mrb[0].mxu0
  %v498 = vadd.f32 %v65, %v497
  %v499 = vpop.f32.mrb[0].mxu0
  %500 = vmatprep.mubr.f32.mxu0 %v417
  %501 = vmatmul.mubr.f32.gmra.mrb[0].mxu0 %v416
  %v502 = vpop.f32.mrb[0].mxu0
  %v503 = vadd.f32 %v65, %v502
  %v504 = vpop.f32.mrb[0].mxu0
  %505 = vmatprep.mubr.f32.mxu0 %v419
  %506 = vmatmul.mubr.f32.gmra.mrb[0].mxu0 %v418
  %v507 = vpop.f32.mrb[0].mxu0
  %v508 = vadd.f32 %v65, %v507
  %v509 = vpop.f32.mrb[0].mxu0
  %510 = vmatprep.mubr.f32.mxu0 %v421
  %511 = vmatmul.mubr.f32.gmra.mrb[0].mxu0 %v420
  %v512 = vpop.f32.mrb[0].mxu0
  %v513 = vadd.f32 %v65, %v512
  %v514 = vpop.f32.mrb[0].mxu0
  %515 = vmatprep.mubr.f32.mxu0 %v423
  %516 = vmatmul.mubr.f32.gmra.mrb[0].mxu0 %v422
  %v517 = vpop.f32.mrb[0].mxu0
  %v518 = vadd.f32 %v65, %v517
  %v519 = vpop.f32.mrb[0].mxu0
  %520 = vmatprep.mubr.f32.mxu0 %v425
  %521 = vmatmul.mubr.f32.gmra.mrb[0].mxu0 %v424
  %v522 = vpop.f32.mrb[0].mxu0
  %v523 = vadd.f32 %v65, %v522
  %v524 = vpop.f32.mrb[0].mxu0
  %525 = vdwg.mxu0
  %v526 = vmax.f32 %v404, %v493
  %v527 = vmax.f32 %v405, %v498
  %v528 = vmax.f32 %v406, %v503
  %v529 = vmax.f32 %v407, %v508
  %v530 = vmax.f32 %v408, %v513
  %v531 = vmax.f32 %v409, %v518
  %v532 = vmax.f32 %v410, %v523
  %v533 = vmax.f32 %v526, 0.0
  %v534 = vmax.f32 %v527, 0.0
  %v535 = vmax.f32 %v528, 0.0
  %v536 = vmax.f32 %v529, 0.0
  %v537 = vmax.f32 %v530, 0.0
  %v538 = vmax.f32 %v531, 0.0
  %v539 = vmax.f32 %v532, 0.0
  %540 = vst [vmem:[%s3] sm:$0xff] %v533
  %541 = vst [vmem:[%s3 + $0x8] sm:$0xff] %v534
  %542 = vst [vmem:[%s3 + $0x10] sm:$0xff] %v535
  %543 = vst [vmem:[%s3 + $0x18] sm:$0xff] %v536
  %544 = vst [vmem:[%s3 + $0x20] sm:$0xff] %v537
  %545 = vst [vmem:[%s3 + $0x28] sm:$0xff] %v538
  %546 = vst [vmem:[%s3 + $0x30] sm:$0xff] %v539
  // Predicated region
  $region14: #{net_forward.4} parent=0 // pred_check
    _
  $region15: #{net_forward.4} parent=0 // pred_check_branch
    %548 = sbr.rel (0) target = $region17
  $region16: #{net_forward.4} parent=0 // pred_region
    _
  $region17: #{net_forward.4} parent=0 // pred_fallthru
    _
  // Predicated region
  $region18: #{net_forward.4} parent=0 // pred_check
    _
  $region19: #{net_forward.4} parent=0 // pred_check_branch
    %550 = sbr.rel (0) target = $region21
  $region20: #{net_forward.4} parent=0 // pred_region
    _
  $region21: #{net_forward.4} parent=0 // pred_fallthru
    _

// kernel: net_forward.5
$region0: #{net_forward.5}
  #allocation0 [shape = 'u32[]', space=smem, size = 0x4, offset = 0x4, fixed_abs, tag = 'smem constant byte address 0x4 - core index']
  #allocation1 [shape = 'u32[144,128]{1,0:T(1,128)}', space=vmem, size = 0x12000, scoped, tag = 'internal scratch']
  %s0 = inlined_call_operand.vmem [shape: f32[2,400], index: 0, kind: input, shape index: {}]
  %s1 = inlined_call_operand.vmem [shape: f32[400,128], index: 1, kind: input, shape index: {}]
  %s2 = inlined_call_operand.vmem [shape: f32[1,128], index: 2, kind: input, shape index: {}]
  %s3 = inlined_call_operand.vmem [shape: f32[128,128], index: 3, kind: input, shape index: {}]
  %s4 = inlined_call_operand.vmem [shape: f32[1,128], index: 4, kind: input, shape index: {}]
  %s5 = inlined_call_operand.vmem [shape: f32[128,128], index: 5, kind: input, shape index: {}]
  %s6 = inlined_call_operand.vmem [shape: f32[1,128], index: 6, kind: input, shape index: {}]
  %s7 = inlined_call_operand.hbm [shape: f32[2,128], index: 7, kind: output, shape index: {}]
  %s8 = sld [smem:[#allocation0]]
  $region38: #{net_forward.5} parent=0
    _
  %s10 = ssub.s32 1, %s8
  %s11 = scalar_select 0, %s10, %s8
  $region1: #{net_forward.5} parent=0
    #allocation2 [shape = 'u8[1024]{0}', space=vmem, size = 0x400, scoped, tag = 'output window, operand 0, single buffered']
    #allocation3 [shape = 's32[1]{0}', space=sflag, size = 0x4, scoped, tag = 'scoped memory for net_forward.5']
    %12 = vsyncpa [#allocation3], 0
    // Predicated region
    $region2: #{net_forward.5} parent=1 // pred_check
      _
    $region3: #{net_forward.5} parent=1 // pred_check_branch
      %14 = sbr.rel (0) target = $region5
    $region4: #{net_forward.5} parent=1 // pred_region
      _
    $region5: #{net_forward.5} parent=1 // pred_fallthru
      _
    // Predicated region
    $region6: #{net_forward.5} parent=1 // pred_check
      _
    $region7: #{net_forward.5} parent=1 // pred_check_branch
      %16 = sbr.rel (0) target = $region9
    $region8: #{net_forward.5} parent=1 // pred_region
      _
    $region9: #{net_forward.5} parent=1 // pred_fallthru
      _
    // Predicated region
    $region10: #{net_forward.5} parent=1 // pred_check
      _
    $region11: #{net_forward.5} parent=1 // pred_check_branch
      %18 = sbr.rel (0) target = $region13
    $region12: #{net_forward.5} parent=1 // pred_region
      _
    $region13: #{net_forward.5} parent=1 // pred_fallthru
      _
    // Predicated region
    $region14: #{net_forward.5} parent=1 // pred_check
      _
    $region15: #{net_forward.5} parent=1 // pred_check_branch
      %20 = sbr.rel (0) target = $region17
    $region16: #{net_forward.5} parent=1 // pred_region
      _
    $region17: #{net_forward.5} parent=1 // pred_fallthru
      _
    // Predicated region
    $region18: #{net_forward.5} parent=1 // pred_check
      _
    $region19: #{net_forward.5} parent=1 // pred_check_branch
      %22 = sbr.rel (0) target = $region21
    $region20: #{net_forward.5} parent=1 // pred_region
      _
    $region21: #{net_forward.5} parent=1 // pred_fallthru
      _
    // Predicated region
    $region22: #{net_forward.5} parent=1 // pred_check
      _
    $region23: #{net_forward.5} parent=1 // pred_check_branch
      %24 = sbr.rel (0) target = $region25
    $region24: #{net_forward.5} parent=1 // pred_region
      _
    $region25: #{net_forward.5} parent=1 // pred_fallthru
      _
    // Predicated region
    $region26: #{net_forward.5} parent=1 // pred_check
      _
    $region27: #{net_forward.5} parent=1 // pred_check_branch
      %26 = sbr.rel (0) target = $region29
    $region28: #{net_forward.5} parent=1 // pred_region
      _
    $region29: #{net_forward.5} parent=1 // pred_fallthru
      _
    %v27 = vld [vmem:[%s0] sm:$0xff]
    %v28 = vld [vmem:[%s1] sm:$0xff]
    %v29 = vld [vmem:[%s1 + $0x8] sm:$0xff]
    %v30 = vld [vmem:[%s1 + $0x10] sm:$0xff]
    %v31 = vld [vmem:[%s1 + $0x18] sm:$0xff]
    %v32 = vld [vmem:[%s1 + $0x20] sm:$0xff]
    %v33 = vld [vmem:[%s1 + $0x28] sm:$0xff]
    %v34 = vld [vmem:[%s1 + $0x30] sm:$0xff]
    %v35 = vld [vmem:[%s1 + $0x38] sm:$0xff]
    %v36 = vld [vmem:[%s1 + $0x40] sm:$0xff]
    %v37 = vld [vmem:[%s1 + $0x48] sm:$0xff]
    %v38 = vld [vmem:[%s1 + $0x50] sm:$0xff]
    %v39 = vld [vmem:[%s1 + $0x58] sm:$0xff]
    %v40 = vld [vmem:[%s1 + $0x60] sm:$0xff]
    %v41 = vld [vmem:[%s1 + $0x68] sm:$0xff]
    %v42 = vld [vmem:[%s1 + $0x70] sm:$0xff]
    %v43 = vld [vmem:[%s1 + $0x78] sm:$0xff]
    %v44 = vld [vmem:[%s1 + $0x80] sm:$0xff]
    %v45 = vld [vmem:[%s1 + $0x88] sm:$0xff]
    %v46 = vld [vmem:[%s1 + $0x90] sm:$0xff]
    %v47 = vld [vmem:[%s1 + $0x98] sm:$0xff]
    %v48 = vld [vmem:[%s1 + $0xa0] sm:$0xff]
    %v49 = vld [vmem:[%s1 + $0xa8] sm:$0xff]
    %v50 = vld [vmem:[%s1 + $0xb0] sm:$0xff]
    %v51 = vld [vmem:[%s1 + $0xb8] sm:$0xff]
    %v52 = vld [vmem:[%s1 + $0xc0] sm:$0xff]
    %v53 = vld [vmem:[%s1 + $0xc8] sm:$0xff]
    %v54 = vld [vmem:[%s1 + $0xd0] sm:$0xff]
    %v55 = vld [vmem:[%s1 + $0xd8] sm:$0xff]
    %v56 = vld [vmem:[%s1 + $0xe0] sm:$0xff]
    %v57 = vld [vmem:[%s1 + $0xe8] sm:$0xff]
    %v58 = vld [vmem:[%s1 + $0xf0] sm:$0xff]
    %v59 = vld [vmem:[%s1 + $0xf8] sm:$0xff]
    %v60 = vld [vmem:[%s1 + $0x100] sm:$0xff]
    %v61 = vld [vmem:[%s1 + $0x108] sm:$0xff]
    %v62 = vld [vmem:[%s1 + $0x110] sm:$0xff]
    %v63 = vld [vmem:[%s1 + $0x118] sm:$0xff]
    %v64 = vld [vmem:[%s1 + $0x120] sm:$0xff]
    %v65 = vld [vmem:[%s1 + $0x128] sm:$0xff]
    %v66 = vld [vmem:[%s1 + $0x130] sm:$0xff]
    %v67 = vld [vmem:[%s1 + $0x138] sm:$0xff]
    %v68 = vld [vmem:[%s1 + $0x140] sm:$0xff]
    %v69 = vld [vmem:[%s1 + $0x148] sm:$0xff]
    %v70 = vld [vmem:[%s1 + $0x150] sm:$0xff]
    %v71 = vld [vmem:[%s1 + $0x158] sm:$0xff]
    %v72 = vld [vmem:[%s1 + $0x160] sm:$0xff]
    %v73 = vld [vmem:[%s1 + $0x168] sm:$0xff]
    %v74 = vld [vmem:[%s1 + $0x170] sm:$0xff]
    %v75 = vld [vmem:[%s1 + $0x178] sm:$0xff]
    %v76 = vld [vmem:[%s1 + $0x180] sm:$0xff]
    %v77 = vld [vmem:[%s1 + $0x188] sm:$0xff]
    %v78 = vld [vmem:[%s2] sm:$0x1]
    %v80 = vlaneseq
    %v81 = vshrl.u32 %v80, 7
    %v82 = vsub.s32 0, %v81
    %v83 = vrot.slane %v78, %v82
    %v86 = vcombine.high %v27, %v27
    %v88 = vunpack.c.l.s4 1983009808
    %v89 = vunpack.c.0.s8 %v88
    %v90 = vlaneseq
    %v91 = vshrl.u32 %v90, 7
    %v92 = vsub.s32 %v89, %v91
    %v93 = vrot.slane %v27, %v92
    %v95 = vunpack.c.l.s4 1983009808
    %v96 = vunpack.c.0.s8 %v95
    %v97 = vlaneseq
    %v98 = vshrl.u32 %v97, 7
    %v99 = vsub.s32 %v96, %v98
    %v100 = vrot.slane %v86, %v99
    %v101 = vcombine.high %v93, %v93
    %v102 = vcombine.high %v100, %v100
    %vm106 = vcmask 130048
    %v107 = vsel %vm106, %v102, 0
    %109 = vmatprep.subr.mxu0 0.0
    %110 = vmatpush1.msra.mxu0 %v28
    %111 = vmatprep.subr.mxu0 0.0
    %112 = vmatpush1.msra.mxu0 %v29
    %113 = vmatprep.subr.mxu0 0.0
    %114 = vmatpush1.msra.mxu0 %v30
    %115 = vmatprep.subr.mxu0 0.0
    %116 = vmatpush1.msra.mxu0 %v31
    %117 = vmatprep.subr.mxu0 0.0
    %118 = vmatpush1.msra.mxu0 %v32
    %119 = vmatprep.subr.mxu0 0.0
    %120 = vmatpush1.msra.mxu0 %v33
    %121 = vmatprep.subr.mxu0 0.0
    %122 = vmatpush1.msra.mxu0 %v34
    %123 = vmatprep.subr.mxu0 0.0
    %124 = vmatpush1.msra.mxu0 %v35
    %125 = vmatprep.subr.mxu0 0.0
    %126 = vmatpush1.msra.mxu0 %v36
    %127 = vmatprep.subr.mxu0 0.0
    %128 = vmatpush1.msra.mxu0 %v37
    %129 = vmatprep.subr.mxu0 0.0
    %130 = vmatpush1.msra.mxu0 %v38
    %131 = vmatprep.subr.mxu0 0.0
    %132 = vmatpush1.msra.mxu0 %v39
    %133 = vmatprep.subr.mxu0 0.0
    %134 = vmatpush1.msra.mxu0 %v40
    %135 = vmatprep.subr.mxu0 0.0
    %136 = vmatpush1.msra.mxu0 %v41
    %137 = vmatprep.subr.mxu0 0.0
    %138 = vmatpush1.msra.mxu0 %v42
    %139 = vmatprep.subr.mxu0 0.0
    %140 = vmatpush1.msra.mxu0 %v43
    %141 = vmatprep.subr.mxu0 0.0
    %142 = vmatpush1.msra.mxu0 %v44
    %143 = vmatprep.subr.mxu0 0.0
    %144 = vmatpush1.msra.mxu0 %v45
    %145 = vmatprep.subr.mxu0 0.0
    %146 = vmatpush1.msra.mxu0 %v46
    %147 = vmatprep.subr.mxu0 0.0
    %148 = vmatpush1.msra.mxu0 %v47
    %149 = vmatprep.subr.mxu0 0.0
    %150 = vmatpush1.msra.mxu0 %v48
    %151 = vmatprep.subr.mxu0 0.0
    %152 = vmatpush1.msra.mxu0 %v49
    %153 = vmatprep.subr.mxu0 0.0
    %154 = vmatpush1.msra.mxu0 %v50
    %155 = vmatprep.subr.mxu0 0.0
    %156 = vmatpush1.msra.mxu0 %v51
    %157 = vmatprep.subr.mxu0 0.0
    %158 = vmatpush1.msra.mxu0 %v52
    %159 = vmatprep.subr.mxu0 0.0
    %160 = vmatpush1.msra.mxu0 %v53
    %161 = vmatprep.subr.mxu0 0.0
    %162 = vmatpush1.msra.mxu0 %v54
    %163 = vmatprep.subr.mxu0 0.0
    %164 = vmatpush1.msra.mxu0 %v55
    %165 = vmatprep.subr.mxu0 0.0
    %166 = vmatpush1.msra.mxu0 %v56
    %167 = vmatprep.subr.mxu0 0.0
    %168 = vmatpush1.msra.mxu0 %v57
    %169 = vmatprep.subr.mxu0 0.0
    %170 = vmatpush1.msra.mxu0 %v58
    %171 = vmatprep.subr.mxu0 0.0
    %172 = vmatpush1.msra.mxu0 %v59
    %173 = vmatprep.mubr.f32.mxu0 %v101
    %174 = vmatmul.mubr.f32.gmra.mrb[0].mxu0 %v93
    %v175 = vpop.f32.mrb[0].mxu0
    %v176 = vadd.f32 %v83, %v175
    %v177 = vpop.f32.mrb[0].mxu0
    %178 = vdwg.mxu0
    %179 = vmatprep.subr.mxu0 0.0
    %180 = vmatpush1.msra.mxu0 %v60
    %181 = vmatprep.subr.mxu0 0.0
    %182 = vmatpush1.msra.mxu0 %v61
    %183 = vmatprep.subr.mxu0 0.0
    %184 = vmatpush1.msra.mxu0 %v62
    %185 = vmatprep.subr.mxu0 0.0
    %186 = vmatpush1.msra.mxu0 %v63
    %187 = vmatprep.subr.mxu0 0.0
    %188 = vmatpush1.msra.mxu0 %v64
    %189 = vmatprep.subr.mxu0 0.0
    %190 = vmatpush1.msra.mxu0 %v65
    %191 = vmatprep.subr.mxu0 0.0
    %192 = vmatpush1.msra.mxu0 %v66
    %193 = vmatprep.subr.mxu0 0.0
    %194 = vmatpush1.msra.mxu0 %v67
    %195 = vmatprep.subr.mxu0 0.0
    %196 = vmatpush1.msra.mxu0 %v68
    %197 = vmatprep.subr.mxu0 0.0
    %198 = vmatpush1.msra.mxu0 %v69
    %199 = vmatprep.subr.mxu0 0.0
    %200 = vmatpush1.msra.mxu0 %v70
    %201 = vmatprep.subr.mxu0 0.0
    %202 = vmatpush1.msra.mxu0 %v71
    %203 = vmatprep.subr.mxu0 0.0
    %204 = vmatpush1.msra.mxu0 %v72
    %205 = vmatprep.subr.mxu0 0.0
    %206 = vmatpush1.msra.mxu0 %v73
    %207 = vmatprep.subr.mxu0 0.0
    %208 = vmatpush1.msra.mxu0 %v74
    %209 = vmatprep.subr.mxu0 0.0
    %210 = vmatpush1.msra.mxu0 %v75
    %211 = vmatprep.subr.mxu0 0.0
    %212 = vmatpush1.msra.mxu0 %v76
    %213 = vmatprep.subr.mxu0 0.0
    %214 = vmatpush1.msra.mxu0 %v77
    %215 = vmatprep.subr.mxu0 0.0
    %216 = vmatpush1.msra.mxu0 0.0
    %217 = vmatprep.subr.mxu0 0.0
    %218 = vmatpush1.msra.mxu0 0.0
    %219 = vmatprep.subr.mxu0 0.0
    %220 = vmatpush1.msra.mxu0 0.0
    %221 = vmatprep.subr.mxu0 0.0
    %222 = vmatpush1.msra.mxu0 0.0
    %223 = vmatprep.subr.mxu0 0.0
    %224 = vmatpush1.msra.mxu0 0.0
    %225 = vmatprep.subr.mxu0 0.0
    %226 = vmatpush1.msra.mxu0 0.0
    %227 = vmatprep.subr.mxu0 0.0
    %228 = vmatpush1.msra.mxu0 0.0
    %229 = vmatprep.subr.mxu0 0.0
    %230 = vmatpush1.msra.mxu0 0.0
    %231 = vmatprep.subr.mxu0 0.0
    %232 = vmatpush1.msra.mxu0 0.0
    %233 = vmatprep.subr.mxu0 0.0
    %234 = vmatpush1.msra.mxu0 0.0
    %235 = vmatprep.subr.mxu0 0.0
    %236 = vmatpush1.msra.mxu0 0.0
    %237 = vmatprep.subr.mxu0 0.0
    %238 = vmatpush1.msra.mxu0 0.0
    %239 = vmatprep.subr.mxu0 0.0
    %240 = vmatpush1.msra.mxu0 0.0
    %241 = vmatprep.subr.mxu0 0.0
    %242 = vmatpush1.msra.mxu0 0.0
    %243 = vmatprep.mubr.f32.mxu0 %v107
    %244 = vmatmul.mubr.f32.gmra.mrb[0].mxu0 %v100
    %v245 = vpop.f32.mrb[0].mxu0
    %v246 = vadd.f32 %v176, %v245
    %v247 = vpop.f32.mrb[0].mxu0
    %248 = vdwg.mxu0
    %v249 = vmax.f32 %v246, 0.0
    %v250 = vld [vmem:[%s3] sm:$0xff]
    %v251 = vld [vmem:[%s3 + $0x8] sm:$0xff]
    %v252 = vld [vmem:[%s3 + $0x10] sm:$0xff]
    %v253 = vld [vmem:[%s3 + $0x18] sm:$0xff]
    %v254 = vld [vmem:[%s3 + $0x20] sm:$0xff]
    %v255 = vld [vmem:[%s3 + $0x28] sm:$0xff]
    %v256 = vld [vmem:[%s3 + $0x30] sm:$0xff]
    %v257 = vld [vmem:[%s3 + $0x38] sm:$0xff]
    %v258 = vld [vmem:[%s3 + $0x40] sm:$0xff]
    %v259 = vld [vmem:[%s3 + $0x48] sm:$0xff]
    %v260 = vld [vmem:[%s3 + $0x50] sm:$0xff]
    %v261 = vld [vmem:[%s3 + $0x58] sm:$0xff]
    %v262 = vld [vmem:[%s3 + $0x60] sm:$0xff]
    %v263 = vld [vmem:[%s3 + $0x68] sm:$0xff]
    %v264 = vld [vmem:[%s3 + $0x70] sm:$0xff]
    %v265 = vld [vmem:[%s3 + $0x78] sm:$0xff]
    %v266 = vld [vmem:[%s4] sm:$0x1]
    %v268 = vlaneseq
    %v269 = vshrl.u32 %v268, 7
    %v270 = vsub.s32 0, %v269
    %v271 = vrot.slane %v266, %v270
    %273 = vmatprep.subr.mxu0 0.0
    %274 = vmatpush1.msra.mxu0 %v250
    %275 = vmatprep.subr.mxu0 0.0
    %276 = vmatpush1.msra.mxu0 %v251
    %277 = vmatprep.subr.mxu0 0.0
    %278 = vmatpush1.msra.mxu0 %v252
    %279 = vmatprep.subr.mxu0 0.0
    %280 = vmatpush1.msra.mxu0 %v253
    %281 = vmatprep.subr.mxu0 0.0
    %282 = vmatpush1.msra.mxu0 %v254
    %283 = vmatprep.subr.mxu0 0.0
    %284 = vmatpush1.msra.mxu0 %v255
    %285 = vmatprep.subr.mxu0 0.0
    %286 = vmatpush1.msra.mxu0 %v256
    %287 = vmatprep.subr.mxu0 0.0
    %288 = vmatpush1.msra.mxu0 %v257
    %289 = vmatprep.subr.mxu0 0.0
    %290 = vmatpush1.msra.mxu0 %v258
    %291 = vmatprep.subr.mxu0 0.0
    %292 = vmatpush1.msra.mxu0 %v259
    %293 = vmatprep.subr.mxu0 0.0
    %294 = vmatpush1.msra.mxu0 %v260
    %295 = vmatprep.subr.mxu0 0.0
    %296 = vmatpush1.msra.mxu0 %v261
    %297 = vmatprep.subr.mxu0 0.0
    %298 = vmatpush1.msra.mxu0 %v262
    %299 = vmatprep.subr.mxu0 0.0
    %300 = vmatpush1.msra.mxu0 %v263
    %301 = vmatprep.subr.mxu0 0.0
    %302 = vmatpush1.msra.mxu0 %v264
    %303 = vmatprep.subr.mxu0 0.0
    %304 = vmatpush1.msra.mxu0 %v265
    %305 = vmatprep.subr.mxu0 0.0
    %306 = vmatpush1.msra.mxu0 0.0
    %307 = vmatprep.subr.mxu0 0.0
    %308 = vmatpush1.msra.mxu0 0.0
    %309 = vmatprep.subr.mxu0 0.0
    %310 = vmatpush1.msra.mxu0 0.0
    %311 = vmatprep.subr.mxu0 0.0
    %312 = vmatpush1.msra.mxu0 0.0
    %313 = vmatprep.subr.mxu0 0.0
    %314 = vmatpush1.msra.mxu0 0.0
    %315 = vmatprep.subr.mxu0 0.0
    %316 = vmatpush1.msra.mxu0 0.0
    %317 = vmatprep.subr.mxu0 0.0
    %318 = vmatpush1.msra.mxu0 0.0
    %319 = vmatprep.subr.mxu0 0.0
    %320 = vmatpush1.msra.mxu0 0.0
    %321 = vmatprep.subr.mxu0 0.0
    %322 = vmatpush1.msra.mxu0 0.0
    %323 = vmatprep.subr.mxu0 0.0
    %324 = vmatpush1.msra.mxu0 0.0
    %325 = vmatprep.subr.mxu0 0.0
    %326 = vmatpush1.msra.mxu0 0.0
    %327 = vmatprep.subr.mxu0 0.0
    %328 = vmatpush1.msra.mxu0 0.0
    %329 = vmatprep.subr.mxu0 0.0
    %330 = vmatpush1.msra.mxu0 0.0
    %331 = vmatprep.subr.mxu0 0.0
    %332 = vmatpush1.msra.mxu0 0.0
    %333 = vmatprep.subr.mxu0 0.0
    %334 = vmatpush1.msra.mxu0 0.0
    %335 = vmatprep.subr.mxu0 0.0
    %336 = vmatpush1.msra.mxu0 0.0
    %337 = vmatprep.mubr.f32.mxu0 0.0
    %338 = vmatmul.mubr.f32.gmra.mrb[0].mxu0 %v249
    %v339 = vpop.f32.mrb[0].mxu0
    %v340 = vadd.f32 %v271, %v339
    %v341 = vpop.f32.mrb[0].mxu0
    %342 = vdwg.mxu0
    %v343 = vmax.f32 %v340, 0.0
    %v344 = vld [vmem:[%s5] sm:$0xff]
    %v345 = vld [vmem:[%s5 + $0x8] sm:$0xff]
    %v346 = vld [vmem:[%s5 + $0x10] sm:$0xff]
    %v347 = vld [vmem:[%s5 + $0x18] sm:$0xff]
    %v348 = vld [vmem:[%s5 + $0x20] sm:$0xff]
    %v349 = vld [vmem:[%s5 + $0x28] sm:$0xff]
    %v350 = vld [vmem:[%s5 + $0x30] sm:$0xff]
    %v351 = vld [vmem:[%s5 + $0x38] sm:$0xff]
    %v352 = vld [vmem:[%s5 + $0x40] sm:$0xff]
    %v353 = vld [vmem:[%s5 + $0x48] sm:$0xff]
    %v354 = vld [vmem:[%s5 + $0x50] sm:$0xff]
    %v355 = vld [vmem:[%s5 + $0x58] sm:$0xff]
    %v356 = vld [vmem:[%s5 + $0x60] sm:$0xff]
    %v357 = vld [vmem:[%s5 + $0x68] sm:$0xff]
    %v358 = vld [vmem:[%s5 + $0x70] sm:$0xff]
    %v359 = vld [vmem:[%s5 + $0x78] sm:$0xff]
    %v360 = vld [vmem:[%s6] sm:$0x1]
    %v362 = vlaneseq
    %v363 = vshrl.u32 %v362, 7
    %v364 = vsub.s32 0, %v363
    %v365 = vrot.slane %v360, %v364
    %367 = vmatprep.subr.mxu0 0.0
    %368 = vmatpush1.msra.mxu0 %v344
    %369 = vmatprep.subr.mxu0 0.0
    %370 = vmatpush1.msra.mxu0 %v345
    %371 = vmatprep.subr.mxu0 0.0
    %372 = vmatpush1.msra.mxu0 %v346
    %373 = vmatprep.subr.mxu0 0.0
    %374 = vmatpush1.msra.mxu0 %v347
    %375 = vmatprep.subr.mxu0 0.0
    %376 = vmatpush1.msra.mxu0 %v348
    %377 = vmatprep.subr.mxu0 0.0
    %378 = vmatpush1.msra.mxu0 %v349
    %379 = vmatprep.subr.mxu0 0.0
    %380 = vmatpush1.msra.mxu0 %v350
    %381 = vmatprep.subr.mxu0 0.0
    %382 = vmatpush1.msra.mxu0 %v351
    %383 = vmatprep.subr.mxu0 0.0
    %384 = vmatpush1.msra.mxu0 %v352
    %385 = vmatprep.subr.mxu0 0.0
    %386 = vmatpush1.msra.mxu0 %v353
    %387 = vmatprep.subr.mxu0 0.0
    %388 = vmatpush1.msra.mxu0 %v354
    %389 = vmatprep.subr.mxu0 0.0
    %390 = vmatpush1.msra.mxu0 %v355
    %391 = vmatprep.subr.mxu0 0.0
    %392 = vmatpush1.msra.mxu0 %v356
    %393 = vmatprep.subr.mxu0 0.0
    %394 = vmatpush1.msra.mxu0 %v357
    %395 = vmatprep.subr.mxu0 0.0
    %396 = vmatpush1.msra.mxu0 %v358
    %397 = vmatprep.subr.mxu0 0.0
    %398 = vmatpush1.msra.mxu0 %v359
    %399 = vmatprep.subr.mxu0 0.0
    %400 = vmatpush1.msra.mxu0 0.0
    %401 = vmatprep.subr.mxu0 0.0
    %402 = vmatpush1.msra.mxu0 0.0
    %403 = vmatprep.subr.mxu0 0.0
    %404 = vmatpush1.msra.mxu0 0.0
    %405 = vmatprep.subr.mxu0 0.0
    %406 = vmatpush1.msra.mxu0 0.0
    %407 = vmatprep.subr.mxu0 0.0
    %408 = vmatpush1.msra.mxu0 0.0
    %409 = vmatprep.subr.mxu0 0.0
    %410 = vmatpush1.msra.mxu0 0.0
    %411 = vmatprep.subr.mxu0 0.0
    %412 = vmatpush1.msra.mxu0 0.0
    %413 = vmatprep.subr.mxu0 0.0
    %414 = vmatpush1.msra.mxu0 0.0
    %415 = vmatprep.subr.mxu0 0.0
    %416 = vmatpush1.msra.mxu0 0.0
    %417 = vmatprep.subr.mxu0 0.0
    %418 = vmatpush1.msra.mxu0 0.0
    %419 = vmatprep.subr.mxu0 0.0
    %420 = vmatpush1.msra.mxu0 0.0
    %421 = vmatprep.subr.mxu0 0.0
    %422 = vmatpush1.msra.mxu0 0.0
    %423 = vmatprep.subr.mxu0 0.0
    %424 = vmatpush1.msra.mxu0 0.0
    %425 = vmatprep.subr.mxu0 0.0
    %426 = vmatpush1.msra.mxu0 0.0
    %427 = vmatprep.subr.mxu0 0.0
    %428 = vmatpush1.msra.mxu0 0.0
    %429 = vmatprep.subr.mxu0 0.0
    %430 = vmatpush1.msra.mxu0 0.0
    %431 = vmatprep.mubr.f32.mxu0 0.0
    %432 = vmatmul.mubr.f32.gmra.mrb[0].mxu0 %v343
    %v433 = vpop.f32.mrb[0].mxu0
    %v434 = vadd.f32 %v365, %v433
    %v435 = vpop.f32.mrb[0].mxu0
    %436 = vdwg.mxu0
    %437 = vst [vmem:[#allocation2] sm:$0x3] %v434
    // Predicated region
    $region30: #{net_forward.5} parent=1 // pred_check
      _
    $region31: #{net_forward.5} parent=1 // pred_check_branch
      %439 = sbr.rel (0) target = $region33
    $region32: #{net_forward.5} parent=1 // pred_region
      %s441 = ssub.s32 32, 32
      %442 = vsyncadd [#allocation3], %s441
      %s444 = sshll.u32 [#allocation2], 4
      %s445 = int_to_ptr.vmem [resolvable:$true] %s444
      %447 = dma.vmem_to_hbm [thread:$0]  %s445, 32, %s7, [#allocation3]
    $region33: #{net_forward.5} parent=1 // pred_fallthru
      _
    // Predicated region
    $region34: #{net_forward.5} parent=1 // pred_check
      _
    $region35: #{net_forward.5} parent=1 // pred_check_branch
      %449 = sbr.rel (0) target = $region37
    $region36: #{net_forward.5} parent=1 // pred_region
      %450 = dma.done [#allocation3], 32
    $region37: #{net_forward.5} parent=1 // pred_fallthru
      _
    %451 = vsyncpa [#allocation3], 1

</llo_original>
